<compile_context>
chip_gen: v6e
topology: v6e:2x2x1
jax: 0.10.0
libtpu: 0.0.40
codegen_flags: <defaults>
</compile_context>

<pallas_src>
import functools

import jax
import jax.numpy as jnp
from jax.experimental import pallas as pl
from jax.experimental.pallas import tpu as pltpu


# --------------------------------------------------------------------------
# helpers
# --------------------------------------------------------------------------
def _pick_tile(total, prefs=(2048, 1024, 512, 256, 128)):
    """Largest preferred tile that evenly divides `total`; else full extent."""
    for t in prefs:
        if t <= total and total % t == 0:
            return t
    # TODO(synk): non-divisible large extents fall back to a single block.
    return total


def _erf_f32(x):
    """Abramowitz & Stegun 7.1.26 rational erf, max abs err ~1.5e-7 (f32-exact).

    Avoids relying on a lax.erf lowering inside Mosaic while keeping the exact
    (non-tanh) GELU semantics of torch.nn.functional.gelu.
    """
    a1, a2, a3, a4, a5 = 0.254829592, -0.284496736, 1.421413741, -1.453152027, 1.061405429
    p = 0.3275911
    ax = jnp.abs(x)
    t = 1.0 / (1.0 + p * ax)
    poly = ((((a5 * t + a4) * t + a3) * t + a2) * t + a1) * t
    r = 1.0 - poly * jnp.exp(-ax * ax)
    return jnp.where(x >= 0, r, -r)


def _gelu_exact(x):
    return 0.5 * x * (1.0 + _erf_f32(x * 0.7071067811865476))


def _layernorm(y, gamma, beta, eps):
    mu = jnp.mean(y, axis=-1, keepdims=True)
    d = y - mu
    var = jnp.mean(d * d, axis=-1, keepdims=True)
    return d * jax.lax.rsqrt(var + eps) * gamma + beta


# --------------------------------------------------------------------------
# Kernel 1: embedding matmul, K-tiled (K = T*H*W), bias + pos-enc in finalize
# --------------------------------------------------------------------------
def _embed_kernel(x_ref, w_ref, b_ref, pos_ref, o_ref):
    k = pl.program_id(0)

    @pl.when(k == 0)
    def _():
        o_ref[...] = jnp.zeros_like(o_ref)

    o_ref[...] += jnp.dot(
        x_ref[...].astype(jnp.bfloat16), w_ref[...],
        preferred_element_type=jnp.float32)

    @pl.when(k == pl.num_programs(0) - 1)
    def _():
        o_ref[...] = o_ref[...] + b_ref[...] + pos_ref[...]


def embed_pallas(x_flat, w_bf16, b, pos_flat):
    M, K = x_flat.shape
    D = w_bf16.shape[1]
    tk = _pick_tile(K)
    nk = K // tk
    return pl.pallas_call(
        _embed_kernel,
        out_shape=jax.ShapeDtypeStruct((M, D), jnp.float32),
        grid=(nk,),
        in_specs=[
            pl.BlockSpec((M, tk), lambda k: (0, k)),
            pl.BlockSpec((tk, D), lambda k: (k, 0)),
            pl.BlockSpec((1, D), lambda k: (0, 0)),
            pl.BlockSpec((M, D), lambda k: (0, 0)),
        ],
        out_specs=pl.BlockSpec((M, D), lambda k: (0, 0)),
        compiler_params=pltpu.CompilerParams(dimension_semantics=("arbitrary",)),
    )(x_flat, w_bf16, b.reshape(1, D), pos_flat)


# --------------------------------------------------------------------------
# Kernel 2: one full post-norm TransformerEncoderLayer per pallas_call,
#           grid over batch (parallel -> both v7x TensorCores)
# --------------------------------------------------------------------------
def _encoder_layer_kernel(x_ref, w_qkv_ref, b_qkv_ref, w_o_ref, b_o_ref,
                          ln1_g_ref, ln1_b_ref, w1_ref, b1_ref, w2_ref, b2_ref,
                          ln2_g_ref, ln2_b_ref, o_ref, *, num_heads, eps):
    f32 = jnp.float32
    bf16 = jnp.bfloat16

    x = x_ref[0].astype(f32)                       # (J, D)
    J, D = x.shape
    dh = D // num_heads
    scale = 1.0 / (dh ** 0.5)

    w_o = w_o_ref[...]                             # (D, D) bf16, loaded once

    # --- packed QKV projection (bf16 MXU, f32 accumulate) ---
    qkv = jnp.dot(x.astype(bf16), w_qkv_ref[...],
                  preferred_element_type=f32) + b_qkv_ref[...]    # (J, 3D)
    q = qkv[:, :D]
    k = qkv[:, D:2 * D]
    v = qkv[:, 2 * D:]

    # --- all heads inside the kernel; out-proj folded into the head loop ---
    proj = jnp.zeros((J, D), f32)
    for h in range(num_heads):
        sl = slice(h * dh, (h + 1) * dh)
        qh = q[:, sl].astype(bf16)
        kh = k[:, sl].astype(bf16)
        vh = v[:, sl].astype(bf16)
        s = jax.lax.dot_general(qh, kh, (((1,), (1,)), ((), ())),
                                preferred_element_type=f32) * scale   # (J, J)
        s = s - jnp.max(s, axis=-1, keepdims=True)
        p = jnp.exp(s)
        p = p * pl.reciprocal(jnp.sum(p, axis=-1, keepdims=True), approx=True)
        oh = jnp.dot(p.astype(bf16), vh, preferred_element_type=f32)  # (J, dh)
        proj = proj + jnp.dot(oh.astype(bf16), w_o[sl, :],
                              preferred_element_type=f32)             # (J, D)
    proj = proj + b_o_ref[...]

    # --- post-norm 1: LN(x + attn) ---
    y = _layernorm(x + proj, ln1_g_ref[...], ln1_b_ref[...], eps)

    # --- feed-forward: FF1 -> exact GELU -> FF2 (bf16 matmuls) ---
    h1 = jnp.dot(y.astype(bf16), w1_ref[...],
                 preferred_element_type=f32) + b1_ref[...]
    h1 = _gelu_exact(h1)
    h2 = jnp.dot(h1.astype(bf16), w2_ref[...],
                 preferred_element_type=f32) + b2_ref[...]

    # --- post-norm 2: LN(y + ffn) ---
    z = _layernorm(y + h2, ln2_g_ref[...], ln2_b_ref[...], eps)

    o_ref[0] = z.astype(o_ref.dtype)


def encoder_layer_pallas(x, p, num_heads, eps=1e-5):
    B, J, D = x.shape
    FFN = p["w_ff1"].shape[1]
    bf16 = jnp.bfloat16

    tok_spec = pl.BlockSpec((1, J, D), lambda b: (b, 0, 0))

    args = [
        x,
        p["w_qkv"].astype(bf16), p["b_qkv"].reshape(1, 3 * D),
        p["w_o"].astype(bf16), p["b_o"].reshape(1, D),
        p["ln1_g"].reshape(1, D), p["ln1_b"].reshape(1, D),
        p["w_ff1"].astype(bf16), p["b_ff1"].reshape(1, FFN),
        p["w_ff2"].astype(bf16), p["b_ff2"].reshape(1, D),
        p["ln2_g"].reshape(1, D), p["ln2_b"].reshape(1, D),
    ]
    in_specs = [tok_spec] + [
        pl.BlockSpec(a.shape, lambda b: (0, 0)) for a in args[1:]
    ]

    return pl.pallas_call(
        functools.partial(_encoder_layer_kernel, num_heads=num_heads, eps=eps),
        out_shape=jax.ShapeDtypeStruct((B, J, D), jnp.float32),
        grid=(B,),
        in_specs=in_specs,
        out_specs=tok_spec,
        compiler_params=pltpu.CompilerParams(dimension_semantics=("parallel",)),
    )(*args)


# --------------------------------------------------------------------------
# Kernel 3: final LayerNorm + attention_fc + joint softmax + heatmap reweight,
#           tiled over F = T*H*W (lane-dense, parallel grid)
# --------------------------------------------------------------------------
def _final_kernel(tok_ref, g_ref, b_ref, fcw_ref, fcb_ref, heat_ref, o_ref, *, eps):
    f32 = jnp.float32
    tok = tok_ref[...].astype(f32)                                   # (B, J, D)
    y = _layernorm(tok, g_ref[...], b_ref[...], eps)                 # final encoder norm
    # attention_fc: D -> 1, expressed as a lane reduction (no width-1 store)
    scores = jnp.sum(y * fcw_ref[...], axis=-1) + fcb_ref[...]       # (B, J)
    m = jnp.max(scores, axis=-1, keepdims=True)
    e = jnp.exp(scores - m)
    w = e * pl.reciprocal(jnp.sum(e, axis=-1, keepdims=True), approx=True)
    o_ref[...] = heat_ref[...] * w[:, :, None]                       # (B, J, tF)


def final_attention_reweight_pallas(tok, fin_g, fin_b, fc_w, fc_b, heat_flat,
                                    eps=1e-5):
    B, J, D = tok.shape
    F = heat_flat.shape[-1]
    tf = _pick_tile(F)
    nf = F // tf
    return pl.pallas_call(
        functools.partial(_final_kernel, eps=eps),
        out_shape=jax.ShapeDtypeStruct((B, J, F), jnp.float32),
        grid=(nf,),
        in_specs=[
            pl.BlockSpec((B, J, D), lambda f: (0, 0, 0)),
            pl.BlockSpec((1, D), lambda f: (0, 0)),
            pl.BlockSpec((1, D), lambda f: (0, 0)),
            pl.BlockSpec((1, D), lambda f: (0, 0)),
            pl.BlockSpec((1, 1), lambda f: (0, 0)),
            pl.BlockSpec((B, J, tf), lambda f: (0, 0, f)),
        ],
        out_specs=pl.BlockSpec((B, J, tf), lambda f: (0, 0, f)),
        compiler_params=pltpu.CompilerParams(dimension_semantics=("parallel",)),
    )(tok, fin_g.reshape(1, D), fin_b.reshape(1, D),
      fc_w.reshape(1, D), fc_b.reshape(1, 1), heat_flat)


# --------------------------------------------------------------------------
# Model composition
# --------------------------------------------------------------------------
def vit_forward(x, params, *, num_heads):
    B, J, T, H, W = x.shape
    x = x.astype(jnp.float32)
    Fdim = T * H * W
    flat = x.reshape(B, J, Fdim)                    # original heatmaps, flattened

    D = params["emb_w"].shape[1]
    # positional encoding folded into the embedding kernel's finalize branch
    pos_flat = jnp.broadcast_to(params["pos"], (B, J, D)).reshape(B * J, D)
    tok = embed_pallas(flat.reshape(B * J, Fdim),
                       params["emb_w"].astype(jnp.bfloat16),
                       params["emb_b"], pos_flat)
    tok = tok.reshape(B, J, D)

    for lp in params["layers"]:
        tok = encoder_layer_pallas(tok, lp, num_heads)

    out = final_attention_reweight_pallas(
        tok, params["fin_g"], params["fin_b"],
        params["fc_w"], params["fc_b"], flat)
    return out.reshape(B, J, T, H, W)


def init_params(key, flatten_size, D, ffn, num_layers, num_joints):
    def dense(k, fan_in, fan_out):
        return jax.random.normal(k, (fan_in, fan_out), jnp.float32) * 0.02

    keys = jax.random.split(key, 4 + num_layers)
    params = {
        "emb_w": dense(keys[0], flatten_size, D),
        "emb_b": jnp.zeros((D,), jnp.float32),
        "pos": jax.random.uniform(keys[1], (1, num_joints, D), jnp.float32),  # torch.rand
        "fin_g": jnp.ones((D,), jnp.float32),
        "fin_b": jnp.zeros((D,), jnp.float32),
        "fc_w": dense(keys[2], D, 1),
        "fc_b": jnp.zeros((1,), jnp.float32),
        "layers": [],
    }
    for li in range(num_layers):
        lk = jax.random.split(keys[4 + li], 4)
        params["layers"].append({
            "w_qkv": dense(lk[0], D, 3 * D),
            "b_qkv": jnp.zeros((3 * D,), jnp.float32),
            "w_o": dense(lk[1], D, D),
            "b_o": jnp.zeros((D,), jnp.float32),
            "ln1_g": jnp.ones((D,), jnp.float32),
            "ln1_b": jnp.zeros((D,), jnp.float32),
            "w_ff1": dense(lk[2], D, ffn),
            "b_ff1": jnp.zeros((ffn,), jnp.float32),
            "w_ff2": dense(lk[3], ffn, D),
            "b_ff2": jnp.zeros((D,), jnp.float32),
            "ln2_g": jnp.ones((D,), jnp.float32),
            "ln2_b": jnp.zeros((D,), jnp.float32),
        })
    return params


if __name__ == "__main__":
    # x: (batch, num_joints, temporal, height, width)
    B, J, T, H, W = 2, 17, 4, 8, 8
    D, NH, FFN, L = 32, 4, 64, 2   # scaled-down embedding_dim / heads / ffn / layers

    key = jax.random.PRNGKey(0)
    kx, kp = jax.random.split(key)
    x = jax.random.normal(kx, (B, J, T, H, W), jnp.float32)
    params = init_params(kp, T * H * W, D, FFN, L, J)

    fwd = jax.jit(functools.partial(vit_forward, num_heads=NH))
    out = fwd(x, params)
    jax.block_until_ready(out)
    assert out.shape == (B, J, T, H, W)
    assert out.dtype == jnp.float32
    print("KERNEL_OK")
</pallas_src>

<mosaic_0001>
module attributes {stable_mosaic.version = 11 : i64} {
  func.func @_embed_kernel(%arg0: i32, %arg1: memref<34x256xf32, #tpu.memory_space<vmem>>, %arg2: memref<256x32xbf16, #tpu.memory_space<vmem>>, %arg3: memref<1x32xf32, #tpu.memory_space<vmem>>, %arg4: memref<34x32xf32, #tpu.memory_space<vmem>>, %arg5: memref<34x32xf32, #tpu.memory_space<vmem>>) attributes {dimension_semantics = [#tpu.dimension_semantics<arbitrary>], iteration_bounds = array<i64: 1>, scalar_prefetch = 0 : i64, scratch_operands = 0 : i64, tpu.core_type = #tpu.core_type<tc>, window_params = [{transform_indices = @transform_0, window_bounds = array<i64: 34, 256>}, {transform_indices = @transform_1, window_bounds = array<i64: 256, 32>}, {pipeline_mode = #tpu.pipeline_mode<synchronous>, transform_indices = @transform_2, window_bounds = array<i64: 1, 32>}, {pipeline_mode = #tpu.pipeline_mode<synchronous>, transform_indices = @transform_3, window_bounds = array<i64: 34, 32>}, {pipeline_mode = #tpu.pipeline_mode<synchronous>, transform_indices = @transform_4, window_bounds = array<i64: 34, 32>}]} {
    %c0_i32 = arith.constant 0 : i32
    %0 = arith.cmpi eq, %arg0, %c0_i32 : i32
    %1 = arith.extui %0 : i1 to i32
    %c0_i32_0 = arith.constant 0 : i32
    %2 = arith.cmpi ne, %1, %c0_i32_0 : i32
    scf.if %2 {
      %cst_10 = arith.constant 0.000000e+00 : f32
      %13 = vector.broadcast %cst_10 : f32 to vector<34x32xf32>
      %c0_11 = arith.constant 0 : index
      %c0_12 = arith.constant 0 : index
      %14 = vector.load %arg5[%c0_11, %c0_12] : memref<34x32xf32, #tpu.memory_space<vmem>>, vector<34x32xf32>
      tpu.vector_store %arg5[%c0_11, %c0_12], %13 {strides = array<i32>} : memref<34x32xf32, #tpu.memory_space<vmem>>, vector<34x32xf32>,
    } else {
    }
    %c0 = arith.constant 0 : index
    %c0_1 = arith.constant 0 : index
    %3 = vector.load %arg5[%c0, %c0_1] : memref<34x32xf32, #tpu.memory_space<vmem>>, vector<34x32xf32>
    %c0_2 = arith.constant 0 : index
    %c0_3 = arith.constant 0 : index
    %4 = vector.load %arg1[%c0_2, %c0_3] : memref<34x256xf32, #tpu.memory_space<vmem>>, vector<34x256xf32>
    %5 = arith.truncf %4 : vector<34x256xf32> to vector<34x256xbf16>
    %c0_4 = arith.constant 0 : index
    %c0_5 = arith.constant 0 : index
    %6 = vector.load %arg2[%c0_4, %c0_5] : memref<256x32xbf16, #tpu.memory_space<vmem>>, vector<256x32xbf16>
    %cst = arith.constant dense<0.000000e+00> : vector<34x32xf32>
    %7 = tpu.matmul %5, %6, %cst {dimension_numbers = #tpu.dot_dimension_numbers<[1], [0], [0], [1], [0, 0, 1, 1], [], []>} : vector<34x256xbf16>, vector<256x32xbf16>, vector<34x32xf32> -> vector<34x32xf32>
    %8 = arith.addf %3, %7 : vector<34x32xf32>
    %c0_6 = arith.constant 0 : index
    %c0_7 = arith.constant 0 : index
    %9 = vector.load %arg5[%c0_6, %c0_7] : memref<34x32xf32, #tpu.memory_space<vmem>>, vector<34x32xf32>
    tpu.vector_store %arg5[%c0_6, %c0_7], %8 {strides = array<i32>} : memref<34x32xf32, #tpu.memory_space<vmem>>, vector<34x32xf32>,
    %c0_i32_8 = arith.constant 0 : i32
    %10 = arith.cmpi eq, %arg0, %c0_i32_8 : i32
    %11 = arith.extui %10 : i1 to i32
    %c0_i32_9 = arith.constant 0 : i32
    %12 = arith.cmpi ne, %11, %c0_i32_9 : i32
    scf.if %12 {
      %c0_10 = arith.constant 0 : index
      %c0_11 = arith.constant 0 : index
      %13 = vector.load %arg5[%c0_10, %c0_11] : memref<34x32xf32, #tpu.memory_space<vmem>>, vector<34x32xf32>
      %c0_12 = arith.constant 0 : index
      %c0_13 = arith.constant 0 : index
      %14 = vector.load %arg3[%c0_12, %c0_13] : memref<1x32xf32, #tpu.memory_space<vmem>>, vector<1x32xf32>
      %15 = vector.broadcast %14 : vector<1x32xf32> to vector<34x32xf32>
      %16 = arith.addf %13, %15 : vector<34x32xf32>
      %c0_14 = arith.constant 0 : index
      %c0_15 = arith.constant 0 : index
      %17 = vector.load %arg4[%c0_14, %c0_15] : memref<34x32xf32, #tpu.memory_space<vmem>>, vector<34x32xf32>
      %18 = arith.addf %16, %17 : vector<34x32xf32>
      %c0_16 = arith.constant 0 : index
      %c0_17 = arith.constant 0 : index
      %19 = vector.load %arg5[%c0_16, %c0_17] : memref<34x32xf32, #tpu.memory_space<vmem>>, vector<34x32xf32>
      tpu.vector_store %arg5[%c0_16, %c0_17], %18 {strides = array<i32>} : memref<34x32xf32, #tpu.memory_space<vmem>>, vector<34x32xf32>,
    } else {
    }
    return
  }
  func.func @transform_0(%arg0: i32) -> (i32, i32) {
    %c0_i32 = arith.constant 0 : i32
    %c0_i32_0 = arith.constant 0 : i32
    return %c0_i32, %arg0 : i32, i32
  }
  func.func @transform_1(%arg0: i32) -> (i32, i32) {
    %c0_i32 = arith.constant 0 : i32
    %c0_i32_0 = arith.constant 0 : i32
    return %arg0, %c0_i32 : i32, i32
  }
  func.func @transform_2(%arg0: i32) -> (i32, i32) {
    %c0_i32 = arith.constant 0 : i32
    %c0_i32_0 = arith.constant 0 : i32
    %c0_i32_1 = arith.constant 0 : i32
    return %c0_i32, %c0_i32_0 : i32, i32
  }
  func.func @transform_3(%arg0: i32) -> (i32, i32) {
    %c0_i32 = arith.constant 0 : i32
    %c0_i32_0 = arith.constant 0 : i32
    %c0_i32_1 = arith.constant 0 : i32
    return %c0_i32, %c0_i32_0 : i32, i32
  }
  func.func @transform_4(%arg0: i32) -> (i32, i32) {
    %c0_i32 = arith.constant 0 : i32
    %c0_i32_0 = arith.constant 0 : i32
    %c0_i32_1 = arith.constant 0 : i32
    return %c0_i32, %c0_i32_0 : i32, i32
  }
}

module attributes {stable_mosaic.version = 11 : i64} {
  func.func @_encoder_layer_kernel(%arg0: i32, %arg1: memref<1x17x32xf32, #tpu.memory_space<vmem>>, %arg2: memref<32x96xbf16, #tpu.memory_space<vmem>>, %arg3: memref<1x96xf32, #tpu.memory_space<vmem>>, %arg4: memref<32x32xbf16, #tpu.memory_space<vmem>>, %arg5: memref<1x32xf32, #tpu.memory_space<vmem>>, %arg6: memref<1x32xf32, #tpu.memory_space<vmem>>, %arg7: memref<1x32xf32, #tpu.memory_space<vmem>>, %arg8: memref<32x64xbf16, #tpu.memory_space<vmem>>, %arg9: memref<1x64xf32, #tpu.memory_space<vmem>>, %arg10: memref<64x32xbf16, #tpu.memory_space<vmem>>, %arg11: memref<1x32xf32, #tpu.memory_space<vmem>>, %arg12: memref<1x32xf32, #tpu.memory_space<vmem>>, %arg13: memref<1x32xf32, #tpu.memory_space<vmem>>, %arg14: memref<1x17x32xf32, #tpu.memory_space<vmem>>) attributes {dimension_semantics = [#tpu.dimension_semantics<parallel>], iteration_bounds = array<i64: 2>, scalar_prefetch = 0 : i64, scratch_operands = 0 : i64, tpu.core_type = #tpu.core_type<tc>, window_params = [{transform_indices = @transform_0, window_bounds = array<i64: 1, 17, 32>}, {pipeline_mode = #tpu.pipeline_mode<synchronous>, transform_indices = @transform_1, window_bounds = array<i64: 32, 96>}, {pipeline_mode = #tpu.pipeline_mode<synchronous>, transform_indices = @transform_2, window_bounds = array<i64: 1, 96>}, {pipeline_mode = #tpu.pipeline_mode<synchronous>, transform_indices = @transform_3, window_bounds = array<i64: 32, 32>}, {pipeline_mode = #tpu.pipeline_mode<synchronous>, transform_indices = @transform_4, window_bounds = array<i64: 1, 32>}, {pipeline_mode = #tpu.pipeline_mode<synchronous>, transform_indices = @transform_5, window_bounds = array<i64: 1, 32>}, {pipeline_mode = #tpu.pipeline_mode<synchronous>, transform_indices = @transform_6, window_bounds = array<i64: 1, 32>}, {pipeline_mode = #tpu.pipeline_mode<synchronous>, transform_indices = @transform_7, window_bounds = array<i64: 32, 64>}, {pipeline_mode = #tpu.pipeline_mode<synchronous>, transform_indices = @transform_8, window_bounds = array<i64: 1, 64>}, {pipeline_mode = #tpu.pipeline_mode<synchronous>, transform_indices = @transform_9, window_bounds = array<i64: 64, 32>}, {pipeline_mode = #tpu.pipeline_mode<synchronous>, transform_indices = @transform_10, window_bounds = array<i64: 1, 32>}, {pipeline_mode = #tpu.pipeline_mode<synchronous>, transform_indices = @transform_11, window_bounds = array<i64: 1, 32>}, {pipeline_mode = #tpu.pipeline_mode<synchronous>, transform_indices = @transform_12, window_bounds = array<i64: 1, 32>}, {transform_indices = @transform_13, window_bounds = array<i64: 1, 17, 32>}]} {
    %c0 = arith.constant 0 : index
    %c0_0 = arith.constant 0 : index
    %c0_1 = arith.constant 0 : index
    %0 = vector.load %arg1[%c0, %c0_0, %c0_1] : memref<1x17x32xf32, #tpu.memory_space<vmem>>, vector<1x17x32xf32>
    %1 = vector.shape_cast %0 : vector<1x17x32xf32> to vector<17x32xf32>
    %c0_2 = arith.constant 0 : index
    %c0_3 = arith.constant 0 : index
    %2 = vector.load %arg4[%c0_2, %c0_3] : memref<32x32xbf16, #tpu.memory_space<vmem>>, vector<32x32xbf16>
    %3 = arith.truncf %1 : vector<17x32xf32> to vector<17x32xbf16>
    %c0_4 = arith.constant 0 : index
    %c0_5 = arith.constant 0 : index
    %4 = vector.load %arg2[%c0_4, %c0_5] : memref<32x96xbf16, #tpu.memory_space<vmem>>, vector<32x96xbf16>
    %cst = arith.constant dense<0.000000e+00> : vector<17x96xf32>
    %5 = tpu.matmul %3, %4, %cst {dimension_numbers = #tpu.dot_dimension_numbers<[1], [0], [0], [1], [0, 0, 1, 1], [], []>} : vector<17x32xbf16>, vector<32x96xbf16>, vector<17x96xf32> -> vector<17x96xf32>
    %c0_6 = arith.constant 0 : index
    %c0_7 = arith.constant 0 : index
    %6 = vector.load %arg3[%c0_6, %c0_7] : memref<1x96xf32, #tpu.memory_space<vmem>>, vector<1x96xf32>
    %7 = vector.broadcast %6 : vector<1x96xf32> to vector<17x96xf32>
    %8 = arith.addf %5, %7 : vector<17x96xf32>
    %9 = vector.extract_strided_slice %8 {offsets = [0, 0], sizes = [17, 32], strides = [1, 1]} : vector<17x96xf32> to vector<17x32xf32>
    %10 = vector.extract_strided_slice %8 {offsets = [0, 32], sizes = [17, 32], strides = [1, 1]} : vector<17x96xf32> to vector<17x32xf32>
    %11 = vector.extract_strided_slice %8 {offsets = [0, 64], sizes = [17, 32], strides = [1, 1]} : vector<17x96xf32> to vector<17x32xf32>
    %cst_8 = arith.constant 0.000000e+00 : f32
    %12 = vector.broadcast %cst_8 : f32 to vector<17x32xf32>
    %13 = vector.extract_strided_slice %9 {offsets = [0, 0], sizes = [17, 8], strides = [1, 1]} : vector<17x32xf32> to vector<17x8xf32>
    %14 = arith.truncf %13 : vector<17x8xf32> to vector<17x8xbf16>
    %15 = vector.extract_strided_slice %10 {offsets = [0, 0], sizes = [17, 8], strides = [1, 1]} : vector<17x32xf32> to vector<17x8xf32>
    %16 = arith.truncf %15 : vector<17x8xf32> to vector<17x8xbf16>
    %17 = vector.extract_strided_slice %11 {offsets = [0, 0], sizes = [17, 8], strides = [1, 1]} : vector<17x32xf32> to vector<17x8xf32>
    %18 = arith.truncf %17 : vector<17x8xf32> to vector<17x8xbf16>
    %cst_9 = arith.constant dense<0.000000e+00> : vector<17x17xf32>
    %19 = tpu.matmul %14, %16, %cst_9 {dimension_numbers = #tpu.dot_dimension_numbers<[1], [1], [0], [0], [0, 0, 1, 0], [], []>} : vector<17x8xbf16>, vector<17x8xbf16>, vector<17x17xf32> -> vector<17x17xf32>
    %cst_10 = arith.constant 0.353553385 : f32
    %20 = vector.broadcast %cst_10 : f32 to vector<17x17xf32>
    %21 = arith.mulf %19, %20 : vector<17x17xf32>
    %cst_11 = arith.constant dense<0xFF800000> : vector<17xf32>
    %22 = vector.multi_reduction <maximumf>, %21, %cst_11 [1] : vector<17x17xf32> to vector<17xf32>
    %23 = vector.shape_cast %22 : vector<17xf32> to vector<17x1xf32>
    %24 = vector.broadcast %23 : vector<17x1xf32> to vector<17x17xf32>
    %25 = arith.subf %21, %24 : vector<17x17xf32>
    %26 = math.exp %25 : vector<17x17xf32>
    %cst_12 = arith.constant dense<0.000000e+00> : vector<17xf32>
    %27 = vector.multi_reduction <add>, %26, %cst_12 [1] : vector<17x17xf32> to vector<17xf32>
    %28 = vector.shape_cast %27 : vector<17xf32> to vector<17x1xf32>
    %29 = tpu.reciprocal %28 {approx = true} : vector<17x1xf32> -> vector<17x1xf32>
    %30 = vector.broadcast %29 : vector<17x1xf32> to vector<17x17xf32>
    %31 = arith.mulf %26, %30 : vector<17x17xf32>
    %32 = arith.truncf %31 : vector<17x17xf32> to vector<17x17xbf16>
    %cst_13 = arith.constant dense<0.000000e+00> : vector<17x8xf32>
    %33 = tpu.matmul %32, %18, %cst_13 {dimension_numbers = #tpu.dot_dimension_numbers<[1], [0], [0], [1], [0, 0, 1, 1], [], []>} : vector<17x17xbf16>, vector<17x8xbf16>, vector<17x8xf32> -> vector<17x8xf32>
    %34 = arith.truncf %33 : vector<17x8xf32> to vector<17x8xbf16>
    %35 = vector.extract_strided_slice %2 {offsets = [0, 0], sizes = [8, 32], strides = [1, 1]} : vector<32x32xbf16> to vector<8x32xbf16>
    %cst_14 = arith.constant dense<0.000000e+00> : vector<17x32xf32>
    %36 = tpu.matmul %34, %35, %cst_14 {dimension_numbers = #tpu.dot_dimension_numbers<[1], [0], [0], [1], [0, 0, 1, 1], [], []>} : vector<17x8xbf16>, vector<8x32xbf16>, vector<17x32xf32> -> vector<17x32xf32>
    %37 = arith.addf %12, %36 : vector<17x32xf32>
    %38 = vector.extract_strided_slice %9 {offsets = [0, 8], sizes = [17, 8], strides = [1, 1]} : vector<17x32xf32> to vector<17x8xf32>
    %39 = arith.truncf %38 : vector<17x8xf32> to vector<17x8xbf16>
    %40 = vector.extract_strided_slice %10 {offsets = [0, 8], sizes = [17, 8], strides = [1, 1]} : vector<17x32xf32> to vector<17x8xf32>
    %41 = arith.truncf %40 : vector<17x8xf32> to vector<17x8xbf16>
    %42 = vector.extract_strided_slice %11 {offsets = [0, 8], sizes = [17, 8], strides = [1, 1]} : vector<17x32xf32> to vector<17x8xf32>
    %43 = arith.truncf %42 : vector<17x8xf32> to vector<17x8xbf16>
    %cst_15 = arith.constant dense<0.000000e+00> : vector<17x17xf32>
    %44 = tpu.matmul %39, %41, %cst_15 {dimension_numbers = #tpu.dot_dimension_numbers<[1], [1], [0], [0], [0, 0, 1, 0], [], []>} : vector<17x8xbf16>, vector<17x8xbf16>, vector<17x17xf32> -> vector<17x17xf32>
    %cst_16 = arith.constant 0.353553385 : f32
    %45 = vector.broadcast %cst_16 : f32 to vector<17x17xf32>
    %46 = arith.mulf %44, %45 : vector<17x17xf32>
    %cst_17 = arith.constant dense<0xFF800000> : vector<17xf32>
    %47 = vector.multi_reduction <maximumf>, %46, %cst_17 [1] : vector<17x17xf32> to vector<17xf32>
    %48 = vector.shape_cast %47 : vector<17xf32> to vector<17x1xf32>
    %49 = vector.broadcast %48 : vector<17x1xf32> to vector<17x17xf32>
    %50 = arith.subf %46, %49 : vector<17x17xf32>
    %51 = math.exp %50 : vector<17x17xf32>
    %cst_18 = arith.constant dense<0.000000e+00> : vector<17xf32>
    %52 = vector.multi_reduction <add>, %51, %cst_18 [1] : vector<17x17xf32> to vector<17xf32>
    %53 = vector.shape_cast %52 : vector<17xf32> to vector<17x1xf32>
    %54 = tpu.reciprocal %53 {approx = true} : vector<17x1xf32> -> vector<17x1xf32>
    %55 = vector.broadcast %54 : vector<17x1xf32> to vector<17x17xf32>
    %56 = arith.mulf %51, %55 : vector<17x17xf32>
    %57 = arith.truncf %56 : vector<17x17xf32> to vector<17x17xbf16>
    %cst_19 = arith.constant dense<0.000000e+00> : vector<17x8xf32>
    %58 = tpu.matmul %57, %43, %cst_19 {dimension_numbers = #tpu.dot_dimension_numbers<[1], [0], [0], [1], [0, 0, 1, 1], [], []>} : vector<17x17xbf16>, vector<17x8xbf16>, vector<17x8xf32> -> vector<17x8xf32>
    %59 = arith.truncf %58 : vector<17x8xf32> to vector<17x8xbf16>
    %60 = vector.extract_strided_slice %2 {offsets = [8, 0], sizes = [8, 32], strides = [1, 1]} : vector<32x32xbf16> to vector<8x32xbf16>
    %cst_20 = arith.constant dense<0.000000e+00> : vector<17x32xf32>
    %61 = tpu.matmul %59, %60, %cst_20 {dimension_numbers = #tpu.dot_dimension_numbers<[1], [0], [0], [1], [0, 0, 1, 1], [], []>} : vector<17x8xbf16>, vector<8x32xbf16>, vector<17x32xf32> -> vector<17x32xf32>
    %62 = arith.addf %37, %61 : vector<17x32xf32>
    %63 = vector.extract_strided_slice %9 {offsets = [0, 16], sizes = [17, 8], strides = [1, 1]} : vector<17x32xf32> to vector<17x8xf32>
    %64 = arith.truncf %63 : vector<17x8xf32> to vector<17x8xbf16>
    %65 = vector.extract_strided_slice %10 {offsets = [0, 16], sizes = [17, 8], strides = [1, 1]} : vector<17x32xf32> to vector<17x8xf32>
    %66 = arith.truncf %65 : vector<17x8xf32> to vector<17x8xbf16>
    %67 = vector.extract_strided_slice %11 {offsets = [0, 16], sizes = [17, 8], strides = [1, 1]} : vector<17x32xf32> to vector<17x8xf32>
    %68 = arith.truncf %67 : vector<17x8xf32> to vector<17x8xbf16>
    %cst_21 = arith.constant dense<0.000000e+00> : vector<17x17xf32>
    %69 = tpu.matmul %64, %66, %cst_21 {dimension_numbers = #tpu.dot_dimension_numbers<[1], [1], [0], [0], [0, 0, 1, 0], [], []>} : vector<17x8xbf16>, vector<17x8xbf16>, vector<17x17xf32> -> vector<17x17xf32>
    %cst_22 = arith.constant 0.353553385 : f32
    %70 = vector.broadcast %cst_22 : f32 to vector<17x17xf32>
    %71 = arith.mulf %69, %70 : vector<17x17xf32>
    %cst_23 = arith.constant dense<0xFF800000> : vector<17xf32>
    %72 = vector.multi_reduction <maximumf>, %71, %cst_23 [1] : vector<17x17xf32> to vector<17xf32>
    %73 = vector.shape_cast %72 : vector<17xf32> to vector<17x1xf32>
    %74 = vector.broadcast %73 : vector<17x1xf32> to vector<17x17xf32>
    %75 = arith.subf %71, %74 : vector<17x17xf32>
    %76 = math.exp %75 : vector<17x17xf32>
    %cst_24 = arith.constant dense<0.000000e+00> : vector<17xf32>
    %77 = vector.multi_reduction <add>, %76, %cst_24 [1] : vector<17x17xf32> to vector<17xf32>
    %78 = vector.shape_cast %77 : vector<17xf32> to vector<17x1xf32>
    %79 = tpu.reciprocal %78 {approx = true} : vector<17x1xf32> -> vector<17x1xf32>
    %80 = vector.broadcast %79 : vector<17x1xf32> to vector<17x17xf32>
    %81 = arith.mulf %76, %80 : vector<17x17xf32>
    %82 = arith.truncf %81 : vector<17x17xf32> to vector<17x17xbf16>
    %cst_25 = arith.constant dense<0.000000e+00> : vector<17x8xf32>
    %83 = tpu.matmul %82, %68, %cst_25 {dimension_numbers = #tpu.dot_dimension_numbers<[1], [0], [0], [1], [0, 0, 1, 1], [], []>} : vector<17x17xbf16>, vector<17x8xbf16>, vector<17x8xf32> -> vector<17x8xf32>
    %84 = arith.truncf %83 : vector<17x8xf32> to vector<17x8xbf16>
    %85 = vector.extract_strided_slice %2 {offsets = [16, 0], sizes = [8, 32], strides = [1, 1]} : vector<32x32xbf16> to vector<8x32xbf16>
    %cst_26 = arith.constant dense<0.000000e+00> : vector<17x32xf32>
    %86 = tpu.matmul %84, %85, %cst_26 {dimension_numbers = #tpu.dot_dimension_numbers<[1], [0], [0], [1], [0, 0, 1, 1], [], []>} : vector<17x8xbf16>, vector<8x32xbf16>, vector<17x32xf32> -> vector<17x32xf32>
    %87 = arith.addf %62, %86 : vector<17x32xf32>
    %88 = vector.extract_strided_slice %9 {offsets = [0, 24], sizes = [17, 8], strides = [1, 1]} : vector<17x32xf32> to vector<17x8xf32>
    %89 = arith.truncf %88 : vector<17x8xf32> to vector<17x8xbf16>
    %90 = vector.extract_strided_slice %10 {offsets = [0, 24], sizes = [17, 8], strides = [1, 1]} : vector<17x32xf32> to vector<17x8xf32>
    %91 = arith.truncf %90 : vector<17x8xf32> to vector<17x8xbf16>
    %92 = vector.extract_strided_slice %11 {offsets = [0, 24], sizes = [17, 8], strides = [1, 1]} : vector<17x32xf32> to vector<17x8xf32>
    %93 = arith.truncf %92 : vector<17x8xf32> to vector<17x8xbf16>
    %cst_27 = arith.constant dense<0.000000e+00> : vector<17x17xf32>
    %94 = tpu.matmul %89, %91, %cst_27 {dimension_numbers = #tpu.dot_dimension_numbers<[1], [1], [0], [0], [0, 0, 1, 0], [], []>} : vector<17x8xbf16>, vector<17x8xbf16>, vector<17x17xf32> -> vector<17x17xf32>
    %cst_28 = arith.constant 0.353553385 : f32
    %95 = vector.broadcast %cst_28 : f32 to vector<17x17xf32>
    %96 = arith.mulf %94, %95 : vector<17x17xf32>
    %cst_29 = arith.constant dense<0xFF800000> : vector<17xf32>
    %97 = vector.multi_reduction <maximumf>, %96, %cst_29 [1] : vector<17x17xf32> to vector<17xf32>
    %98 = vector.shape_cast %97 : vector<17xf32> to vector<17x1xf32>
    %99 = vector.broadcast %98 : vector<17x1xf32> to vector<17x17xf32>
    %100 = arith.subf %96, %99 : vector<17x17xf32>
    %101 = math.exp %100 : vector<17x17xf32>
    %cst_30 = arith.constant dense<0.000000e+00> : vector<17xf32>
    %102 = vector.multi_reduction <add>, %101, %cst_30 [1] : vector<17x17xf32> to vector<17xf32>
    %103 = vector.shape_cast %102 : vector<17xf32> to vector<17x1xf32>
    %104 = tpu.reciprocal %103 {approx = true} : vector<17x1xf32> -> vector<17x1xf32>
    %105 = vector.broadcast %104 : vector<17x1xf32> to vector<17x17xf32>
    %106 = arith.mulf %101, %105 : vector<17x17xf32>
    %107 = arith.truncf %106 : vector<17x17xf32> to vector<17x17xbf16>
    %cst_31 = arith.constant dense<0.000000e+00> : vector<17x8xf32>
    %108 = tpu.matmul %107, %93, %cst_31 {dimension_numbers = #tpu.dot_dimension_numbers<[1], [0], [0], [1], [0, 0, 1, 1], [], []>} : vector<17x17xbf16>, vector<17x8xbf16>, vector<17x8xf32> -> vector<17x8xf32>
    %109 = arith.truncf %108 : vector<17x8xf32> to vector<17x8xbf16>
    %110 = vector.extract_strided_slice %2 {offsets = [24, 0], sizes = [8, 32], strides = [1, 1]} : vector<32x32xbf16> to vector<8x32xbf16>
    %cst_32 = arith.constant dense<0.000000e+00> : vector<17x32xf32>
    %111 = tpu.matmul %109, %110, %cst_32 {dimension_numbers = #tpu.dot_dimension_numbers<[1], [0], [0], [1], [0, 0, 1, 1], [], []>} : vector<17x8xbf16>, vector<8x32xbf16>, vector<17x32xf32> -> vector<17x32xf32>
    %112 = arith.addf %87, %111 : vector<17x32xf32>
    %c0_33 = arith.constant 0 : index
    %c0_34 = arith.constant 0 : index
    %113 = vector.load %arg5[%c0_33, %c0_34] : memref<1x32xf32, #tpu.memory_space<vmem>>, vector<1x32xf32>
    %114 = vector.broadcast %113 : vector<1x32xf32> to vector<17x32xf32>
    %115 = arith.addf %112, %114 : vector<17x32xf32>
    %116 = arith.addf %1, %115 : vector<17x32xf32>
    %c0_35 = arith.constant 0 : index
    %c0_36 = arith.constant 0 : index
    %117 = vector.load %arg6[%c0_35, %c0_36] : memref<1x32xf32, #tpu.memory_space<vmem>>, vector<1x32xf32>
    %c0_37 = arith.constant 0 : index
    %c0_38 = arith.constant 0 : index
    %118 = vector.load %arg7[%c0_37, %c0_38] : memref<1x32xf32, #tpu.memory_space<vmem>>, vector<1x32xf32>
    %cst_39 = arith.constant dense<0.000000e+00> : vector<17xf32>
    %119 = vector.multi_reduction <add>, %116, %cst_39 [1] : vector<17x32xf32> to vector<17xf32>
    %120 = vector.shape_cast %119 : vector<17xf32> to vector<17x1xf32>
    %cst_40 = arith.constant 3.200000e+01 : f32
    %121 = vector.broadcast %cst_40 : f32 to vector<17x1xf32>
    %122 = arith.divf %120, %121 : vector<17x1xf32>
    %123 = vector.broadcast %122 : vector<17x1xf32> to vector<17x32xf32>
    %124 = arith.subf %116, %123 : vector<17x32xf32>
    %125 = arith.mulf %124, %124 : vector<17x32xf32>
    %cst_41 = arith.constant dense<0.000000e+00> : vector<17xf32>
    %126 = vector.multi_reduction <add>, %125, %cst_41 [1] : vector<17x32xf32> to vector<17xf32>
    %127 = vector.shape_cast %126 : vector<17xf32> to vector<17x1xf32>
    %cst_42 = arith.constant 3.200000e+01 : f32
    %128 = vector.broadcast %cst_42 : f32 to vector<17x1xf32>
    %129 = arith.divf %127, %128 : vector<17x1xf32>
    %cst_43 = arith.constant 9.99999974E-6 : f32
    %130 = vector.broadcast %cst_43 : f32 to vector<17x1xf32>
    %131 = arith.addf %129, %130 : vector<17x1xf32>
    %132 = math.rsqrt %131 : vector<17x1xf32>
    %133 = vector.broadcast %132 : vector<17x1xf32> to vector<17x32xf32>
    %134 = arith.mulf %124, %133 : vector<17x32xf32>
    %135 = vector.broadcast %117 : vector<1x32xf32> to vector<17x32xf32>
    %136 = arith.mulf %134, %135 : vector<17x32xf32>
    %137 = vector.broadcast %118 : vector<1x32xf32> to vector<17x32xf32>
    %138 = arith.addf %136, %137 : vector<17x32xf32>
    %139 = arith.truncf %138 : vector<17x32xf32> to vector<17x32xbf16>
    %c0_44 = arith.constant 0 : index
    %c0_45 = arith.constant 0 : index
    %140 = vector.load %arg8[%c0_44, %c0_45] : memref<32x64xbf16, #tpu.memory_space<vmem>>, vector<32x64xbf16>
    %cst_46 = arith.constant dense<0.000000e+00> : vector<17x64xf32>
    %141 = tpu.matmul %139, %140, %cst_46 {dimension_numbers = #tpu.dot_dimension_numbers<[1], [0], [0], [1], [0, 0, 1, 1], [], []>} : vector<17x32xbf16>, vector<32x64xbf16>, vector<17x64xf32> -> vector<17x64xf32>
    %c0_47 = arith.constant 0 : index
    %c0_48 = arith.constant 0 : index
    %142 = vector.load %arg9[%c0_47, %c0_48] : memref<1x64xf32, #tpu.memory_space<vmem>>, vector<1x64xf32>
    %143 = vector.broadcast %142 : vector<1x64xf32> to vector<17x64xf32>
    %144 = arith.addf %141, %143 : vector<17x64xf32>
    %cst_49 = arith.constant 5.000000e-01 : f32
    %145 = vector.broadcast %cst_49 : f32 to vector<17x64xf32>
    %146 = arith.mulf %145, %144 : vector<17x64xf32>
    %cst_50 = arith.constant 0.707106769 : f32
    %147 = vector.broadcast %cst_50 : f32 to vector<17x64xf32>
    %148 = arith.mulf %144, %147 : vector<17x64xf32>
    %149 = math.absf %148 : vector<17x64xf32>
    %cst_51 = arith.constant 0.327591091 : f32
    %150 = vector.broadcast %cst_51 : f32 to vector<17x64xf32>
    %151 = arith.mulf %150, %149 : vector<17x64xf32>
    %cst_52 = arith.constant 1.000000e+00 : f32
    %152 = vector.broadcast %cst_52 : f32 to vector<17x64xf32>
    %153 = arith.addf %152, %151 : vector<17x64xf32>
    %cst_53 = arith.constant 1.000000e+00 : f32
    %154 = vector.broadcast %cst_53 : f32 to vector<17x64xf32>
    %155 = arith.divf %154, %153 : vector<17x64xf32>
    %cst_54 = arith.constant 1.06140542 : f32
    %156 = vector.broadcast %cst_54 : f32 to vector<17x64xf32>
    %157 = arith.mulf %156, %155 : vector<17x64xf32>
    %cst_55 = arith.constant -1.45315206 : f32
    %158 = vector.broadcast %cst_55 : f32 to vector<17x64xf32>
    %159 = arith.addf %157, %158 : vector<17x64xf32>
    %160 = arith.mulf %159, %155 : vector<17x64xf32>
    %cst_56 = arith.constant 1.42141378 : f32
    %161 = vector.broadcast %cst_56 : f32 to vector<17x64xf32>
    %162 = arith.addf %160, %161 : vector<17x64xf32>
    %163 = arith.mulf %162, %155 : vector<17x64xf32>
    %cst_57 = arith.constant -0.284496725 : f32
    %164 = vector.broadcast %cst_57 : f32 to vector<17x64xf32>
    %165 = arith.addf %163, %164 : vector<17x64xf32>
    %166 = arith.mulf %165, %155 : vector<17x64xf32>
    %cst_58 = arith.constant 0.254829586 : f32
    %167 = vector.broadcast %cst_58 : f32 to vector<17x64xf32>
    %168 = arith.addf %166, %167 : vector<17x64xf32>
    %169 = arith.mulf %168, %155 : vector<17x64xf32>
    %cst_59 = arith.constant 0.000000e+00 : f32
    %170 = vector.broadcast %cst_59 : f32 to vector<17x64xf32>
    %171 = arith.subf %170, %149 : vector<17x64xf32>
    %172 = arith.mulf %171, %149 : vector<17x64xf32>
    %173 = math.exp %172 : vector<17x64xf32>
    %174 = arith.mulf %169, %173 : vector<17x64xf32>
    %cst_60 = arith.constant 1.000000e+00 : f32
    %175 = vector.broadcast %cst_60 : f32 to vector<17x64xf32>
    %176 = arith.subf %175, %174 : vector<17x64xf32>
    %cst_61 = arith.constant 0.000000e+00 : f32
    %177 = vector.broadcast %cst_61 : f32 to vector<17x64xf32>
    %178 = arith.cmpf oge, %148, %177 : vector<17x64xf32>
    %cst_62 = arith.constant 0.000000e+00 : f32
    %179 = vector.broadcast %cst_62 : f32 to vector<17x64xf32>
    %180 = arith.subf %179, %176 : vector<17x64xf32>
    %181 = arith.select %178, %176, %180 : vector<17x64xi1>, vector<17x64xf32>
    %cst_63 = arith.constant 1.000000e+00 : f32
    %182 = vector.broadcast %cst_63 : f32 to vector<17x64xf32>
    %183 = arith.addf %182, %181 : vector<17x64xf32>
    %184 = arith.mulf %146, %183 : vector<17x64xf32>
    %185 = arith.truncf %184 : vector<17x64xf32> to vector<17x64xbf16>
    %c0_64 = arith.constant 0 : index
    %c0_65 = arith.constant 0 : index
    %186 = vector.load %arg10[%c0_64, %c0_65] : memref<64x32xbf16, #tpu.memory_space<vmem>>, vector<64x32xbf16>
    %cst_66 = arith.constant dense<0.000000e+00> : vector<17x32xf32>
    %187 = tpu.matmul %185, %186, %cst_66 {dimension_numbers = #tpu.dot_dimension_numbers<[1], [0], [0], [1], [0, 0, 1, 1], [], []>} : vector<17x64xbf16>, vector<64x32xbf16>, vector<17x32xf32> -> vector<17x32xf32>
    %c0_67 = arith.constant 0 : index
    %c0_68 = arith.constant 0 : index
    %188 = vector.load %arg11[%c0_67, %c0_68] : memref<1x32xf32, #tpu.memory_space<vmem>>, vector<1x32xf32>
    %189 = vector.broadcast %188 : vector<1x32xf32> to vector<17x32xf32>
    %190 = arith.addf %187, %189 : vector<17x32xf32>
    %191 = arith.addf %138, %190 : vector<17x32xf32>
    %c0_69 = arith.constant 0 : index
    %c0_70 = arith.constant 0 : index
    %192 = vector.load %arg12[%c0_69, %c0_70] : memref<1x32xf32, #tpu.memory_space<vmem>>, vector<1x32xf32>
    %c0_71 = arith.constant 0 : index
    %c0_72 = arith.constant 0 : index
    %193 = vector.load %arg13[%c0_71, %c0_72] : memref<1x32xf32, #tpu.memory_space<vmem>>, vector<1x32xf32>
    %cst_73 = arith.constant dense<0.000000e+00> : vector<17xf32>
    %194 = vector.multi_reduction <add>, %191, %cst_73 [1] : vector<17x32xf32> to vector<17xf32>
    %195 = vector.shape_cast %194 : vector<17xf32> to vector<17x1xf32>
    %cst_74 = arith.constant 3.200000e+01 : f32
    %196 = vector.broadcast %cst_74 : f32 to vector<17x1xf32>
    %197 = arith.divf %195, %196 : vector<17x1xf32>
    %198 = vector.broadcast %197 : vector<17x1xf32> to vector<17x32xf32>
    %199 = arith.subf %191, %198 : vector<17x32xf32>
    %200 = arith.mulf %199, %199 : vector<17x32xf32>
    %cst_75 = arith.constant dense<0.000000e+00> : vector<17xf32>
    %201 = vector.multi_reduction <add>, %200, %cst_75 [1] : vector<17x32xf32> to vector<17xf32>
    %202 = vector.shape_cast %201 : vector<17xf32> to vector<17x1xf32>
    %cst_76 = arith.constant 3.200000e+01 : f32
    %203 = vector.broadcast %cst_76 : f32 to vector<17x1xf32>
    %204 = arith.divf %202, %203 : vector<17x1xf32>
    %cst_77 = arith.constant 9.99999974E-6 : f32
    %205 = vector.broadcast %cst_77 : f32 to vector<17x1xf32>
    %206 = arith.addf %204, %205 : vector<17x1xf32>
    %207 = math.rsqrt %206 : vector<17x1xf32>
    %208 = vector.broadcast %207 : vector<17x1xf32> to vector<17x32xf32>
    %209 = arith.mulf %199, %208 : vector<17x32xf32>
    %210 = vector.broadcast %192 : vector<1x32xf32> to vector<17x32xf32>
    %211 = arith.mulf %209, %210 : vector<17x32xf32>
    %212 = vector.broadcast %193 : vector<1x32xf32> to vector<17x32xf32>
    %213 = arith.addf %211, %212 : vector<17x32xf32>
    %c0_78 = arith.constant 0 : index
    %c0_79 = arith.constant 0 : index
    %c0_80 = arith.constant 0 : index
    %214 = vector.load %arg14[%c0_78, %c0_79, %c0_80] : memref<1x17x32xf32, #tpu.memory_space<vmem>>, vector<1x17x32xf32>
    %215 = vector.shape_cast %214 : vector<1x17x32xf32> to vector<17x32xf32>
    %216 = vector.shape_cast %213 : vector<17x32xf32> to vector<1x17x32xf32>
    tpu.vector_store %arg14[%c0_78, %c0_79, %c0_80], %216 {strides = array<i32>} : memref<1x17x32xf32, #tpu.memory_space<vmem>>, vector<1x17x32xf32>,
    return
  }
  func.func @transform_0(%arg0: i32) -> (i32, i32, i32) {
    %c0_i32 = arith.constant 0 : i32
    %c0_i32_0 = arith.constant 0 : i32
    %c0_i32_1 = arith.constant 0 : i32
    return %arg0, %c0_i32, %c0_i32_0 : i32, i32, i32
  }
  func.func @transform_1(%arg0: i32) -> (i32, i32) {
    %c0_i32 = arith.constant 0 : i32
    %c0_i32_0 = arith.constant 0 : i32
    %c0_i32_1 = arith.constant 0 : i32
    return %c0_i32, %c0_i32_0 : i32, i32
  }
  func.func @transform_2(%arg0: i32) -> (i32, i32) {
    %c0_i32 = arith.constant 0 : i32
    %c0_i32_0 = arith.constant 0 : i32
    %c0_i32_1 = arith.constant 0 : i32
    return %c0_i32, %c0_i32_0 : i32, i32
  }
  func.func @transform_3(%arg0: i32) -> (i32, i32) {
    %c0_i32 = arith.constant 0 : i32
    %c0_i32_0 = arith.constant 0 : i32
    %c0_i32_1 = arith.constant 0 : i32
    return %c0_i32, %c0_i32_0 : i32, i32
  }
  func.func @transform_4(%arg0: i32) -> (i32, i32) {
    %c0_i32 = arith.constant 0 : i32
    %c0_i32_0 = arith.constant 0 : i32
    %c0_i32_1 = arith.constant 0 : i32
    return %c0_i32, %c0_i32_0 : i32, i32
  }
  func.func @transform_5(%arg0: i32) -> (i32, i32) {
    %c0_i32 = arith.constant 0 : i32
    %c0_i32_0 = arith.constant 0 : i32
    %c0_i32_1 = arith.constant 0 : i32
    return %c0_i32, %c0_i32_0 : i32, i32
  }
  func.func @transform_6(%arg0: i32) -> (i32, i32) {
    %c0_i32 = arith.constant 0 : i32
    %c0_i32_0 = arith.constant 0 : i32
    %c0_i32_1 = arith.constant 0 : i32
    return %c0_i32, %c0_i32_0 : i32, i32
  }
  func.func @transform_7(%arg0: i32) -> (i32, i32) {
    %c0_i32 = arith.constant 0 : i32
    %c0_i32_0 = arith.constant 0 : i32
    %c0_i32_1 = arith.constant 0 : i32
    return %c0_i32, %c0_i32_0 : i32, i32
  }
  func.func @transform_8(%arg0: i32) -> (i32, i32) {
    %c0_i32 = arith.constant 0 : i32
    %c0_i32_0 = arith.constant 0 : i32
    %c0_i32_1 = arith.constant 0 : i32
    return %c0_i32, %c0_i32_0 : i32, i32
  }
  func.func @transform_9(%arg0: i32) -> (i32, i32) {
    %c0_i32 = arith.constant 0 : i32
    %c0_i32_0 = arith.constant 0 : i32
    %c0_i32_1 = arith.constant 0 : i32
    return %c0_i32, %c0_i32_0 : i32, i32
  }
  func.func @transform_10(%arg0: i32) -> (i32, i32) {
    %c0_i32 = arith.constant 0 : i32
    %c0_i32_0 = arith.constant 0 : i32
    %c0_i32_1 = arith.constant 0 : i32
    return %c0_i32, %c0_i32_0 : i32, i32
  }
  func.func @transform_11(%arg0: i32) -> (i32, i32) {
    %c0_i32 = arith.constant 0 : i32
    %c0_i32_0 = arith.constant 0 : i32
    %c0_i32_1 = arith.constant 0 : i32
    return %c0_i32, %c0_i32_0 : i32, i32
  }
  func.func @transform_12(%arg0: i32) -> (i32, i32) {
    %c0_i32 = arith.constant 0 : i32
    %c0_i32_0 = arith.constant 0 : i32
    %c0_i32_1 = arith.constant 0 : i32
    return %c0_i32, %c0_i32_0 : i32, i32
  }
  func.func @transform_13(%arg0: i32) -> (i32, i32, i32) {
    %c0_i32 = arith.constant 0 : i32
    %c0_i32_0 = arith.constant 0 : i32
    %c0_i32_1 = arith.constant 0 : i32
    return %arg0, %c0_i32, %c0_i32_0 : i32, i32, i32
  }
}

module attributes {stable_mosaic.version = 11 : i64} {
  func.func @_final_kernel(%arg0: i32, %arg1: memref<2x17x32xf32, #tpu.memory_space<vmem>>, %arg2: memref<1x32xf32, #tpu.memory_space<vmem>>, %arg3: memref<1x32xf32, #tpu.memory_space<vmem>>, %arg4: memref<1x32xf32, #tpu.memory_space<vmem>>, %arg5: memref<1x1xf32, #tpu.memory_space<vmem>>, %arg6: memref<2x17x256xf32, #tpu.memory_space<vmem>>, %arg7: memref<2x17x256xf32, #tpu.memory_space<vmem>>) attributes {dimension_semantics = [#tpu.dimension_semantics<parallel>], iteration_bounds = array<i64: 1>, scalar_prefetch = 0 : i64, scratch_operands = 0 : i64, tpu.core_type = #tpu.core_type<tc>, window_params = [{pipeline_mode = #tpu.pipeline_mode<synchronous>, transform_indices = @transform_0, window_bounds = array<i64: 2, 17, 32>}, {pipeline_mode = #tpu.pipeline_mode<synchronous>, transform_indices = @transform_1, window_bounds = array<i64: 1, 32>}, {pipeline_mode = #tpu.pipeline_mode<synchronous>, transform_indices = @transform_2, window_bounds = array<i64: 1, 32>}, {pipeline_mode = #tpu.pipeline_mode<synchronous>, transform_indices = @transform_3, window_bounds = array<i64: 1, 32>}, {pipeline_mode = #tpu.pipeline_mode<synchronous>, transform_indices = @transform_4, window_bounds = array<i64: 1, 1>}, {transform_indices = @transform_5, window_bounds = array<i64: 2, 17, 256>}, {transform_indices = @transform_6, window_bounds = array<i64: 2, 17, 256>}]} {
    %c0 = arith.constant 0 : index
    %c0_0 = arith.constant 0 : index
    %c0_1 = arith.constant 0 : index
    %0 = vector.load %arg1[%c0, %c0_0, %c0_1] : memref<2x17x32xf32, #tpu.memory_space<vmem>>, vector<2x17x32xf32>
    %c0_2 = arith.constant 0 : index
    %c0_3 = arith.constant 0 : index
    %1 = vector.load %arg2[%c0_2, %c0_3] : memref<1x32xf32, #tpu.memory_space<vmem>>, vector<1x32xf32>
    %c0_4 = arith.constant 0 : index
    %c0_5 = arith.constant 0 : index
    %2 = vector.load %arg3[%c0_4, %c0_5] : memref<1x32xf32, #tpu.memory_space<vmem>>, vector<1x32xf32>
    %cst = arith.constant dense<0.000000e+00> : vector<2x17xf32>
    %3 = vector.multi_reduction <add>, %0, %cst [2] : vector<2x17x32xf32> to vector<2x17xf32>
    %4 = vector.shape_cast %3 : vector<2x17xf32> to vector<2x17x1xf32>
    %cst_6 = arith.constant 3.200000e+01 : f32
    %5 = vector.broadcast %cst_6 : f32 to vector<2x17x1xf32>
    %6 = arith.divf %4, %5 : vector<2x17x1xf32>
    %7 = vector.broadcast %6 : vector<2x17x1xf32> to vector<2x17x32xf32>
    %8 = arith.subf %0, %7 : vector<2x17x32xf32>
    %9 = arith.mulf %8, %8 : vector<2x17x32xf32>
    %cst_7 = arith.constant dense<0.000000e+00> : vector<2x17xf32>
    %10 = vector.multi_reduction <add>, %9, %cst_7 [2] : vector<2x17x32xf32> to vector<2x17xf32>
    %11 = vector.shape_cast %10 : vector<2x17xf32> to vector<2x17x1xf32>
    %cst_8 = arith.constant 3.200000e+01 : f32
    %12 = vector.broadcast %cst_8 : f32 to vector<2x17x1xf32>
    %13 = arith.divf %11, %12 : vector<2x17x1xf32>
    %cst_9 = arith.constant 9.99999974E-6 : f32
    %14 = vector.broadcast %cst_9 : f32 to vector<2x17x1xf32>
    %15 = arith.addf %13, %14 : vector<2x17x1xf32>
    %16 = math.rsqrt %15 : vector<2x17x1xf32>
    %17 = vector.broadcast %16 : vector<2x17x1xf32> to vector<2x17x32xf32>
    %18 = arith.mulf %8, %17 : vector<2x17x32xf32>
    %19 = vector.shape_cast %1 : vector<1x32xf32> to vector<1x1x32xf32>
    %20 = vector.broadcast %19 : vector<1x1x32xf32> to vector<2x17x32xf32>
    %21 = arith.mulf %18, %20 : vector<2x17x32xf32>
    %22 = vector.shape_cast %2 : vector<1x32xf32> to vector<1x1x32xf32>
    %23 = vector.broadcast %22 : vector<1x1x32xf32> to vector<2x17x32xf32>
    %24 = arith.addf %21, %23 : vector<2x17x32xf32>
    %c0_10 = arith.constant 0 : index
    %c0_11 = arith.constant 0 : index
    %25 = vector.load %arg4[%c0_10, %c0_11] : memref<1x32xf32, #tpu.memory_space<vmem>>, vector<1x32xf32>
    %26 = vector.shape_cast %25 : vector<1x32xf32> to vector<1x1x32xf32>
    %27 = vector.broadcast %26 : vector<1x1x32xf32> to vector<2x17x32xf32>
    %28 = arith.mulf %24, %27 : vector<2x17x32xf32>
    %cst_12 = arith.constant dense<0.000000e+00> : vector<2x17xf32>
    %29 = vector.multi_reduction <add>, %28, %cst_12 [2] : vector<2x17x32xf32> to vector<2x17xf32>
    %c0_13 = arith.constant 0 : index
    %c0_14 = arith.constant 0 : index
    %30 = vector.load %arg5[%c0_13, %c0_14] : memref<1x1xf32, #tpu.memory_space<vmem>>, vector<1x1xf32>
    %31 = vector.broadcast %30 : vector<1x1xf32> to vector<2x17xf32>
    %32 = arith.addf %29, %31 : vector<2x17xf32>
    %cst_15 = arith.constant dense<0xFF800000> : vector<2xf32>
    %33 = vector.multi_reduction <maximumf>, %32, %cst_15 [1] : vector<2x17xf32> to vector<2xf32>
    %34 = vector.shape_cast %33 : vector<2xf32> to vector<2x1xf32>
    %35 = vector.broadcast %34 : vector<2x1xf32> to vector<2x17xf32>
    %36 = arith.subf %32, %35 : vector<2x17xf32>
    %37 = math.exp %36 : vector<2x17xf32>
    %cst_16 = arith.constant dense<0.000000e+00> : vector<2xf32>
    %38 = vector.multi_reduction <add>, %37, %cst_16 [1] : vector<2x17xf32> to vector<2xf32>
    %39 = vector.shape_cast %38 : vector<2xf32> to vector<2x1xf32>
    %40 = tpu.reciprocal %39 {approx = true} : vector<2x1xf32> -> vector<2x1xf32>
    %41 = vector.broadcast %40 : vector<2x1xf32> to vector<2x17xf32>
    %42 = arith.mulf %37, %41 : vector<2x17xf32>
    %c0_17 = arith.constant 0 : index
    %c0_18 = arith.constant 0 : index
    %c0_19 = arith.constant 0 : index
    %43 = vector.load %arg6[%c0_17, %c0_18, %c0_19] : memref<2x17x256xf32, #tpu.memory_space<vmem>>, vector<2x17x256xf32>
    %44 = vector.shape_cast %42 : vector<2x17xf32> to vector<2x17x1xf32>
    %45 = vector.broadcast %44 : vector<2x17x1xf32> to vector<2x17x256xf32>
    %46 = arith.mulf %43, %45 : vector<2x17x256xf32>
    %c0_20 = arith.constant 0 : index
    %c0_21 = arith.constant 0 : index
    %c0_22 = arith.constant 0 : index
    %47 = vector.load %arg7[%c0_20, %c0_21, %c0_22] : memref<2x17x256xf32, #tpu.memory_space<vmem>>, vector<2x17x256xf32>
    tpu.vector_store %arg7[%c0_20, %c0_21, %c0_22], %46 {strides = array<i32>} : memref<2x17x256xf32, #tpu.memory_space<vmem>>, vector<2x17x256xf32>,
    return
  }
  func.func @transform_0(%arg0: i32) -> (i32, i32, i32) {
    %c0_i32 = arith.constant 0 : i32
    %c0_i32_0 = arith.constant 0 : i32
    %c0_i32_1 = arith.constant 0 : i32
    %c0_i32_2 = arith.constant 0 : i32
    return %c0_i32, %c0_i32_0, %c0_i32_1 : i32, i32, i32
  }
  func.func @transform_1(%arg0: i32) -> (i32, i32) {
    %c0_i32 = arith.constant 0 : i32
    %c0_i32_0 = arith.constant 0 : i32
    %c0_i32_1 = arith.constant 0 : i32
    return %c0_i32, %c0_i32_0 : i32, i32
  }
  func.func @transform_2(%arg0: i32) -> (i32, i32) {
    %c0_i32 = arith.constant 0 : i32
    %c0_i32_0 = arith.constant 0 : i32
    %c0_i32_1 = arith.constant 0 : i32
    return %c0_i32, %c0_i32_0 : i32, i32
  }
  func.func @transform_3(%arg0: i32) -> (i32, i32) {
    %c0_i32 = arith.constant 0 : i32
    %c0_i32_0 = arith.constant 0 : i32
    %c0_i32_1 = arith.constant 0 : i32
    return %c0_i32, %c0_i32_0 : i32, i32
  }
  func.func @transform_4(%arg0: i32) -> (i32, i32) {
    %c0_i32 = arith.constant 0 : i32
    %c0_i32_0 = arith.constant 0 : i32
    %c0_i32_1 = arith.constant 0 : i32
    return %c0_i32, %c0_i32_0 : i32, i32
  }
  func.func @transform_5(%arg0: i32) -> (i32, i32, i32) {
    %c0_i32 = arith.constant 0 : i32
    %c0_i32_0 = arith.constant 0 : i32
    %c0_i32_1 = arith.constant 0 : i32
    return %c0_i32, %c0_i32_0, %arg0 : i32, i32, i32
  }
  func.func @transform_6(%arg0: i32) -> (i32, i32, i32) {
    %c0_i32 = arith.constant 0 : i32
    %c0_i32_0 = arith.constant 0 : i32
    %c0_i32_1 = arith.constant 0 : i32
    return %c0_i32, %c0_i32_0, %arg0 : i32, i32, i32
  }
}

</mosaic_0001>

<llo_original>
// kernel: vit_forward.7
$region0: #{vit_forward.7}
  #allocation0 [shape = 'u32[]', space=smem, size = 0x4, offset = 0x4, fixed_abs, tag = 'smem constant byte address 0x4 - core index']
  #allocation1 [shape = 'u32[144,128]{1,0:T(1,128)}', space=vmem, size = 0x12000, scoped, tag = 'internal scratch']
  #allocation2 [shape = 'f32[1,1]{1,0:T(1,128)S(1)}', space=vmem, size = 0x200, scoped, tag = 'scoped memory for vit_forward.7']
  %s0 = inlined_call_operand.vmem [shape: f32[2,17,32], index: 0, kind: input, shape index: {}]
  %s1 = inlined_call_operand.vmem [shape: f32[1,32], index: 1, kind: input, shape index: {}]
  %s2 = inlined_call_operand.vmem [shape: f32[1,32], index: 2, kind: input, shape index: {}]
  %s3 = inlined_call_operand.vmem [shape: f32[1,32], index: 3, kind: input, shape index: {}]
  %s4 = inlined_call_operand.<no memory space> [shape: f32[1,1], index: 4, kind: input, shape index: {}]
  %s5 = inlined_call_operand.vmem [shape: f32[2,17,256], index: 5, kind: input, shape index: {}]
  %s6 = inlined_call_operand.vmem [shape: f32[2,17,256], index: 6, kind: output, shape index: {}]
  %s7 = sld [smem:[#allocation0]]
  $region34: #{vit_forward.7} parent=0
    _
  %s9 = ssub.s32 1, %s7
  %s10 = scalar_select 0, %s9, %s7
  %v11 = vstv %s4
  %12 = vst [vmem:[#allocation2] sm:$0x1] %v11
  // Predicated region
  $region2: #{vit_forward.7} parent=0 // pred_check
    _
  $region3: #{vit_forward.7} parent=0 // pred_check_branch
    %14 = sbr.rel (0) target = $region5
  $region4: #{vit_forward.7} parent=0 // pred_region
    _
  $region5: #{vit_forward.7} parent=0 // pred_fallthru
    _
  // Predicated region
  $region6: #{vit_forward.7} parent=0 // pred_check
    _
  $region7: #{vit_forward.7} parent=0 // pred_check_branch
    %16 = sbr.rel (0) target = $region9
  $region8: #{vit_forward.7} parent=0 // pred_region
    _
  $region9: #{vit_forward.7} parent=0 // pred_fallthru
    _
  // Predicated region
  $region10: #{vit_forward.7} parent=0 // pred_check
    _
  $region11: #{vit_forward.7} parent=0 // pred_check_branch
    %18 = sbr.rel (0) target = $region13
  $region12: #{vit_forward.7} parent=0 // pred_region
    _
  $region13: #{vit_forward.7} parent=0 // pred_fallthru
    _
  // Predicated region
  $region14: #{vit_forward.7} parent=0 // pred_check
    _
  $region15: #{vit_forward.7} parent=0 // pred_check_branch
    %20 = sbr.rel (0) target = $region17
  $region16: #{vit_forward.7} parent=0 // pred_region
    _
  $region17: #{vit_forward.7} parent=0 // pred_fallthru
    _
  // Predicated region
  $region18: #{vit_forward.7} parent=0 // pred_check
    _
  $region19: #{vit_forward.7} parent=0 // pred_check_branch
    %22 = sbr.rel (0) target = $region21
  $region20: #{vit_forward.7} parent=0 // pred_region
    _
  $region21: #{vit_forward.7} parent=0 // pred_fallthru
    _
  // Predicated region
  $region22: #{vit_forward.7} parent=0 // pred_check
    _
  $region23: #{vit_forward.7} parent=0 // pred_check_branch
    %24 = sbr.rel (0) target = $region25
  $region24: #{vit_forward.7} parent=0 // pred_region
    _
  $region25: #{vit_forward.7} parent=0 // pred_fallthru
    _
  %v25 = vld [vmem:[%s0] sm:$0xff]
  %v26 = vld [vmem:[%s0 + $0x8] sm:$0xff]
  %v27 = vld [vmem:[%s0 + $0x10] sm:$0x1]
  %v28 = vld [vmem:[%s0 + $0x18] sm:$0xff]
  %v29 = vld [vmem:[%s0 + $0x20] sm:$0xff]
  %v30 = vld [vmem:[%s0 + $0x28] sm:$0x1]
  %v31 = vld [vmem:[%s1] sm:$0x1]
  %v32 = vld [vmem:[%s2] sm:$0x1]
  %vm33 = vcmask 261120
  %v34 = vsel %vm33, %v25, 0.0
  %35 = vadd.xlane.f32.xlu0 %v34
  %v36 = vpop.xlane.xlu0 %35
  %v37 = vsel %vm33, %v26, 0.0
  %38 = vadd.xlane.f32.xlu0 %v37
  %v39 = vpop.xlane.xlu0 %38
  %vm40 = vcmask 253952
  %v41 = vsel %vm40, %v27, 0.0
  %42 = vadd.xlane.f32.xlu0 %v41
  %v43 = vpop.xlane.xlu0 %42
  %v44 = vsel %vm33, %v28, 0.0
  %45 = vadd.xlane.f32.xlu0 %v44
  %v46 = vpop.xlane.xlu0 %45
  %v47 = vsel %vm33, %v29, 0.0
  %48 = vadd.xlane.f32.xlu0 %v47
  %v49 = vpop.xlane.xlu0 %48
  %v50 = vsel %vm40, %v30, 0.0
  %51 = vadd.xlane.f32.xlu0 %v50
  %v52 = vpop.xlane.xlu0 %51
  %v53 = vrcp.pop 32.0
  %v54 = vmul.f32 %v36, %v53
  %v55 = vmul.f32 %v39, %v53
  %v56 = vmul.f32 %v43, %v53
  %v57 = vmul.f32 %v46, %v53
  %v58 = vmul.f32 %v49, %v53
  %v59 = vmul.f32 %v52, %v53
  %v60 = vsub.f32 %v25, %v54
  %v61 = vsub.f32 %v26, %v55
  %v62 = vsub.f32 %v27, %v56
  %v63 = vsub.f32 %v28, %v57
  %v64 = vsub.f32 %v29, %v58
  %v65 = vsub.f32 %v30, %v59
  %v66 = vmul.f32 %v60, %v60
  %v67 = vmul.f32 %v61, %v61
  %v68 = vmul.f32 %v62, %v62
  %v69 = vmul.f32 %v63, %v63
  %v70 = vmul.f32 %v64, %v64
  %v71 = vmul.f32 %v65, %v65
  %v72 = vsel %vm33, %v66, 0.0
  %73 = vadd.xlane.f32.xlu0 %v72
  %v74 = vpop.xlane.xlu0 %73
  %v75 = vsel %vm33, %v67, 0.0
  %76 = vadd.xlane.f32.xlu0 %v75
  %v77 = vpop.xlane.xlu0 %76
  %v78 = vsel %vm40, %v68, 0.0
  %79 = vadd.xlane.f32.xlu0 %v78
  %v80 = vpop.xlane.xlu0 %79
  %v81 = vsel %vm33, %v69, 0.0
  %82 = vadd.xlane.f32.xlu0 %v81
  %v83 = vpop.xlane.xlu0 %82
  %v84 = vsel %vm33, %v70, 0.0
  %85 = vadd.xlane.f32.xlu0 %v84
  %v86 = vpop.xlane.xlu0 %85
  %v87 = vsel %vm40, %v71, 0.0
  %88 = vadd.xlane.f32.xlu0 %v87
  %v89 = vpop.xlane.xlu0 %88
  %v90 = vmul.f32 %v74, %v53
  %v91 = vmul.f32 %v77, %v53
  %v92 = vmul.f32 %v80, %v53
  %v93 = vmul.f32 %v83, %v53
  %v94 = vmul.f32 %v86, %v53
  %v95 = vmul.f32 %v89, %v53
  %v96 = vadd.f32 %v90, 1e-05
  %v97 = vadd.f32 %v91, 1e-05
  %v98 = vadd.f32 %v92, 1e-05
  %v99 = vadd.f32 %v93, 1e-05
  %v100 = vadd.f32 %v94, 1e-05
  %v101 = vadd.f32 %v95, 1e-05
  %v102 = vrsqrt.pop %v96
  %v103 = vrsqrt.pop %v97
  %v104 = vrsqrt.pop %v98
  %v105 = vrsqrt.pop %v99
  %v106 = vrsqrt.pop %v100
  %v107 = vrsqrt.pop %v101
  %v108 = vmul.f32 %v60, %v102
  %v109 = vmul.f32 %v61, %v103
  %v110 = vmul.f32 %v62, %v104
  %v111 = vmul.f32 %v63, %v105
  %v112 = vmul.f32 %v64, %v106
  %v113 = vmul.f32 %v65, %v107
  %v115 = vlaneseq
  %v116 = vshrl.u32 %v115, 7
  %v117 = vsub.s32 0, %v116
  %v118 = vrot.slane %v31, %v117
  %v120 = vmul.f32 %v108, %v118
  %v121 = vmul.f32 %v109, %v118
  %v122 = vmul.f32 %v110, %v118
  %v123 = vmul.f32 %v111, %v118
  %v124 = vmul.f32 %v112, %v118
  %v125 = vmul.f32 %v113, %v118
  %v127 = vlaneseq
  %v128 = vshrl.u32 %v127, 7
  %v129 = vsub.s32 0, %v128
  %v130 = vrot.slane %v32, %v129
  %v132 = vadd.f32 %v120, %v130
  %v133 = vadd.f32 %v121, %v130
  %v134 = vadd.f32 %v122, %v130
  %v135 = vadd.f32 %v123, %v130
  %v136 = vadd.f32 %v124, %v130
  %v137 = vadd.f32 %v125, %v130
  %v138 = vld [vmem:[%s3] sm:$0x1]
  %v140 = vlaneseq
  %v141 = vshrl.u32 %v140, 7
  %v142 = vsub.s32 0, %v141
  %v143 = vrot.slane %v138, %v142
  %v145 = vmul.f32 %v132, %v143
  %v146 = vmul.f32 %v133, %v143
  %v147 = vmul.f32 %v134, %v143
  %v148 = vmul.f32 %v135, %v143
  %v149 = vmul.f32 %v136, %v143
  %v150 = vmul.f32 %v137, %v143
  %v151 = vsel %vm33, %v145, 0.0
  %152 = vadd.xlane.f32.xlu0 %v151
  %v153 = vpop.xlane.xlu0 %152
  %v154 = vsel %vm33, %v146, 0.0
  %155 = vadd.xlane.f32.xlu0 %v154
  %v156 = vpop.xlane.xlu0 %155
  %v157 = vsel %vm40, %v147, 0.0
  %158 = vadd.xlane.f32.xlu0 %v157
  %v159 = vpop.xlane.xlu0 %158
  %v160 = vsel %vm33, %v148, 0.0
  %161 = vadd.xlane.f32.xlu0 %v160
  %v162 = vpop.xlane.xlu0 %161
  %v163 = vsel %vm33, %v149, 0.0
  %164 = vadd.xlane.f32.xlu0 %v163
  %v165 = vpop.xlane.xlu0 %164
  %v166 = vsel %vm40, %v150, 0.0
  %167 = vadd.xlane.f32.xlu0 %v166
  %v168 = vpop.xlane.xlu0 %167
  %v169 = vld [vmem:[#allocation2] sm:$0x1]
  %v171 = vlaneseq
  %v172 = vshrl.u32 %v171, 7
  %v173 = vsub.s32 0, %v172
  %v174 = vrot.slane %v169, %v173
  %175 = vset.pattern.permute.xlu0 0
  %176 = vperm.xlu0 %175, %v174
  %v177 = vpop.permute.xlu0 %176
  %v179 = vadd.f32 %v153, %v177
  %v180 = vadd.f32 %v156, %v177
  %v181 = vadd.f32 %v159, %v177
  %v182 = vadd.f32 %v162, %v177
  %v183 = vadd.f32 %v165, %v177
  %v184 = vadd.f32 %v168, %v177
  %v191 = vlaneseq
  %v192 = vand.u32 %v191, 127
  %v193 = vlaneseq
  %v194 = vshrl.u32 %v193, 7
  %v195 = vsub.s32 %v192, %v194
  %v196 = vrot.slane %v179, %v195
  %v197 = vadd.s32 %v192, 4294967288
  %v198 = vlaneseq
  %v199 = vshrl.u32 %v198, 7
  %v200 = vsub.s32 %v197, %v199
  %v201 = vrot.slane %v180, %v200
  %vm202 = vcmask 130112
  %v203 = vsel %vm202, %v201, %v196
  %v204 = vadd.s32 %v192, 4294967280
  %v205 = vlaneseq
  %v206 = vshrl.u32 %v205, 7
  %v207 = vsub.s32 %v204, %v206
  %v208 = vrot.slane %v181, %v207
  %vm209 = vcmask 195712
  %v210 = vsel %vm209, %v208, %v203
  %v211 = vlaneseq
  %v212 = vshrl.u32 %v211, 7
  %v213 = vsub.s32 %v192, %v212
  %v214 = vrot.slane %v182, %v213
  %v215 = vlaneseq
  %v216 = vshrl.u32 %v215, 7
  %v217 = vsub.s32 %v197, %v216
  %v218 = vrot.slane %v183, %v217
  %v219 = vsel %vm202, %v218, %v214
  %v220 = vlaneseq
  %v221 = vshrl.u32 %v220, 7
  %v222 = vsub.s32 %v204, %v221
  %v223 = vrot.slane %v184, %v222
  %v224 = vsel %vm209, %v223, %v219
  %vm225 = vcmask 1041409
  %v226 = vsel %vm225, %v224, %v210
  %vm228 = vcmask 132096
  %v229 = vsel %vm228, %v226, -inf
  %230 = vmax.xlane.f32.xlu0 %v229
  %v231 = vpop.xlane.xlu0 %230
  %v233 = vlaneseq
  %v234 = vshrl.u32 %v233, 7
  %v235 = vsub.s32 0, %v234
  %v236 = vrot.slane %v231, %v235
  %v237 = vlaneseq
  %v238 = vshrl.u32 %v237, 7
  %v239 = vsub.s32 1, %v238
  %v240 = vrot.slane %v231, %v239
  %v243 = vsub.f32 %v179, %v236
  %v244 = vsub.f32 %v180, %v236
  %v245 = vsub.f32 %v181, %v236
  %v246 = vsub.f32 %v182, %v240
  %v247 = vsub.f32 %v183, %v240
  %v248 = vsub.f32 %v184, %v240
  %v249 = vmul.f32 %v243, 1.442695
  %v250 = vpow.pop %v249
  %v251 = vmul.f32 %v244, 1.442695
  %v252 = vpow.pop %v251
  %v253 = vmul.f32 %v245, 1.442695
  %v254 = vpow.pop %v253
  %v255 = vmul.f32 %v246, 1.442695
  %v256 = vpow.pop %v255
  %v257 = vmul.f32 %v247, 1.442695
  %v258 = vpow.pop %v257
  %v259 = vmul.f32 %v248, 1.442695
  %v260 = vpow.pop %v259
  %267 = vset.pattern.permute.xlu0 0
  %268 = vperm.xlu0 %267, %v250
  %v269 = vpop.permute.xlu0 %268
  %270 = vset.pattern.permute.xlu0 0
  %271 = vperm.xlu0 %270, %v252
  %v272 = vpop.permute.xlu0 %271
  %273 = vset.pattern.permute.xlu0 0
  %274 = vperm.xlu0 %273, %v254
  %v275 = vpop.permute.xlu0 %274
  %276 = vset.pattern.permute.xlu0 0
  %277 = vperm.xlu0 %276, %v256
  %v278 = vpop.permute.xlu0 %277
  %279 = vset.pattern.permute.xlu0 0
  %280 = vperm.xlu0 %279, %v258
  %v281 = vpop.permute.xlu0 %280
  %282 = vset.pattern.permute.xlu0 0
  %283 = vperm.xlu0 %282, %v260
  %v284 = vpop.permute.xlu0 %283
  %v285 = vlaneseq
  %v286 = vshrl.u32 %v285, 7
  %v287 = vsub.s32 %v192, %v286
  %v288 = vrot.slane %v269, %v287
  %v289 = vlaneseq
  %v290 = vshrl.u32 %v289, 7
  %v291 = vsub.s32 %v197, %v290
  %v292 = vrot.slane %v272, %v291
  %v293 = vsel %vm202, %v292, %v288
  %v294 = vlaneseq
  %v295 = vshrl.u32 %v294, 7
  %v296 = vsub.s32 %v204, %v295
  %v297 = vrot.slane %v275, %v296
  %v298 = vsel %vm209, %v297, %v293
  %v299 = vlaneseq
  %v300 = vshrl.u32 %v299, 7
  %v301 = vsub.s32 %v192, %v300
  %v302 = vrot.slane %v278, %v301
  %v303 = vlaneseq
  %v304 = vshrl.u32 %v303, 7
  %v305 = vsub.s32 %v197, %v304
  %v306 = vrot.slane %v281, %v305
  %v307 = vsel %vm202, %v306, %v302
  %v308 = vlaneseq
  %v309 = vshrl.u32 %v308, 7
  %v310 = vsub.s32 %v204, %v309
  %v311 = vrot.slane %v284, %v310
  %v312 = vsel %vm209, %v311, %v307
  %v313 = vsel %vm225, %v312, %v298
  %v315 = vsel %vm228, %v313, 0.0
  %316 = vadd.xlane.f32.xlu0 %v315
  %v317 = vpop.xlane.xlu0 %316
  %v318 = vrcp.pop %v317
  %v320 = vlaneseq
  %v321 = vshrl.u32 %v320, 7
  %v322 = vsub.s32 0, %v321
  %v323 = vrot.slane %v318, %v322
  %v324 = vlaneseq
  %v325 = vshrl.u32 %v324, 7
  %v326 = vsub.s32 1, %v325
  %v327 = vrot.slane %v318, %v326
  %v330 = vmul.f32 %v250, %v323
  %v331 = vmul.f32 %v252, %v323
  %v332 = vmul.f32 %v254, %v323
  %v333 = vmul.f32 %v256, %v327
  %v334 = vmul.f32 %v258, %v327
  %v335 = vmul.f32 %v260, %v327
  %v336 = vld [vmem:[%s5] sm:$0xff]
  %v337 = vld [vmem:[%s5 + $0x8] sm:$0xff]
  %v338 = vld [vmem:[%s5 + $0x10] sm:$0xff]
  %v339 = vld [vmem:[%s5 + $0x18] sm:$0xff]
  %v340 = vld [vmem:[%s5 + $0x20] sm:$0x1]
  %v341 = vld [vmem:[%s5 + $0x28] sm:$0x1]
  %v342 = vld [vmem:[%s5 + $0x30] sm:$0xff]
  %v343 = vld [vmem:[%s5 + $0x38] sm:$0xff]
  %v344 = vld [vmem:[%s5 + $0x40] sm:$0xff]
  %v345 = vld [vmem:[%s5 + $0x48] sm:$0xff]
  %v346 = vld [vmem:[%s5 + $0x50] sm:$0x1]
  %v347 = vld [vmem:[%s5 + $0x58] sm:$0x1]
  %349 = vset.pattern.permute.xlu0 0
  %350 = vperm.xlu0 %349, %v330
  %v351 = vpop.permute.xlu0 %350
  %354 = vset.pattern.permute.xlu0 0
  %355 = vperm.xlu0 %354, %v331
  %v356 = vpop.permute.xlu0 %355
  %359 = vset.pattern.permute.xlu0 0
  %360 = vperm.xlu0 %359, %v332
  %v361 = vpop.permute.xlu0 %360
  %364 = vset.pattern.permute.xlu0 0
  %365 = vperm.xlu0 %364, %v333
  %v366 = vpop.permute.xlu0 %365
  %369 = vset.pattern.permute.xlu0 0
  %370 = vperm.xlu0 %369, %v334
  %v371 = vpop.permute.xlu0 %370
  %374 = vset.pattern.permute.xlu0 0
  %375 = vperm.xlu0 %374, %v335
  %v376 = vpop.permute.xlu0 %375
  %v378 = vmul.f32 %v336, %v351
  %v379 = vmul.f32 %v337, %v351
  %v380 = vmul.f32 %v338, %v356
  %v381 = vmul.f32 %v339, %v356
  %v382 = vmul.f32 %v340, %v361
  %v383 = vmul.f32 %v341, %v361
  %v384 = vmul.f32 %v342, %v366
  %v385 = vmul.f32 %v343, %v366
  %v386 = vmul.f32 %v344, %v371
  %v387 = vmul.f32 %v345, %v371
  %v388 = vmul.f32 %v346, %v376
  %v389 = vmul.f32 %v347, %v376
  %390 = vst [vmem:[%s6] sm:$0xff] %v378
  %391 = vst [vmem:[%s6 + $0x8] sm:$0xff] %v379
  %392 = vst [vmem:[%s6 + $0x10] sm:$0xff] %v380
  %393 = vst [vmem:[%s6 + $0x18] sm:$0xff] %v381
  %394 = vst [vmem:[%s6 + $0x20] sm:$0x1] %v382
  %395 = vst [vmem:[%s6 + $0x28] sm:$0x1] %v383
  %396 = vst [vmem:[%s6 + $0x30] sm:$0xff] %v384
  %397 = vst [vmem:[%s6 + $0x38] sm:$0xff] %v385
  %398 = vst [vmem:[%s6 + $0x40] sm:$0xff] %v386
  %399 = vst [vmem:[%s6 + $0x48] sm:$0xff] %v387
  %400 = vst [vmem:[%s6 + $0x50] sm:$0x1] %v388
  %401 = vst [vmem:[%s6 + $0x58] sm:$0x1] %v389
  // Predicated region
  $region26: #{vit_forward.7} parent=0 // pred_check
    _
  $region27: #{vit_forward.7} parent=0 // pred_check_branch
    %403 = sbr.rel (0) target = $region29
  $region28: #{vit_forward.7} parent=0 // pred_region
    _
  $region29: #{vit_forward.7} parent=0 // pred_fallthru
    _
  // Predicated region
  $region30: #{vit_forward.7} parent=0 // pred_check
    _
  $region31: #{vit_forward.7} parent=0 // pred_check_branch
    %405 = sbr.rel (0) target = $region33
  $region32: #{vit_forward.7} parent=0 // pred_region
    _
  $region33: #{vit_forward.7} parent=0 // pred_fallthru
    _

// kernel: vit_forward.4
$region0: #{vit_forward.4}
  #allocation0 [shape = 'u32[]', space=smem, size = 0x4, offset = 0x4, fixed_abs, tag = 'smem constant byte address 0x4 - core index']
  #allocation1 [shape = 'u32[144,128]{1,0:T(1,128)}', space=vmem, size = 0x12000, scoped, tag = 'internal scratch']
  %s0 = inlined_call_operand.vmem [shape: f32[34,256], index: 0, kind: input, shape index: {}]
  %s1 = inlined_call_operand.vmem [shape: bf16[256,32], index: 1, kind: input, shape index: {}]
  %s2 = inlined_call_operand.vmem [shape: f32[1,32], index: 2, kind: input, shape index: {}]
  %s3 = inlined_call_operand.vmem [shape: f32[34,32], index: 3, kind: input, shape index: {}]
  %s4 = inlined_call_operand.vmem [shape: f32[34,32], index: 4, kind: output, shape index: {}]
  %s5 = sld [smem:[#allocation0]]
  $region34: #{vit_forward.4} parent=0
    _
  %s7 = ssub.s32 1, %s5
  %s8 = scalar_select 0, %s7, %s5
  // Predicated region
  $region2: #{vit_forward.4} parent=0 // pred_check
    _
  $region3: #{vit_forward.4} parent=0 // pred_check_branch
    %10 = sbr.rel (0) target = $region5
  $region4: #{vit_forward.4} parent=0 // pred_region
    _
  $region5: #{vit_forward.4} parent=0 // pred_fallthru
    _
  // Predicated region
  $region6: #{vit_forward.4} parent=0 // pred_check
    _
  $region7: #{vit_forward.4} parent=0 // pred_check_branch
    %12 = sbr.rel (0) target = $region9
  $region8: #{vit_forward.4} parent=0 // pred_region
    _
  $region9: #{vit_forward.4} parent=0 // pred_fallthru
    _
  // Predicated region
  $region10: #{vit_forward.4} parent=0 // pred_check
    _
  $region11: #{vit_forward.4} parent=0 // pred_check_branch
    %14 = sbr.rel (0) target = $region13
  $region12: #{vit_forward.4} parent=0 // pred_region
    _
  $region13: #{vit_forward.4} parent=0 // pred_fallthru
    _
  // Predicated region
  $region14: #{vit_forward.4} parent=0 // pred_check
    _
  $region15: #{vit_forward.4} parent=0 // pred_check_branch
    %16 = sbr.rel (0) target = $region17
  $region16: #{vit_forward.4} parent=0 // pred_region
    _
  $region17: #{vit_forward.4} parent=0 // pred_fallthru
    _
  %p18 = scmp.eq.s32.totalorder 0, 0
  // Predicated region
  $region18: #{vit_forward.4} parent=0 // pred_check
    %p19 = pneg %p18
  $region19: #{vit_forward.4} parent=0 // pred_check_branch
    %21 = sbr.rel (%p19) target = $region21
  $region20: #{vit_forward.4} parent=0 // pred_region
    %vm22 = vcmask 261120
    %23 = vst.msk [vmem:[%s4] sm:$0xff] %vm22, 0.0
    %24 = vst.msk [vmem:[%s4 + $0x8] sm:$0xff] %vm22, 0.0
    %25 = vst.msk [vmem:[%s4 + $0x10] sm:$0xff] %vm22, 0.0
    %26 = vst.msk [vmem:[%s4 + $0x18] sm:$0xff] %vm22, 0.0
    %vm27 = vcmask 254976
    %28 = vst.msk [vmem:[%s4 + $0x20] sm:$0x3] %vm27, 0.0
  $region21: #{vit_forward.4} parent=0 // pred_fallthru
    _
  %v29 = vld [vmem:[%s4] sm:$0xff]
  %v30 = vld [vmem:[%s4 + $0x8] sm:$0xff]
  %v31 = vld [vmem:[%s4 + $0x10] sm:$0xff]
  %v32 = vld [vmem:[%s4 + $0x18] sm:$0xff]
  %v33 = vld [vmem:[%s4 + $0x20] sm:$0x3]
  %v34 = vld [vmem:[%s0] sm:$0xff]
  %v35 = vld [vmem:[%s0 + $0x8] sm:$0xff]
  %v36 = vld [vmem:[%s0 + $0x10] sm:$0xff]
  %v37 = vld [vmem:[%s0 + $0x18] sm:$0xff]
  %v38 = vld [vmem:[%s0 + $0x20] sm:$0xff]
  %v39 = vld [vmem:[%s0 + $0x28] sm:$0xff]
  %v40 = vld [vmem:[%s0 + $0x30] sm:$0xff]
  %v41 = vld [vmem:[%s0 + $0x38] sm:$0xff]
  %v42 = vld [vmem:[%s0 + $0x40] sm:$0x3]
  %v43 = vld [vmem:[%s0 + $0x48] sm:$0x3]
  %v44 = vpack.c.bf16 %v36, %v34
  %v45 = vpack.c.bf16 %v37, %v35
  %v46 = vpack.c.bf16 %v40, %v38
  %v47 = vpack.c.bf16 %v41, %v39
  %v48 = vpack.c.bf16 %v42, %v42
  %v49 = vpack.c.bf16 %v43, %v43
  %v50 = vld [vmem:[%s1] sm:$0xf]
  %v51 = vld [vmem:[%s1 + $0x4] sm:$0xf]
  %v52 = vld [vmem:[%s1 + $0x8] sm:$0xf]
  %v53 = vld [vmem:[%s1 + $0xc] sm:$0xf]
  %v54 = vld [vmem:[%s1 + $0x10] sm:$0xf]
  %v55 = vld [vmem:[%s1 + $0x14] sm:$0xf]
  %v56 = vld [vmem:[%s1 + $0x18] sm:$0xf]
  %v57 = vld [vmem:[%s1 + $0x1c] sm:$0xf]
  %v58 = vld [vmem:[%s1 + $0x20] sm:$0xf]
  %v59 = vld [vmem:[%s1 + $0x24] sm:$0xf]
  %v60 = vld [vmem:[%s1 + $0x28] sm:$0xf]
  %v61 = vld [vmem:[%s1 + $0x2c] sm:$0xf]
  %v62 = vld [vmem:[%s1 + $0x30] sm:$0xf]
  %v63 = vld [vmem:[%s1 + $0x34] sm:$0xf]
  %v64 = vld [vmem:[%s1 + $0x38] sm:$0xf]
  %v65 = vld [vmem:[%s1 + $0x3c] sm:$0xf]
  %v66 = vld [vmem:[%s1 + $0x40] sm:$0xf]
  %v67 = vld [vmem:[%s1 + $0x44] sm:$0xf]
  %v68 = vld [vmem:[%s1 + $0x48] sm:$0xf]
  %v69 = vld [vmem:[%s1 + $0x4c] sm:$0xf]
  %v70 = vld [vmem:[%s1 + $0x50] sm:$0xf]
  %v71 = vld [vmem:[%s1 + $0x54] sm:$0xf]
  %v72 = vld [vmem:[%s1 + $0x58] sm:$0xf]
  %v73 = vld [vmem:[%s1 + $0x5c] sm:$0xf]
  %v74 = vld [vmem:[%s1 + $0x60] sm:$0xf]
  %v75 = vld [vmem:[%s1 + $0x64] sm:$0xf]
  %v76 = vld [vmem:[%s1 + $0x68] sm:$0xf]
  %v77 = vld [vmem:[%s1 + $0x6c] sm:$0xf]
  %v78 = vld [vmem:[%s1 + $0x70] sm:$0xf]
  %v79 = vld [vmem:[%s1 + $0x74] sm:$0xf]
  %v80 = vld [vmem:[%s1 + $0x78] sm:$0xf]
  %v81 = vld [vmem:[%s1 + $0x7c] sm:$0xf]
  %v114 = vunpack.c.l.b16 %v50
  %v115 = vunpack.c.l.b16 %v51
  %v116 = vunpack.c.l.b16 %v52
  %v117 = vunpack.c.l.b16 %v53
  %v118 = vunpack.c.l.b16 %v54
  %v119 = vunpack.c.l.b16 %v55
  %v120 = vunpack.c.l.b16 %v56
  %v121 = vunpack.c.l.b16 %v57
  %v122 = vunpack.c.l.b16 %v58
  %v123 = vunpack.c.l.b16 %v59
  %v124 = vunpack.c.l.b16 %v60
  %v125 = vunpack.c.l.b16 %v61
  %v126 = vunpack.c.l.b16 %v62
  %v127 = vunpack.c.l.b16 %v63
  %v128 = vunpack.c.l.b16 %v64
  %v129 = vunpack.c.l.b16 %v65
  %v130 = vunpack.c.l.b16 %v66
  %v131 = vunpack.c.l.b16 %v67
  %v132 = vunpack.c.l.b16 %v68
  %v133 = vunpack.c.l.b16 %v69
  %v134 = vunpack.c.l.b16 %v70
  %v135 = vunpack.c.l.b16 %v71
  %v136 = vunpack.c.l.b16 %v72
  %v137 = vunpack.c.l.b16 %v73
  %v138 = vunpack.c.l.b16 %v74
  %v139 = vunpack.c.l.b16 %v75
  %v140 = vunpack.c.l.b16 %v76
  %v141 = vunpack.c.l.b16 %v77
  %v142 = vunpack.c.l.b16 %v78
  %v143 = vunpack.c.l.b16 %v79
  %v144 = vunpack.c.l.b16 %v80
  %v145 = vunpack.c.l.b16 %v81
  %v146 = vpack.c.b16 %v115, %v114
  %v147 = vpack.c.b16 %v117, %v116
  %v148 = vpack.c.b16 %v119, %v118
  %v149 = vpack.c.b16 %v121, %v120
  %v150 = vpack.c.b16 %v123, %v122
  %v151 = vpack.c.b16 %v125, %v124
  %v152 = vpack.c.b16 %v127, %v126
  %v153 = vpack.c.b16 %v129, %v128
  %v154 = vpack.c.b16 %v131, %v130
  %v155 = vpack.c.b16 %v133, %v132
  %v156 = vpack.c.b16 %v135, %v134
  %v157 = vpack.c.b16 %v137, %v136
  %v158 = vpack.c.b16 %v139, %v138
  %v159 = vpack.c.b16 %v141, %v140
  %v160 = vpack.c.b16 %v143, %v142
  %v161 = vpack.c.b16 %v145, %v144
  %178 = vmatprep.subr.bf16.mxu0 0
  %179 = vmatpush1.bf16.msra.mxu0 %v153
  %180 = vmatprep.subr.bf16.mxu0 0
  %181 = vmatpush1.bf16.msra.mxu0 %v152
  %182 = vmatprep.subr.bf16.mxu0 0
  %183 = vmatpush1.bf16.msra.mxu0 %v151
  %184 = vmatprep.subr.bf16.mxu0 0
  %185 = vmatpush1.bf16.msra.mxu0 %v150
  %186 = vmatprep.subr.bf16.mxu0 0
  %187 = vmatpush1.bf16.msra.mxu0 %v149
  %188 = vmatprep.subr.bf16.mxu0 0
  %189 = vmatpush1.bf16.msra.mxu0 %v148
  %190 = vmatprep.subr.bf16.mxu0 0
  %191 = vmatpush1.bf16.msra.mxu0 %v147
  %192 = vmatprep.subr.bf16.mxu0 0
  %193 = vmatpush1.bf16.msra.mxu0 %v146
  %194 = vmatprep.subr.bf16.mxu0 0
  %195 = vmatpush2.bf16.msra.mxu0 %v161
  %196 = vmatprep.subr.bf16.mxu0 0
  %197 = vmatpush2.bf16.msra.mxu0 %v160
  %198 = vmatprep.subr.bf16.mxu0 0
  %199 = vmatpush2.bf16.msra.mxu0 %v159
  %200 = vmatprep.subr.bf16.mxu0 0
  %201 = vmatpush2.bf16.msra.mxu0 %v158
  %202 = vmatprep.subr.bf16.mxu0 0
  %203 = vmatpush2.bf16.msra.mxu0 %v157
  %204 = vmatprep.subr.bf16.mxu0 0
  %205 = vmatpush2.bf16.msra.mxu0 %v156
  %206 = vmatprep.subr.bf16.mxu0 0
  %207 = vmatpush2.bf16.msra.mxu0 %v155
  %208 = vmatprep.subr.bf16.mxu0 0
  %209 = vmatpush2.bf16.msra.mxu0 %v154
  %210 = vmatprep.mubr.bf16.mxu0 %v45
  %211 = vmatmul.mubr.bf16.gmra.mxu0 %v44
  %v212 = vpop.f32.mrf.mxu0
  %v213 = vadd.f32 0.0, %v212
  %v214 = vpop.f32.mrf.mxu0
  %v215 = vpop.f32.mrf.mxu0
  %v216 = vadd.f32 0.0, %v215
  %v217 = vpop.f32.mrf.mxu0
  %218 = vmatprep.mubr.bf16.mxu0 %v47
  %219 = vmatmul.mubr.bf16.gmra.mxu0 %v46
  %v220 = vpop.f32.mrf.mxu0
  %v221 = vadd.f32 0.0, %v220
  %v222 = vpop.f32.mrf.mxu0
  %v223 = vpop.f32.mrf.mxu0
  %v224 = vadd.f32 0.0, %v223
  %v225 = vpop.f32.mrf.mxu0
  %226 = vmatprep.mubr.bf16.mxu0 %v49
  %227 = vmatmul.mubr.bf16.gmra.mxu0 %v48
  %v228 = vpop.f32.mrf.mxu0
  %v229 = vadd.f32 0.0, %v228
  %v230 = vpop.f32.mrf.mxu0
  %v231 = vpop.f32.mrf.mxu0
  %v232 = vpop.f32.mrf.mxu0
  %233 = vdwg.mxu0
  %v234 = vadd.f32 %v29, %v213
  %v235 = vadd.f32 %v30, %v216
  %v236 = vadd.f32 %v31, %v221
  %v237 = vadd.f32 %v32, %v224
  %v238 = vadd.f32 %v33, %v229
  %vm239 = vcmask 261120
  %240 = vst.msk [vmem:[%s4] sm:$0xff] %vm239, %v234
  %241 = vst.msk [vmem:[%s4 + $0x8] sm:$0xff] %vm239, %v235
  %242 = vst.msk [vmem:[%s4 + $0x10] sm:$0xff] %vm239, %v236
  %243 = vst.msk [vmem:[%s4 + $0x18] sm:$0xff] %vm239, %v237
  %vm244 = vcmask 254976
  %245 = vst.msk [vmem:[%s4 + $0x20] sm:$0x3] %vm244, %v238
  // Predicated region
  $region22: #{vit_forward.4} parent=0 // pred_check
    %p246 = pneg %p18
  $region23: #{vit_forward.4} parent=0 // pred_check_branch
    %248 = sbr.rel (%p246) target = $region25
  $region24: #{vit_forward.4} parent=0 // pred_region
    %v249 = vld [vmem:[%s4] sm:$0xff]
    %v250 = vld [vmem:[%s4 + $0x8] sm:$0xff]
    %v251 = vld [vmem:[%s4 + $0x10] sm:$0xff]
    %v252 = vld [vmem:[%s4 + $0x18] sm:$0xff]
    %v253 = vld [vmem:[%s4 + $0x20] sm:$0x3]
    %v254 = vld [vmem:[%s2] sm:$0x1]
    %v256 = vlaneseq
    %v257 = vshrl.u32 %v256, 7
    %v258 = vsub.s32 0, %v257
    %v259 = vrot.slane %v254, %v258
    %v261 = vadd.f32 %v249, %v259
    %v262 = vadd.f32 %v250, %v259
    %v263 = vadd.f32 %v251, %v259
    %v264 = vadd.f32 %v252, %v259
    %v265 = vadd.f32 %v253, %v259
    %v266 = vld [vmem:[%s3] sm:$0xff]
    %v267 = vld [vmem:[%s3 + $0x8] sm:$0xff]
    %v268 = vld [vmem:[%s3 + $0x10] sm:$0xff]
    %v269 = vld [vmem:[%s3 + $0x18] sm:$0xff]
    %v270 = vld [vmem:[%s3 + $0x20] sm:$0x3]
    %v271 = vadd.f32 %v261, %v266
    %v272 = vadd.f32 %v262, %v267
    %v273 = vadd.f32 %v263, %v268
    %v274 = vadd.f32 %v264, %v269
    %v275 = vadd.f32 %v265, %v270
    %276 = vst.msk [vmem:[%s4] sm:$0xff] %vm239, %v271
    %277 = vst.msk [vmem:[%s4 + $0x8] sm:$0xff] %vm239, %v272
    %278 = vst.msk [vmem:[%s4 + $0x10] sm:$0xff] %vm239, %v273
    %279 = vst.msk [vmem:[%s4 + $0x18] sm:$0xff] %vm239, %v274
    %280 = vst.msk [vmem:[%s4 + $0x20] sm:$0x3] %vm244, %v275
  $region25: #{vit_forward.4} parent=0 // pred_fallthru
    _
  // Predicated region
  $region26: #{vit_forward.4} parent=0 // pred_check
    _
  $region27: #{vit_forward.4} parent=0 // pred_check_branch
    %282 = sbr.rel (0) target = $region29
  $region28: #{vit_forward.4} parent=0 // pred_region
    _
  $region29: #{vit_forward.4} parent=0 // pred_fallthru
    _
  // Predicated region
  $region30: #{vit_forward.4} parent=0 // pred_check
    _
  $region31: #{vit_forward.4} parent=0 // pred_check_branch
    %284 = sbr.rel (0) target = $region33
  $region32: #{vit_forward.4} parent=0 // pred_region
    _
  $region33: #{vit_forward.4} parent=0 // pred_fallthru
    _

// kernel: vit_forward.5
$region0: #{vit_forward.5}
  #allocation0 [shape = 'u32[]', space=smem, size = 0x4, offset = 0x4, fixed_abs, tag = 'smem constant byte address 0x4 - core index']
  #allocation1 [shape = 'u32[144,128]{1,0:T(1,128)}', space=vmem, size = 0x12000, scoped, tag = 'internal scratch']
  %s0 = inlined_call_operand.vmem [shape: f32[2,17,32], index: 0, kind: input, shape index: {}]
  %s1 = inlined_call_operand.vmem [shape: bf16[32,96], index: 1, kind: input, shape index: {}]
  %s2 = inlined_call_operand.vmem [shape: f32[1,96], index: 2, kind: input, shape index: {}]
  %s3 = inlined_call_operand.vmem [shape: bf16[32,32], index: 3, kind: input, shape index: {}]
  %s4 = inlined_call_operand.vmem [shape: f32[1,32], index: 4, kind: input, shape index: {}]
  %s5 = inlined_call_operand.vmem [shape: f32[1,32], index: 5, kind: input, shape index: {}]
  %s6 = inlined_call_operand.vmem [shape: f32[1,32], index: 6, kind: input, shape index: {}]
  %s7 = inlined_call_operand.vmem [shape: bf16[32,64], index: 7, kind: input, shape index: {}]
  %s8 = inlined_call_operand.vmem [shape: f32[1,64], index: 8, kind: input, shape index: {}]
  %s9 = inlined_call_operand.vmem [shape: bf16[64,32], index: 9, kind: input, shape index: {}]
  %s10 = inlined_call_operand.vmem [shape: f32[1,32], index: 10, kind: input, shape index: {}]
  %s11 = inlined_call_operand.vmem [shape: f32[1,32], index: 11, kind: input, shape index: {}]
  %s12 = inlined_call_operand.vmem [shape: f32[1,32], index: 12, kind: input, shape index: {}]
  %s13 = inlined_call_operand.vmem [shape: f32[2,17,32], index: 13, kind: output, shape index: {}]
  %s14 = sld [smem:[#allocation0]]
  $region85: #{vit_forward.5} parent=0
    _
  %s16 = ssub.s32 1, %s14
  %s17 = scalar_select 0, %s16, %s14
  loop: start=0, step=1, limit=4
  $region2: #{vit_forward.5} parent=0 // loop_pre_header
    _
  $region3: #{vit_forward.5} parent=0 // loop_header
    %s19 = sphi 0, %s23
    %p20 = scmp.ge.s32.totalorder %s19, 4
    %s29 = sphi 0, %s31
    %s32 = sphi 0, %s29
    %s33 = sphi 0, %s32
    %s49 = sphi 0, %s33
    %s53 = sphi 0, %s53
    %s55 = sphi 0, %s53
    %s56 = sphi 0, %s55
    %s70 = sphi 0, %s56
    %s74 = sphi 0, %s74
    %s76 = sphi 0, %s74
    %s77 = sphi 0, %s76
    %s91 = sphi 0, %s77
    %s95 = sphi 0, %s95
    %s97 = sphi 0, %s95
    %s98 = sphi 0, %s97
    %s112 = sphi 0, %s98
    %s116 = sphi 0, %s116
    %s118 = sphi 0, %s116
    %s119 = sphi 0, %s118
    %s133 = sphi 0, %s119
    %s137 = sphi 0, %s137
    %s139 = sphi 0, %s137
    %s140 = sphi 0, %s139
    %s154 = sphi 0, %s140
    %s158 = sphi 0, %s158
    %s160 = sphi 0, %s158
    %s161 = sphi 0, %s160
    %s175 = sphi 0, %s161
    %s179 = sphi 0, %s179
    %s181 = sphi 0, %s179
    %s182 = sphi 0, %s181
    %s196 = sphi 0, %s182
    %s200 = sphi 0, %s200
    %s202 = sphi 0, %s200
    %s203 = sphi 0, %s202
    %s217 = sphi 0, %s203
    %s221 = sphi 0, %s221
    %s223 = sphi 0, %s221
    %s224 = sphi 0, %s223
    %s238 = sphi 0, %s224
    %s242 = sphi 0, %s242
    %s244 = sphi 0, %s242
    %s245 = sphi 0, %s244
    %s259 = sphi 0, %s245
    %s263 = sphi 0, %s263
    %s265 = sphi 0, %s263
    %s266 = sphi 0, %s265
    %s280 = sphi 0, %s266
    %s284 = sphi 0, %s284
    %s286 = sphi 0, %s284
    %s287 = sphi 0, %s286
    %s301 = sphi 0, %s287
    %s307 = sphi 0, %s309
    %s310 = sphi 0, %s307
    %s311 = sphi 0, %s310
    %s327 = sphi 0, %s311
  $region4: #{vit_forward.5} parent=0 // loop_header_branch
    %22 = sbr.rel (%p20) target = $region8
  $region5: #{vit_forward.5} parent=0 // loop_body
    %s24 = ssub.s32 %s19, 1
    %s25 = ssub.s32 %s19, 2
    %s26 = sadd.s32 %s19, 1
    %s27 = ssub.s32 %s19, %s26
    %p28 = scmp.eq.s32.totalorder %s27, 0
    %s30 = sadd.s32 %s29, 1
    %s31 = scalar_select %p28, %s29, %s30
    %p34 = pneg %p28
    %p35 = scmp.eq.s32.totalorder %s19, 1
    %p36 = por %p34, %p35
    %p37 = scmp.ne.s32.totalorder %s29, %s32
    %p38 = scmp.eq.s32.totalorder %s19, 0
    %p39 = por %p37, %p38
    %p40 = scmp.ne.s32.totalorder %s29, %s32
    %p41 = scmp.eq.s32.totalorder %s24, 1
    %p42 = por %p40, %p41
    %p43 = scmp.ne.s32.totalorder %s32, %s33
    %p44 = scmp.eq.s32.totalorder %s24, 0
    %p45 = por %p43, %p44
    %p46 = scmp.ne.s32.totalorder %s32, %s33
    %p47 = scmp.eq.s32.totalorder %s25, 1
    %p48 = por %p46, %p47
    %p50 = scmp.ne.s32.totalorder %s33, %s49
    %p51 = scmp.eq.s32.totalorder %s25, 0
    %p52 = por %p50, %p51
    %s54 = sadd.s32 %s53, 1
    %p57 = scmp.eq.s32.totalorder %s19, 1
    %p58 = scmp.ne.s32.totalorder %s53, %s55
    %p59 = scmp.eq.s32.totalorder %s19, 0
    %p60 = por %p58, %p59
    %p61 = scmp.ne.s32.totalorder %s53, %s55
    %p62 = scmp.eq.s32.totalorder %s24, 1
    %p63 = por %p61, %p62
    %p64 = scmp.ne.s32.totalorder %s55, %s56
    %p65 = scmp.eq.s32.totalorder %s24, 0
    %p66 = por %p64, %p65
    %p67 = scmp.ne.s32.totalorder %s55, %s56
    %p68 = scmp.eq.s32.totalorder %s25, 1
    %p69 = por %p67, %p68
    %p71 = scmp.ne.s32.totalorder %s56, %s70
    %p72 = scmp.eq.s32.totalorder %s25, 0
    %p73 = por %p71, %p72
    %s75 = sadd.s32 %s74, 1
    %p78 = scmp.eq.s32.totalorder %s19, 1
    %p79 = scmp.ne.s32.totalorder %s74, %s76
    %p80 = scmp.eq.s32.totalorder %s19, 0
    %p81 = por %p79, %p80
    %p82 = scmp.ne.s32.totalorder %s74, %s76
    %p83 = scmp.eq.s32.totalorder %s24, 1
    %p84 = por %p82, %p83
    %p85 = scmp.ne.s32.totalorder %s76, %s77
    %p86 = scmp.eq.s32.totalorder %s24, 0
    %p87 = por %p85, %p86
    %p88 = scmp.ne.s32.totalorder %s76, %s77
    %p89 = scmp.eq.s32.totalorder %s25, 1
    %p90 = por %p88, %p89
    %p92 = scmp.ne.s32.totalorder %s77, %s91
    %p93 = scmp.eq.s32.totalorder %s25, 0
    %p94 = por %p92, %p93
    %s96 = sadd.s32 %s95, 1
    %p99 = scmp.eq.s32.totalorder %s19, 1
    %p100 = scmp.ne.s32.totalorder %s95, %s97
    %p101 = scmp.eq.s32.totalorder %s19, 0
    %p102 = por %p100, %p101
    %p103 = scmp.ne.s32.totalorder %s95, %s97
    %p104 = scmp.eq.s32.totalorder %s24, 1
    %p105 = por %p103, %p104
    %p106 = scmp.ne.s32.totalorder %s97, %s98
    %p107 = scmp.eq.s32.totalorder %s24, 0
    %p108 = por %p106, %p107
    %p109 = scmp.ne.s32.totalorder %s97, %s98
    %p110 = scmp.eq.s32.totalorder %s25, 1
    %p111 = por %p109, %p110
    %p113 = scmp.ne.s32.totalorder %s98, %s112
    %p114 = scmp.eq.s32.totalorder %s25, 0
    %p115 = por %p113, %p114
    %s117 = sadd.s32 %s116, 1
    %p120 = scmp.eq.s32.totalorder %s19, 1
    %p121 = scmp.ne.s32.totalorder %s116, %s118
    %p122 = scmp.eq.s32.totalorder %s19, 0
    %p123 = por %p121, %p122
    %p124 = scmp.ne.s32.totalorder %s116, %s118
    %p125 = scmp.eq.s32.totalorder %s24, 1
    %p126 = por %p124, %p125
    %p127 = scmp.ne.s32.totalorder %s118, %s119
    %p128 = scmp.eq.s32.totalorder %s24, 0
    %p129 = por %p127, %p128
    %p130 = scmp.ne.s32.totalorder %s118, %s119
    %p131 = scmp.eq.s32.totalorder %s25, 1
    %p132 = por %p130, %p131
    %p134 = scmp.ne.s32.totalorder %s119, %s133
    %p135 = scmp.eq.s32.totalorder %s25, 0
    %p136 = por %p134, %p135
    %s138 = sadd.s32 %s137, 1
    %p141 = scmp.eq.s32.totalorder %s19, 1
    %p142 = scmp.ne.s32.totalorder %s137, %s139
    %p143 = scmp.eq.s32.totalorder %s19, 0
    %p144 = por %p142, %p143
    %p145 = scmp.ne.s32.totalorder %s137, %s139
    %p146 = scmp.eq.s32.totalorder %s24, 1
    %p147 = por %p145, %p146
    %p148 = scmp.ne.s32.totalorder %s139, %s140
    %p149 = scmp.eq.s32.totalorder %s24, 0
    %p150 = por %p148, %p149
    %p151 = scmp.ne.s32.totalorder %s139, %s140
    %p152 = scmp.eq.s32.totalorder %s25, 1
    %p153 = por %p151, %p152
    %p155 = scmp.ne.s32.totalorder %s140, %s154
    %p156 = scmp.eq.s32.totalorder %s25, 0
    %p157 = por %p155, %p156
    %s159 = sadd.s32 %s158, 1
    %p162 = scmp.eq.s32.totalorder %s19, 1
    %p163 = scmp.ne.s32.totalorder %s158, %s160
    %p164 = scmp.eq.s32.totalorder %s19, 0
    %p165 = por %p163, %p164
    %p166 = scmp.ne.s32.totalorder %s158, %s160
    %p167 = scmp.eq.s32.totalorder %s24, 1
    %p168 = por %p166, %p167
    %p169 = scmp.ne.s32.totalorder %s160, %s161
    %p170 = scmp.eq.s32.totalorder %s24, 0
    %p171 = por %p169, %p170
    %p172 = scmp.ne.s32.totalorder %s160, %s161
    %p173 = scmp.eq.s32.totalorder %s25, 1
    %p174 = por %p172, %p173
    %p176 = scmp.ne.s32.totalorder %s161, %s175
    %p177 = scmp.eq.s32.totalorder %s25, 0
    %p178 = por %p176, %p177
    %s180 = sadd.s32 %s179, 1
    %p183 = scmp.eq.s32.totalorder %s19, 1
    %p184 = scmp.ne.s32.totalorder %s179, %s181
    %p185 = scmp.eq.s32.totalorder %s19, 0
    %p186 = por %p184, %p185
    %p187 = scmp.ne.s32.totalorder %s179, %s181
    %p188 = scmp.eq.s32.totalorder %s24, 1
    %p189 = por %p187, %p188
    %p190 = scmp.ne.s32.totalorder %s181, %s182
    %p191 = scmp.eq.s32.totalorder %s24, 0
    %p192 = por %p190, %p191
    %p193 = scmp.ne.s32.totalorder %s181, %s182
    %p194 = scmp.eq.s32.totalorder %s25, 1
    %p195 = por %p193, %p194
    %p197 = scmp.ne.s32.totalorder %s182, %s196
    %p198 = scmp.eq.s32.totalorder %s25, 0
    %p199 = por %p197, %p198
    %s201 = sadd.s32 %s200, 1
    %p204 = scmp.eq.s32.totalorder %s19, 1
    %p205 = scmp.ne.s32.totalorder %s200, %s202
    %p206 = scmp.eq.s32.totalorder %s19, 0
    %p207 = por %p205, %p206
    %p208 = scmp.ne.s32.totalorder %s200, %s202
    %p209 = scmp.eq.s32.totalorder %s24, 1
    %p210 = por %p208, %p209
    %p211 = scmp.ne.s32.totalorder %s202, %s203
    %p212 = scmp.eq.s32.totalorder %s24, 0
    %p213 = por %p211, %p212
    %p214 = scmp.ne.s32.totalorder %s202, %s203
    %p215 = scmp.eq.s32.totalorder %s25, 1
    %p216 = por %p214, %p215
    %p218 = scmp.ne.s32.totalorder %s203, %s217
    %p219 = scmp.eq.s32.totalorder %s25, 0
    %p220 = por %p218, %p219
    %s222 = sadd.s32 %s221, 1
    %p225 = scmp.eq.s32.totalorder %s19, 1
    %p226 = scmp.ne.s32.totalorder %s221, %s223
    %p227 = scmp.eq.s32.totalorder %s19, 0
    %p228 = por %p226, %p227
    %p229 = scmp.ne.s32.totalorder %s221, %s223
    %p230 = scmp.eq.s32.totalorder %s24, 1
    %p231 = por %p229, %p230
    %p232 = scmp.ne.s32.totalorder %s223, %s224
    %p233 = scmp.eq.s32.totalorder %s24, 0
    %p234 = por %p232, %p233
    %p235 = scmp.ne.s32.totalorder %s223, %s224
    %p236 = scmp.eq.s32.totalorder %s25, 1
    %p237 = por %p235, %p236
    %p239 = scmp.ne.s32.totalorder %s224, %s238
    %p240 = scmp.eq.s32.totalorder %s25, 0
    %p241 = por %p239, %p240
    %s243 = sadd.s32 %s242, 1
    %p246 = scmp.eq.s32.totalorder %s19, 1
    %p247 = scmp.ne.s32.totalorder %s242, %s244
    %p248 = scmp.eq.s32.totalorder %s19, 0
    %p249 = por %p247, %p248
    %p250 = scmp.ne.s32.totalorder %s242, %s244
    %p251 = scmp.eq.s32.totalorder %s24, 1
    %p252 = por %p250, %p251
    %p253 = scmp.ne.s32.totalorder %s244, %s245
    %p254 = scmp.eq.s32.totalorder %s24, 0
    %p255 = por %p253, %p254
    %p256 = scmp.ne.s32.totalorder %s244, %s245
    %p257 = scmp.eq.s32.totalorder %s25, 1
    %p258 = por %p256, %p257
    %p260 = scmp.ne.s32.totalorder %s245, %s259
    %p261 = scmp.eq.s32.totalorder %s25, 0
    %p262 = por %p260, %p261
    %s264 = sadd.s32 %s263, 1
    %p267 = scmp.eq.s32.totalorder %s19, 1
    %p268 = scmp.ne.s32.totalorder %s263, %s265
    %p269 = scmp.eq.s32.totalorder %s19, 0
    %p270 = por %p268, %p269
    %p271 = scmp.ne.s32.totalorder %s263, %s265
    %p272 = scmp.eq.s32.totalorder %s24, 1
    %p273 = por %p271, %p272
    %p274 = scmp.ne.s32.totalorder %s265, %s266
    %p275 = scmp.eq.s32.totalorder %s24, 0
    %p276 = por %p274, %p275
    %p277 = scmp.ne.s32.totalorder %s265, %s266
    %p278 = scmp.eq.s32.totalorder %s25, 1
    %p279 = por %p277, %p278
    %p281 = scmp.ne.s32.totalorder %s266, %s280
    %p282 = scmp.eq.s32.totalorder %s25, 0
    %p283 = por %p281, %p282
    %s285 = sadd.s32 %s284, 1
    %p288 = scmp.eq.s32.totalorder %s19, 1
    %p289 = scmp.ne.s32.totalorder %s284, %s286
    %p290 = scmp.eq.s32.totalorder %s19, 0
    %p291 = por %p289, %p290
    %p292 = scmp.ne.s32.totalorder %s284, %s286
    %p293 = scmp.eq.s32.totalorder %s24, 1
    %p294 = por %p292, %p293
    %p295 = scmp.ne.s32.totalorder %s286, %s287
    %p296 = scmp.eq.s32.totalorder %s24, 0
    %p297 = por %p295, %p296
    %p298 = scmp.ne.s32.totalorder %s286, %s287
    %p299 = scmp.eq.s32.totalorder %s25, 1
    %p300 = por %p298, %p299
    %p302 = scmp.ne.s32.totalorder %s287, %s301
    %p303 = scmp.eq.s32.totalorder %s25, 0
    %p304 = por %p302, %p303
    %s305 = ssub.s32 %s19, %s26
    %p306 = scmp.eq.s32.totalorder %s305, 0
    %s308 = sadd.s32 %s307, 1
    %s309 = scalar_select %p306, %s307, %s308
    %p312 = pneg %p306
    %p313 = scmp.eq.s32.totalorder %s19, 1
    %p314 = por %p312, %p313
    %p315 = scmp.ne.s32.totalorder %s307, %s310
    %p316 = scmp.eq.s32.totalorder %s19, 0
    %p317 = por %p315, %p316
    %p318 = scmp.ne.s32.totalorder %s307, %s310
    %p319 = scmp.eq.s32.totalorder %s24, 1
    %p320 = por %p318, %p319
    %p321 = scmp.ne.s32.totalorder %s310, %s311
    %p322 = scmp.eq.s32.totalorder %s24, 0
    %p323 = por %p321, %p322
    %p324 = scmp.ne.s32.totalorder %s310, %s311
    %p325 = scmp.eq.s32.totalorder %s25, 1
    %p326 = por %p324, %p325
    %p328 = scmp.ne.s32.totalorder %s311, %s327
    %p329 = scmp.eq.s32.totalorder %s25, 0
    %p330 = por %p328, %p329
    %p331 = scmp.le.s32.totalorder 1, %s19
    %p332 = scmp.lt.s32.totalorder %s19, 3
    %p333 = pnand %p331, %p332
    %p334 = pneg %p333
    // Predicated region
    $region9: #{vit_forward.5} parent=5 // pred_check
      _
    $region10: #{vit_forward.5} parent=5 // pred_check_branch
      %336 = sbr.rel (%p333) target = $region12
    $region11: #{vit_forward.5} parent=5 // pred_region
      %s337 = ssub.s32 %s19, 1
      // Predicated region
      $region13: #{vit_forward.5} parent=11 // pred_check
        %p338 = pneg %p66
      $region14: #{vit_forward.5} parent=11 // pred_check_branch
        %340 = sbr.rel (%p338) target = $region16
      $region15: #{vit_forward.5} parent=11 // pred_region
        _
      $region16: #{vit_forward.5} parent=11 // pred_fallthru
        _
      // Predicated region
      $region17: #{vit_forward.5} parent=11 // pred_check
        %p341 = pneg %p87
      $region18: #{vit_forward.5} parent=11 // pred_check_branch
        %343 = sbr.rel (%p341) target = $region20
      $region19: #{vit_forward.5} parent=11 // pred_region
        _
      $region20: #{vit_forward.5} parent=11 // pred_fallthru
        _
      // Predicated region
      $region21: #{vit_forward.5} parent=11 // pred_check
        %p344 = pneg %p108
      $region22: #{vit_forward.5} parent=11 // pred_check_branch
        %346 = sbr.rel (%p344) target = $region24
      $region23: #{vit_forward.5} parent=11 // pred_region
        _
      $region24: #{vit_forward.5} parent=11 // pred_fallthru
        _
      // Predicated region
      $region25: #{vit_forward.5} parent=11 // pred_check
        %p347 = pneg %p129
      $region26: #{vit_forward.5} parent=11 // pred_check_branch
        %349 = sbr.rel (%p347) target = $region28
      $region27: #{vit_forward.5} parent=11 // pred_region
        _
      $region28: #{vit_forward.5} parent=11 // pred_fallthru
        _
      // Predicated region
      $region29: #{vit_forward.5} parent=11 // pred_check
        %p350 = pneg %p150
      $region30: #{vit_forward.5} parent=11 // pred_check_branch
        %352 = sbr.rel (%p350) target = $region32
      $region31: #{vit_forward.5} parent=11 // pred_region
        _
      $region32: #{vit_forward.5} parent=11 // pred_fallthru
        _
      // Predicated region
      $region33: #{vit_forward.5} parent=11 // pred_check
        %p353 = pneg %p171
      $region34: #{vit_forward.5} parent=11 // pred_check_branch
        %355 = sbr.rel (%p353) target = $region36
      $region35: #{vit_forward.5} parent=11 // pred_region
        _
      $region36: #{vit_forward.5} parent=11 // pred_fallthru
        _
      // Predicated region
      $region37: #{vit_forward.5} parent=11 // pred_check
        %p356 = pneg %p192
      $region38: #{vit_forward.5} parent=11 // pred_check_branch
        %358 = sbr.rel (%p356) target = $region40
      $region39: #{vit_forward.5} parent=11 // pred_region
        _
      $region40: #{vit_forward.5} parent=11 // pred_fallthru
        _
      // Predicated region
      $region41: #{vit_forward.5} parent=11 // pred_check
        %p359 = pneg %p213
      $region42: #{vit_forward.5} parent=11 // pred_check_branch
        %361 = sbr.rel (%p359) target = $region44
      $region43: #{vit_forward.5} parent=11 // pred_region
        _
      $region44: #{vit_forward.5} parent=11 // pred_fallthru
        _
      // Predicated region
      $region45: #{vit_forward.5} parent=11 // pred_check
        %p362 = pneg %p234
      $region46: #{vit_forward.5} parent=11 // pred_check_branch
        %364 = sbr.rel (%p362) target = $region48
      $region47: #{vit_forward.5} parent=11 // pred_region
        _
      $region48: #{vit_forward.5} parent=11 // pred_fallthru
        _
      // Predicated region
      $region49: #{vit_forward.5} parent=11 // pred_check
        %p365 = pneg %p255
      $region50: #{vit_forward.5} parent=11 // pred_check_branch
        %367 = sbr.rel (%p365) target = $region52
      $region51: #{vit_forward.5} parent=11 // pred_region
        _
      $region52: #{vit_forward.5} parent=11 // pred_fallthru
        _
      // Predicated region
      $region53: #{vit_forward.5} parent=11 // pred_check
        %p368 = pneg %p276
      $region54: #{vit_forward.5} parent=11 // pred_check_branch
        %370 = sbr.rel (%p368) target = $region56
      $region55: #{vit_forward.5} parent=11 // pred_region
        _
      $region56: #{vit_forward.5} parent=11 // pred_fallthru
        _
      // Predicated region
      $region57: #{vit_forward.5} parent=11 // pred_check
        %p371 = pneg %p297
      $region58: #{vit_forward.5} parent=11 // pred_check_branch
        %373 = sbr.rel (%p371) target = $region60
      $region59: #{vit_forward.5} parent=11 // pred_region
        _
      $region60: #{vit_forward.5} parent=11 // pred_fallthru
        _
    $region12: #{vit_forward.5} parent=5 // pred_fallthru
      _
    %p374 = scmp.lt.s32.totalorder %s19, 2
    // Predicated region
    $region61: #{vit_forward.5} parent=5 // pred_check
      %p375 = pneg %p374
    $region62: #{vit_forward.5} parent=5 // pred_check_branch
      %377 = sbr.rel (%p375) target = $region64
    $region63: #{vit_forward.5} parent=5 // pred_region
      // Predicated region
      $region65: #{vit_forward.5} parent=63 // pred_check
        %p378 = pneg %p39
      $region66: #{vit_forward.5} parent=63 // pred_check_branch
        %380 = sbr.rel (%p378) target = $region68
      $region67: #{vit_forward.5} parent=63 // pred_region
        %p381 = scmp.lt.s32.totalorder %s19, 1
        %s382 = scalar_select %p381, %s19, 1
        %s383 = smul.addr %s382, 3
        %s384 = smul.addr %s383, 8
        %s385 = scalar_lea.vmem %s0, %s384
      $region68: #{vit_forward.5} parent=63 // pred_fallthru
        _
    $region64: #{vit_forward.5} parent=5 // pred_fallthru
      _
    %p386 = scmp.le.s32.totalorder 1, %s19
    %p387 = scmp.lt.s32.totalorder %s19, 3
    %p388 = pnand %p386, %p387
    %p389 = pneg %p388
    // Predicated region
    $region69: #{vit_forward.5} parent=5 // pred_check
      _
    $region70: #{vit_forward.5} parent=5 // pred_check_branch
      %391 = sbr.rel (%p388) target = $region72
    $region71: #{vit_forward.5} parent=5 // pred_region
      %s392 = ssub.s32 %s19, 1
      %p393 = scmp.lt.s32.totalorder %s24, 1
      %s394 = scalar_select %p393, %s24, 1
      %s395 = smul.addr %s394, 3
      %s396 = smul.addr %s395, 8
      %s397 = scalar_lea.vmem %s0, %s396
      %p398 = pneg %p45
      %p399 = pneg %p42
      %p400 = pneg %p66
      %p401 = pneg %p63
      %p402 = pneg %p87
      %p403 = pneg %p84
      %p404 = pneg %p108
      %p405 = pneg %p105
      %p406 = pneg %p129
      %p407 = pneg %p126
      %p408 = pneg %p150
      %p409 = pneg %p147
      %p410 = pneg %p171
      %p411 = pneg %p168
      %p412 = pneg %p192
      %p413 = pneg %p189
      %p414 = pneg %p213
      %p415 = pneg %p210
      %p416 = pneg %p234
      %p417 = pneg %p231
      %p418 = pneg %p255
      %p419 = pneg %p252
      %p420 = pneg %p276
      %p421 = pneg %p273
      %p422 = pneg %p297
      %p423 = pneg %p294
      %p424 = pneg %p323
      %p425 = pneg %p320
      %p426 = scmp.lt.s32.totalorder %s24, 1
      %s427 = scalar_select %p426, %s24, 1
      %s428 = smul.addr %s427, 3
      %s429 = smul.addr %s428, 8
      %s430 = scalar_lea.vmem %s13, %s429
      %p431 = scmp.lt.s32.totalorder %s24, 1
      %s432 = scalar_select %p431, %s24, 1
      %s433 = smul.addr %s432, 3
      %s434 = smul.addr %s433, 8
      %s435 = scalar_lea.vmem %s0, %s434
      %p436 = scmp.lt.s32.totalorder %s24, 1
      %s437 = scalar_select %p436, %s24, 1
      %s438 = smul.addr %s437, 3
      %s439 = smul.addr %s438, 8
      %s440 = scalar_lea.vmem %s13, %s439
      %v442 = vld [vmem:[%s435] sm:$0xff]
      %v443 = vld [vmem:[%s435 + $0x8] sm:$0xff]
      %v444 = vld [vmem:[%s435 + $0x10] sm:$0x1]
      %v445 = vld [vmem:[%s3] sm:$0xf]
      %v446 = vld [vmem:[%s3 + $0x4] sm:$0xf]
      %v447 = vld [vmem:[%s3 + $0x8] sm:$0xf]
      %v448 = vld [vmem:[%s3 + $0xc] sm:$0xf]
      %v449 = vpack.c.bf16 %v443, %v442
      %v450 = vpack.c.bf16 %v444, %v444
      %v451 = vld [vmem:[%s1] sm:$0xf]
      %v452 = vld [vmem:[%s1 + $0x4] sm:$0xf]
      %v453 = vld [vmem:[%s1 + $0x8] sm:$0xf]
      %v454 = vld [vmem:[%s1 + $0xc] sm:$0xf]
      %v455 = vld [vmem:[%s2] sm:$0x1]
      %v457 = vlaneseq
      %v458 = vshrl.u32 %v457, 7
      %v459 = vsub.s32 0, %v458
      %v460 = vrot.slane %v455, %v459
      %v466 = vunpack.c.l.b16 %v451
      %v467 = vunpack.c.l.b16 %v452
      %v468 = vunpack.c.l.b16 %v453
      %v469 = vunpack.c.l.b16 %v454
      %v470 = vpack.c.b16 %v467, %v466
      %v471 = vpack.c.b16 %v469, %v468
      %vm474 = vcmask 261120
      %v476 = vsel %vm474, %v449, 0
      %v479 = vsel %vm474, %v450, 0
      %481 = vmatprep.subr.bf16.mxu0 0
      %482 = vmatpush1.bf16.msra.mxu0 0
      %483 = vmatprep.subr.bf16.mxu0 0
      %484 = vmatpush1.bf16.msra.mxu0 0
      %485 = vmatprep.subr.bf16.mxu0 0
      %486 = vmatpush1.bf16.msra.mxu0 0
      %487 = vmatprep.subr.bf16.mxu0 0
      %488 = vmatpush1.bf16.msra.mxu0 0
      %489 = vmatprep.subr.bf16.mxu0 0
      %490 = vmatpush1.bf16.msra.mxu0 0
      %491 = vmatprep.subr.bf16.mxu0 0
      %492 = vmatpush1.bf16.msra.mxu0 0
      %493 = vmatprep.subr.bf16.mxu0 0
      %494 = vmatpush1.bf16.msra.mxu0 %v471
      %495 = vmatprep.subr.bf16.mxu0 0
      %496 = vmatpush1.bf16.msra.mxu0 %v470
      %497 = vmatprep.subr.bf16.mxu0 0
      %498 = vmatpush2.bf16.msra.mxu0 0
      %499 = vmatprep.subr.bf16.mxu0 0
      %500 = vmatpush2.bf16.msra.mxu0 0
      %501 = vmatprep.subr.bf16.mxu0 0
      %502 = vmatpush2.bf16.msra.mxu0 0
      %503 = vmatprep.subr.bf16.mxu0 0
      %504 = vmatpush2.bf16.msra.mxu0 0
      %505 = vmatprep.subr.bf16.mxu0 0
      %506 = vmatpush2.bf16.msra.mxu0 0
      %507 = vmatprep.subr.bf16.mxu0 0
      %508 = vmatpush2.bf16.msra.mxu0 0
      %509 = vmatprep.subr.bf16.mxu0 0
      %510 = vmatpush2.bf16.msra.mxu0 0
      %511 = vmatprep.subr.bf16.mxu0 0
      %512 = vmatpush2.bf16.msra.mxu0 0
      %513 = vmatprep.mubr.bf16.mxu0 0
      %514 = vmatmul.mubr.bf16.gmra.mxu0 %v476
      %v515 = vpop.f32.mrf.mxu0
      %v516 = vadd.f32 %v460, %v515
      %v517 = vpop.f32.mrf.mxu0
      %v518 = vpop.f32.mrf.mxu0
      %v519 = vadd.f32 %v460, %v518
      %v520 = vpop.f32.mrf.mxu0
      %521 = vmatprep.mubr.bf16.mxu0 0
      %522 = vmatmul.mubr.bf16.gmra.mxu0 %v479
      %v523 = vpop.f32.mrf.mxu0
      %v524 = vadd.f32 %v460, %v523
      %v525 = vpop.f32.mrf.mxu0
      %v526 = vpop.f32.mrf.mxu0
      %v527 = vpop.f32.mrf.mxu0
      %528 = vdwg.mxu0
      %v529 = vpack.c.bf16 %v519, %v516
      %v530 = vpack.c.bf16 %v524, %v524
      %533 = vrot.lane.b32.xlu0 %v529, 96
      %v534 = vpop.permute.xlu0 %533
      %535 = vrot.lane.b32.xlu0 %v530, 96
      %v536 = vpop.permute.xlu0 %535
      %vm537 = vcmask 64512
      %v539 = vsel %vm537, %v529, 0
      %v542 = vsel %vm537, %v530, 0
      %v545 = vsel %vm537, %v534, 0
      %v548 = vsel %vm537, %v536, 0
      %550 = vmatprep.subr.bf16.mxu0 0
      %551 = vmatpush1.bf16.xpose.msra.mxu0 0
      %552 = vmatprep.subr.bf16.mxu0 0
      %553 = vmatpush1.bf16.xpose.msra.mxu0 0
      %554 = vmatprep.subr.bf16.mxu0 0
      %555 = vmatpush1.bf16.xpose.msra.mxu0 0
      %556 = vmatprep.subr.bf16.mxu0 0
      %557 = vmatpush1.bf16.xpose.msra.mxu0 0
      %558 = vmatprep.subr.bf16.mxu0 0
      %559 = vmatpush1.bf16.xpose.msra.mxu0 0
      %560 = vmatprep.subr.bf16.mxu0 0
      %561 = vmatpush1.bf16.xpose.msra.mxu0 0
      %562 = vmatprep.subr.bf16.mxu0 0
      %563 = vmatpush1.bf16.xpose.msra.mxu0 %v548
      %564 = vmatprep.subr.bf16.mxu0 0
      %565 = vmatpush1.bf16.xpose.msra.mxu0 %v545
      %566 = vmatprep.subr.bf16.mxu0 0
      %567 = vmatpush2.bf16.xpose.msra.mxu0 0
      %568 = vmatprep.subr.bf16.mxu0 0
      %569 = vmatpush2.bf16.xpose.msra.mxu0 0
      %570 = vmatprep.subr.bf16.mxu0 0
      %571 = vmatpush2.bf16.xpose.msra.mxu0 0
      %572 = vmatprep.subr.bf16.mxu0 0
      %573 = vmatpush2.bf16.xpose.msra.mxu0 0
      %574 = vmatprep.subr.bf16.mxu0 0
      %575 = vmatpush2.bf16.xpose.msra.mxu0 0
      %576 = vmatprep.subr.bf16.mxu0 0
      %577 = vmatpush2.bf16.xpose.msra.mxu0 0
      %578 = vmatprep.subr.bf16.mxu0 0
      %579 = vmatpush2.bf16.xpose.msra.mxu0 0
      %580 = vmatprep.subr.bf16.mxu0 0
      %581 = vmatpush2.bf16.xpose.msra.mxu0 0
      %582 = vmatprep.mubr.bf16.mxu0 0
      %583 = vmatmul.mubr.bf16.gmra.mxu0 %v539
      %v584 = vpop.f32.mrf.mxu0
      %v585 = vadd.f32 0.0, %v584
      %v586 = vpop.f32.mrf.mxu0
      %v587 = vpop.f32.mrf.mxu0
      %v588 = vadd.f32 0.0, %v587
      %v589 = vpop.f32.mrf.mxu0
      %590 = vmatprep.mubr.bf16.mxu0 0
      %591 = vmatmul.mubr.bf16.gmra.mxu0 %v542
      %v592 = vpop.f32.mrf.mxu0
      %v593 = vadd.f32 0.0, %v592
      %v594 = vpop.f32.mrf.mxu0
      %v595 = vpop.f32.mrf.mxu0
      %v596 = vpop.f32.mrf.mxu0
      %597 = vdwg.mxu0
      %v598 = vmul.f32 %v585, 0.35355338
      %v599 = vmul.f32 %v588, 0.35355338
      %v600 = vmul.f32 %v593, 0.35355338
      %vm601 = vcmask 138240
      %v602 = vsel %vm601, %v598, -inf
      %603 = vmax.xlane.f32.xlu0 %v602
      %v604 = vpop.xlane.xlu0 %603
      %v605 = vsel %vm601, %v599, -inf
      %606 = vmax.xlane.f32.xlu0 %v605
      %v607 = vpop.xlane.xlu0 %606
      %vm608 = vcmask 131072
      %v609 = vsel %vm608, %v600, -inf
      %610 = vmax.xlane.f32.xlu0 %v609
      %v611 = vpop.xlane.xlu0 %610
      %v612 = vsub.f32 %v598, %v604
      %v613 = vsub.f32 %v599, %v607
      %v614 = vsub.f32 %v600, %v611
      %v615 = vmul.f32 %v612, 1.442695
      %v616 = vpow.pop %v615
      %v617 = vmul.f32 %v613, 1.442695
      %v618 = vpow.pop %v617
      %v619 = vmul.f32 %v614, 1.442695
      %v620 = vpow.pop %v619
      %v621 = vsel %vm601, %v616, 0.0
      %622 = vadd.xlane.f32.xlu0 %v621
      %v623 = vpop.xlane.xlu0 %622
      %v624 = vsel %vm601, %v618, 0.0
      %625 = vadd.xlane.f32.xlu0 %v624
      %v626 = vpop.xlane.xlu0 %625
      %v627 = vsel %vm608, %v620, 0.0
      %628 = vadd.xlane.f32.xlu0 %v627
      %v629 = vpop.xlane.xlu0 %628
      %v630 = vrcp.pop %v623
      %v631 = vrcp.pop %v626
      %v632 = vrcp.pop %v629
      %v633 = vmul.f32 %v616, %v630
      %v634 = vmul.f32 %v618, %v631
      %v635 = vmul.f32 %v620, %v632
      %v636 = vpack.c.bf16 %v634, %v633
      %v637 = vpack.c.bf16 %v635, %v635
      %638 = vrot.lane.b32.xlu0 %v529, 64
      %v639 = vpop.permute.xlu0 %638
      %640 = vrot.lane.b32.xlu0 %v530, 64
      %v641 = vpop.permute.xlu0 %640
      %v644 = vsel %vm601, %v636, 0
      %v647 = vsel %vm601, %v637, 0
      %vm649 = vcmask 1040384
      %v650 = vsel 0, 4294967295, 65535
      %v651 = vsel %vm649, %v650, 0
      %v653 = vand.u32 %v641, %v651
      %655 = vmatprep.subr.bf16.mxu0 0
      %656 = vmatpush1.bf16.msra.mxu0 0
      %657 = vmatprep.subr.bf16.mxu0 0
      %658 = vmatpush1.bf16.msra.mxu0 0
      %659 = vmatprep.subr.bf16.mxu0 0
      %660 = vmatpush1.bf16.msra.mxu0 0
      %661 = vmatprep.subr.bf16.mxu0 0
      %662 = vmatpush1.bf16.msra.mxu0 0
      %663 = vmatprep.subr.bf16.mxu0 0
      %664 = vmatpush1.bf16.msra.mxu0 0
      %665 = vmatprep.subr.bf16.mxu0 0
      %666 = vmatpush1.bf16.msra.mxu0 0
      %667 = vmatprep.subr.bf16.mxu0 0
      %668 = vmatpush1.bf16.msra.mxu0 %v653
      %669 = vmatprep.subr.bf16.mxu0 0
      %670 = vmatpush1.bf16.msra.mxu0 %v639
      %671 = vmatprep.subr.bf16.mxu0 0
      %672 = vmatpush2.bf16.msra.mxu0 0
      %673 = vmatprep.subr.bf16.mxu0 0
      %674 = vmatpush2.bf16.msra.mxu0 0
      %675 = vmatprep.subr.bf16.mxu0 0
      %676 = vmatpush2.bf16.msra.mxu0 0
      %677 = vmatprep.subr.bf16.mxu0 0
      %678 = vmatpush2.bf16.msra.mxu0 0
      %679 = vmatprep.subr.bf16.mxu0 0
      %680 = vmatpush2.bf16.msra.mxu0 0
      %681 = vmatprep.subr.bf16.mxu0 0
      %682 = vmatpush2.bf16.msra.mxu0 0
      %683 = vmatprep.subr.bf16.mxu0 0
      %684 = vmatpush2.bf16.msra.mxu0 0
      %685 = vmatprep.subr.bf16.mxu0 0
      %686 = vmatpush2.bf16.msra.mxu0 0
      %687 = vmatprep.mubr.bf16.mxu0 0
      %688 = vmatmul.mubr.bf16.gmra.mxu0 %v644
      %v689 = vpop.f32.mrf.mxu0
      %v690 = vadd.f32 0.0, %v689
      %v691 = vpop.f32.mrf.mxu0
      %v692 = vpop.f32.mrf.mxu0
      %v693 = vadd.f32 0.0, %v692
      %v694 = vpop.f32.mrf.mxu0
      %695 = vmatprep.mubr.bf16.mxu0 0
      %696 = vmatmul.mubr.bf16.gmra.mxu0 %v647
      %v697 = vpop.f32.mrf.mxu0
      %v698 = vadd.f32 0.0, %v697
      %v699 = vpop.f32.mrf.mxu0
      %v700 = vpop.f32.mrf.mxu0
      %v701 = vpop.f32.mrf.mxu0
      %702 = vdwg.mxu0
      %v703 = vpack.c.bf16 %v693, %v690
      %v704 = vpack.c.bf16 %v698, %v698
      %705 = vrot.lane.b32.xlu0 %v529, 120
      %v706 = vpop.permute.xlu0 %705
      %707 = vrot.lane.b32.xlu0 %v530, 120
      %v708 = vpop.permute.xlu0 %707
      %709 = vrot.lane.b32.xlu0 %v529, 88
      %v710 = vpop.permute.xlu0 %709
      %711 = vrot.lane.b32.xlu0 %v530, 88
      %v712 = vpop.permute.xlu0 %711
      %v714 = vsel %vm537, %v706, 0
      %v717 = vsel %vm537, %v708, 0
      %v720 = vsel %vm537, %v710, 0
      %v723 = vsel %vm537, %v712, 0
      %725 = vmatprep.subr.bf16.mxu0 0
      %726 = vmatpush1.bf16.xpose.msra.mxu0 0
      %727 = vmatprep.subr.bf16.mxu0 0
      %728 = vmatpush1.bf16.xpose.msra.mxu0 0
      %729 = vmatprep.subr.bf16.mxu0 0
      %730 = vmatpush1.bf16.xpose.msra.mxu0 0
      %731 = vmatprep.subr.bf16.mxu0 0
      %732 = vmatpush1.bf16.xpose.msra.mxu0 0
      %733 = vmatprep.subr.bf16.mxu0 0
      %734 = vmatpush1.bf16.xpose.msra.mxu0 0
      %735 = vmatprep.subr.bf16.mxu0 0
      %736 = vmatpush1.bf16.xpose.msra.mxu0 0
      %737 = vmatprep.subr.bf16.mxu0 0
      %738 = vmatpush1.bf16.xpose.msra.mxu0 %v723
      %739 = vmatprep.subr.bf16.mxu0 0
      %740 = vmatpush1.bf16.xpose.msra.mxu0 %v720
      %741 = vmatprep.subr.bf16.mxu0 0
      %742 = vmatpush2.bf16.xpose.msra.mxu0 0
      %743 = vmatprep.subr.bf16.mxu0 0
      %744 = vmatpush2.bf16.xpose.msra.mxu0 0
      %745 = vmatprep.subr.bf16.mxu0 0
      %746 = vmatpush2.bf16.xpose.msra.mxu0 0
      %747 = vmatprep.subr.bf16.mxu0 0
      %748 = vmatpush2.bf16.xpose.msra.mxu0 0
      %749 = vmatprep.subr.bf16.mxu0 0
      %750 = vmatpush2.bf16.xpose.msra.mxu0 0
      %751 = vmatprep.subr.bf16.mxu0 0
      %752 = vmatpush2.bf16.xpose.msra.mxu0 0
      %753 = vmatprep.subr.bf16.mxu0 0
      %754 = vmatpush2.bf16.xpose.msra.mxu0 0
      %755 = vmatprep.subr.bf16.mxu0 0
      %756 = vmatpush2.bf16.xpose.msra.mxu0 0
      %757 = vmatprep.mubr.bf16.mxu0 0
      %758 = vmatmul.mubr.bf16.gmra.mxu0 %v714
      %v759 = vpop.f32.mrf.mxu0
      %v760 = vadd.f32 0.0, %v759
      %v761 = vpop.f32.mrf.mxu0
      %v762 = vpop.f32.mrf.mxu0
      %v763 = vadd.f32 0.0, %v762
      %v764 = vpop.f32.mrf.mxu0
      %765 = vmatprep.mubr.bf16.mxu0 0
      %766 = vmatmul.mubr.bf16.gmra.mxu0 %v717
      %v767 = vpop.f32.mrf.mxu0
      %v768 = vadd.f32 0.0, %v767
      %v769 = vpop.f32.mrf.mxu0
      %v770 = vpop.f32.mrf.mxu0
      %v771 = vpop.f32.mrf.mxu0
      %772 = vdwg.mxu0
      %v773 = vmul.f32 %v760, 0.35355338
      %v774 = vmul.f32 %v763, 0.35355338
      %v775 = vmul.f32 %v768, 0.35355338
      %v776 = vsel %vm601, %v773, -inf
      %777 = vmax.xlane.f32.xlu0 %v776
      %v778 = vpop.xlane.xlu0 %777
      %v779 = vsel %vm601, %v774, -inf
      %780 = vmax.xlane.f32.xlu0 %v779
      %v781 = vpop.xlane.xlu0 %780
      %v782 = vsel %vm608, %v775, -inf
      %783 = vmax.xlane.f32.xlu0 %v782
      %v784 = vpop.xlane.xlu0 %783
      %v785 = vsub.f32 %v773, %v778
      %v786 = vsub.f32 %v774, %v781
      %v787 = vsub.f32 %v775, %v784
      %v788 = vmul.f32 %v785, 1.442695
      %v789 = vpow.pop %v788
      %v790 = vmul.f32 %v786, 1.442695
      %v791 = vpow.pop %v790
      %v792 = vmul.f32 %v787, 1.442695
      %v793 = vpow.pop %v792
      %v794 = vsel %vm601, %v789, 0.0
      %795 = vadd.xlane.f32.xlu0 %v794
      %v796 = vpop.xlane.xlu0 %795
      %v797 = vsel %vm601, %v791, 0.0
      %798 = vadd.xlane.f32.xlu0 %v797
      %v799 = vpop.xlane.xlu0 %798
      %v800 = vsel %vm608, %v793, 0.0
      %801 = vadd.xlane.f32.xlu0 %v800
      %v802 = vpop.xlane.xlu0 %801
      %v803 = vrcp.pop %v796
      %v804 = vrcp.pop %v799
      %v805 = vrcp.pop %v802
      %v806 = vmul.f32 %v789, %v803
      %v807 = vmul.f32 %v791, %v804
      %v808 = vmul.f32 %v793, %v805
      %v809 = vpack.c.bf16 %v807, %v806
      %v810 = vpack.c.bf16 %v808, %v808
      %811 = vrot.lane.b32.xlu0 %v529, 56
      %v812 = vpop.permute.xlu0 %811
      %813 = vrot.lane.b32.xlu0 %v530, 56
      %v814 = vpop.permute.xlu0 %813
      %v817 = vsel %vm601, %v809, 0
      %v820 = vsel %vm601, %v810, 0
      %v823 = vand.u32 %v814, %v651
      %825 = vmatprep.subr.bf16.mxu0 0
      %826 = vmatpush1.bf16.msra.mxu0 0
      %827 = vmatprep.subr.bf16.mxu0 0
      %828 = vmatpush1.bf16.msra.mxu0 0
      %829 = vmatprep.subr.bf16.mxu0 0
      %830 = vmatpush1.bf16.msra.mxu0 0
      %831 = vmatprep.subr.bf16.mxu0 0
      %832 = vmatpush1.bf16.msra.mxu0 0
      %833 = vmatprep.subr.bf16.mxu0 0
      %834 = vmatpush1.bf16.msra.mxu0 0
      %835 = vmatprep.subr.bf16.mxu0 0
      %836 = vmatpush1.bf16.msra.mxu0 0
      %837 = vmatprep.subr.bf16.mxu0 0
      %838 = vmatpush1.bf16.msra.mxu0 %v823
      %839 = vmatprep.subr.bf16.mxu0 0
      %840 = vmatpush1.bf16.msra.mxu0 %v812
      %841 = vmatprep.subr.bf16.mxu0 0
      %842 = vmatpush2.bf16.msra.mxu0 0
      %843 = vmatprep.subr.bf16.mxu0 0
      %844 = vmatpush2.bf16.msra.mxu0 0
      %845 = vmatprep.subr.bf16.mxu0 0
      %846 = vmatpush2.bf16.msra.mxu0 0
      %847 = vmatprep.subr.bf16.mxu0 0
      %848 = vmatpush2.bf16.msra.mxu0 0
      %849 = vmatprep.subr.bf16.mxu0 0
      %850 = vmatpush2.bf16.msra.mxu0 0
      %851 = vmatprep.subr.bf16.mxu0 0
      %852 = vmatpush2.bf16.msra.mxu0 0
      %853 = vmatprep.subr.bf16.mxu0 0
      %854 = vmatpush2.bf16.msra.mxu0 0
      %855 = vmatprep.subr.bf16.mxu0 0
      %856 = vmatpush2.bf16.msra.mxu0 0
      %857 = vmatprep.mubr.bf16.mxu0 0
      %858 = vmatmul.mubr.bf16.gmra.mxu0 %v817
      %v859 = vpop.f32.mrf.mxu0
      %v860 = vadd.f32 0.0, %v859
      %v861 = vpop.f32.mrf.mxu0
      %v862 = vpop.f32.mrf.mxu0
      %v863 = vadd.f32 0.0, %v862
      %v864 = vpop.f32.mrf.mxu0
      %865 = vmatprep.mubr.bf16.mxu0 0
      %866 = vmatmul.mubr.bf16.gmra.mxu0 %v820
      %v867 = vpop.f32.mrf.mxu0
      %v868 = vadd.f32 0.0, %v867
      %v869 = vpop.f32.mrf.mxu0
      %v870 = vpop.f32.mrf.mxu0
      %v871 = vpop.f32.mrf.mxu0
      %872 = vdwg.mxu0
      %v873 = vpack.c.bf16 %v863, %v860
      %v874 = vpack.c.bf16 %v868, %v868
      %v876 = vsel %vm537, %v873, 0
      %v879 = vsel %vm537, %v874, 0
      %vm881 = vcmask 1043456
      %v883 = vsel %vm881, %v446, 0
      %885 = vmatprep.subr.bf16.mxu0 0
      %886 = vmatpush1.bf16.msra.mxu0 0
      %887 = vmatprep.subr.bf16.mxu0 0
      %888 = vmatpush1.bf16.msra.mxu0 0
      %889 = vmatprep.subr.bf16.mxu0 0
      %890 = vmatpush1.bf16.msra.mxu0 0
      %891 = vmatprep.subr.bf16.mxu0 0
      %892 = vmatpush1.bf16.msra.mxu0 0
      %893 = vmatprep.subr.bf16.mxu0 0
      %894 = vmatpush1.bf16.msra.mxu0 0
      %895 = vmatprep.subr.bf16.mxu0 0
      %896 = vmatpush1.bf16.msra.mxu0 0
      %897 = vmatprep.subr.bf16.mxu0 0
      %898 = vmatpush1.bf16.msra.mxu0 0
      %899 = vmatprep.subr.bf16.mxu0 0
      %900 = vmatpush1.bf16.msra.mxu0 %v883
      %901 = vmatprep.subr.bf16.mxu0 0
      %902 = vmatpush2.bf16.msra.mxu0 0
      %903 = vmatprep.subr.bf16.mxu0 0
      %904 = vmatpush2.bf16.msra.mxu0 0
      %905 = vmatprep.subr.bf16.mxu0 0
      %906 = vmatpush2.bf16.msra.mxu0 0
      %907 = vmatprep.subr.bf16.mxu0 0
      %908 = vmatpush2.bf16.msra.mxu0 0
      %909 = vmatprep.subr.bf16.mxu0 0
      %910 = vmatpush2.bf16.msra.mxu0 0
      %911 = vmatprep.subr.bf16.mxu0 0
      %912 = vmatpush2.bf16.msra.mxu0 0
      %913 = vmatprep.subr.bf16.mxu0 0
      %914 = vmatpush2.bf16.msra.mxu0 0
      %915 = vmatprep.subr.bf16.mxu0 0
      %916 = vmatpush2.bf16.msra.mxu0 0
      %917 = vmatprep.mubr.bf16.mxu0 0
      %918 = vmatmul.mubr.bf16.gmra.mxu0 %v876
      %v919 = vpop.f32.mrf.mxu0
      %v920 = vadd.f32 0.0, %v919
      %v921 = vpop.f32.mrf.mxu0
      %v922 = vpop.f32.mrf.mxu0
      %v923 = vadd.f32 0.0, %v922
      %v924 = vpop.f32.mrf.mxu0
      %925 = vmatprep.mubr.bf16.mxu0 0
      %926 = vmatmul.mubr.bf16.gmra.mxu0 %v879
      %v927 = vpop.f32.mrf.mxu0
      %v928 = vadd.f32 0.0, %v927
      %v929 = vpop.f32.mrf.mxu0
      %v930 = vpop.f32.mrf.mxu0
      %v931 = vpop.f32.mrf.mxu0
      %932 = vdwg.mxu0
      %v934 = vsel %vm537, %v703, 0
      %v937 = vsel %vm537, %v704, 0
      %v940 = vsel %vm881, %v445, 0
      %942 = vmatprep.subr.bf16.mxu0 0
      %943 = vmatpush1.bf16.msra.mxu0 0
      %944 = vmatprep.subr.bf16.mxu0 0
      %945 = vmatpush1.bf16.msra.mxu0 0
      %946 = vmatprep.subr.bf16.mxu0 0
      %947 = vmatpush1.bf16.msra.mxu0 0
      %948 = vmatprep.subr.bf16.mxu0 0
      %949 = vmatpush1.bf16.msra.mxu0 0
      %950 = vmatprep.subr.bf16.mxu0 0
      %951 = vmatpush1.bf16.msra.mxu0 0
      %952 = vmatprep.subr.bf16.mxu0 0
      %953 = vmatpush1.bf16.msra.mxu0 0
      %954 = vmatprep.subr.bf16.mxu0 0
      %955 = vmatpush1.bf16.msra.mxu0 0
      %956 = vmatprep.subr.bf16.mxu0 0
      %957 = vmatpush1.bf16.msra.mxu0 %v940
      %958 = vmatprep.subr.bf16.mxu0 0
      %959 = vmatpush2.bf16.msra.mxu0 0
      %960 = vmatprep.subr.bf16.mxu0 0
      %961 = vmatpush2.bf16.msra.mxu0 0
      %962 = vmatprep.subr.bf16.mxu0 0
      %963 = vmatpush2.bf16.msra.mxu0 0
      %964 = vmatprep.subr.bf16.mxu0 0
      %965 = vmatpush2.bf16.msra.mxu0 0
      %966 = vmatprep.subr.bf16.mxu0 0
      %967 = vmatpush2.bf16.msra.mxu0 0
      %968 = vmatprep.subr.bf16.mxu0 0
      %969 = vmatpush2.bf16.msra.mxu0 0
      %970 = vmatprep.subr.bf16.mxu0 0
      %971 = vmatpush2.bf16.msra.mxu0 0
      %972 = vmatprep.subr.bf16.mxu0 0
      %973 = vmatpush2.bf16.msra.mxu0 0
      %974 = vmatprep.mubr.bf16.mxu0 0
      %975 = vmatmul.mubr.bf16.gmra.mxu0 %v934
      %v976 = vpop.f32.mrf.mxu0
      %v977 = vadd.f32 %v920, %v976
      %v978 = vpop.f32.mrf.mxu0
      %v979 = vpop.f32.mrf.mxu0
      %v980 = vadd.f32 %v923, %v979
      %v981 = vpop.f32.mrf.mxu0
      %982 = vmatprep.mubr.bf16.mxu0 0
      %983 = vmatmul.mubr.bf16.gmra.mxu0 %v937
      %v984 = vpop.f32.mrf.mxu0
      %v985 = vadd.f32 %v928, %v984
      %v986 = vpop.f32.mrf.mxu0
      %v987 = vpop.f32.mrf.mxu0
      %v988 = vpop.f32.mrf.mxu0
      %989 = vdwg.mxu0
      %990 = vrot.lane.b32.xlu0 %v529, 112
      %v991 = vpop.permute.xlu0 %990
      %992 = vrot.lane.b32.xlu0 %v530, 112
      %v993 = vpop.permute.xlu0 %992
      %994 = vrot.lane.b32.xlu0 %v529, 80
      %v995 = vpop.permute.xlu0 %994
      %996 = vrot.lane.b32.xlu0 %v530, 80
      %v997 = vpop.permute.xlu0 %996
      %v999 = vsel %vm537, %v991, 0
      %v1002 = vsel %vm537, %v993, 0
      %v1005 = vsel %vm537, %v995, 0
      %v1008 = vsel %vm537, %v997, 0
      %1010 = vmatprep.subr.bf16.mxu0 0
      %1011 = vmatpush1.bf16.xpose.msra.mxu0 0
      %1012 = vmatprep.subr.bf16.mxu0 0
      %1013 = vmatpush1.bf16.xpose.msra.mxu0 0
      %1014 = vmatprep.subr.bf16.mxu0 0
      %1015 = vmatpush1.bf16.xpose.msra.mxu0 0
      %1016 = vmatprep.subr.bf16.mxu0 0
      %1017 = vmatpush1.bf16.xpose.msra.mxu0 0
      %1018 = vmatprep.subr.bf16.mxu0 0
      %1019 = vmatpush1.bf16.xpose.msra.mxu0 0
      %1020 = vmatprep.subr.bf16.mxu0 0
      %1021 = vmatpush1.bf16.xpose.msra.mxu0 0
      %1022 = vmatprep.subr.bf16.mxu0 0
      %1023 = vmatpush1.bf16.xpose.msra.mxu0 %v1008
      %1024 = vmatprep.subr.bf16.mxu0 0
      %1025 = vmatpush1.bf16.xpose.msra.mxu0 %v1005
      %1026 = vmatprep.subr.bf16.mxu0 0
      %1027 = vmatpush2.bf16.xpose.msra.mxu0 0
      %1028 = vmatprep.subr.bf16.mxu0 0
      %1029 = vmatpush2.bf16.xpose.msra.mxu0 0
      %1030 = vmatprep.subr.bf16.mxu0 0
      %1031 = vmatpush2.bf16.xpose.msra.mxu0 0
      %1032 = vmatprep.subr.bf16.mxu0 0
      %1033 = vmatpush2.bf16.xpose.msra.mxu0 0
      %1034 = vmatprep.subr.bf16.mxu0 0
      %1035 = vmatpush2.bf16.xpose.msra.mxu0 0
      %1036 = vmatprep.subr.bf16.mxu0 0
      %1037 = vmatpush2.bf16.xpose.msra.mxu0 0
      %1038 = vmatprep.subr.bf16.mxu0 0
      %1039 = vmatpush2.bf16.xpose.msra.mxu0 0
      %1040 = vmatprep.subr.bf16.mxu0 0
      %1041 = vmatpush2.bf16.xpose.msra.mxu0 0
      %1042 = vmatprep.mubr.bf16.mxu0 0
      %1043 = vmatmul.mubr.bf16.gmra.mxu0 %v999
      %v1044 = vpop.f32.mrf.mxu0
      %v1045 = vadd.f32 0.0, %v1044
      %v1046 = vpop.f32.mrf.mxu0
      %v1047 = vpop.f32.mrf.mxu0
      %v1048 = vadd.f32 0.0, %v1047
      %v1049 = vpop.f32.mrf.mxu0
      %1050 = vmatprep.mubr.bf16.mxu0 0
      %1051 = vmatmul.mubr.bf16.gmra.mxu0 %v1002
      %v1052 = vpop.f32.mrf.mxu0
      %v1053 = vadd.f32 0.0, %v1052
      %v1054 = vpop.f32.mrf.mxu0
      %v1055 = vpop.f32.mrf.mxu0
      %v1056 = vpop.f32.mrf.mxu0
      %1057 = vdwg.mxu0
      %v1058 = vmul.f32 %v1045, 0.35355338
      %v1059 = vmul.f32 %v1048, 0.35355338
      %v1060 = vmul.f32 %v1053, 0.35355338
      %v1061 = vsel %vm601, %v1058, -inf
      %1062 = vmax.xlane.f32.xlu0 %v1061
      %v1063 = vpop.xlane.xlu0 %1062
      %v1064 = vsel %vm601, %v1059, -inf
      %1065 = vmax.xlane.f32.xlu0 %v1064
      %v1066 = vpop.xlane.xlu0 %1065
      %v1067 = vsel %vm608, %v1060, -inf
      %1068 = vmax.xlane.f32.xlu0 %v1067
      %v1069 = vpop.xlane.xlu0 %1068
      %v1070 = vsub.f32 %v1058, %v1063
      %v1071 = vsub.f32 %v1059, %v1066
      %v1072 = vsub.f32 %v1060, %v1069
      %v1073 = vmul.f32 %v1070, 1.442695
      %v1074 = vpow.pop %v1073
      %v1075 = vmul.f32 %v1071, 1.442695
      %v1076 = vpow.pop %v1075
      %v1077 = vmul.f32 %v1072, 1.442695
      %v1078 = vpow.pop %v1077
      %v1079 = vsel %vm601, %v1074, 0.0
      %1080 = vadd.xlane.f32.xlu0 %v1079
      %v1081 = vpop.xlane.xlu0 %1080
      %v1082 = vsel %vm601, %v1076, 0.0
      %1083 = vadd.xlane.f32.xlu0 %v1082
      %v1084 = vpop.xlane.xlu0 %1083
      %v1085 = vsel %vm608, %v1078, 0.0
      %1086 = vadd.xlane.f32.xlu0 %v1085
      %v1087 = vpop.xlane.xlu0 %1086
      %v1088 = vrcp.pop %v1081
      %v1089 = vrcp.pop %v1084
      %v1090 = vrcp.pop %v1087
      %v1091 = vmul.f32 %v1074, %v1088
      %v1092 = vmul.f32 %v1076, %v1089
      %v1093 = vmul.f32 %v1078, %v1090
      %v1094 = vpack.c.bf16 %v1092, %v1091
      %v1095 = vpack.c.bf16 %v1093, %v1093
      %1096 = vrot.lane.b32.xlu0 %v529, 48
      %v1097 = vpop.permute.xlu0 %1096
      %1098 = vrot.lane.b32.xlu0 %v530, 48
      %v1099 = vpop.permute.xlu0 %1098
      %v1102 = vsel %vm601, %v1094, 0
      %v1105 = vsel %vm601, %v1095, 0
      %v1108 = vand.u32 %v1099, %v651
      %1110 = vmatprep.subr.bf16.mxu0 0
      %1111 = vmatpush1.bf16.msra.mxu0 0
      %1112 = vmatprep.subr.bf16.mxu0 0
      %1113 = vmatpush1.bf16.msra.mxu0 0
      %1114 = vmatprep.subr.bf16.mxu0 0
      %1115 = vmatpush1.bf16.msra.mxu0 0
      %1116 = vmatprep.subr.bf16.mxu0 0
      %1117 = vmatpush1.bf16.msra.mxu0 0
      %1118 = vmatprep.subr.bf16.mxu0 0
      %1119 = vmatpush1.bf16.msra.mxu0 0
      %1120 = vmatprep.subr.bf16.mxu0 0
      %1121 = vmatpush1.bf16.msra.mxu0 0
      %1122 = vmatprep.subr.bf16.mxu0 0
      %1123 = vmatpush1.bf16.msra.mxu0 %v1108
      %1124 = vmatprep.subr.bf16.mxu0 0
      %1125 = vmatpush1.bf16.msra.mxu0 %v1097
      %1126 = vmatprep.subr.bf16.mxu0 0
      %1127 = vmatpush2.bf16.msra.mxu0 0
      %1128 = vmatprep.subr.bf16.mxu0 0
      %1129 = vmatpush2.bf16.msra.mxu0 0
      %1130 = vmatprep.subr.bf16.mxu0 0
      %1131 = vmatpush2.bf16.msra.mxu0 0
      %1132 = vmatprep.subr.bf16.mxu0 0
      %1133 = vmatpush2.bf16.msra.mxu0 0
      %1134 = vmatprep.subr.bf16.mxu0 0
      %1135 = vmatpush2.bf16.msra.mxu0 0
      %1136 = vmatprep.subr.bf16.mxu0 0
      %1137 = vmatpush2.bf16.msra.mxu0 0
      %1138 = vmatprep.subr.bf16.mxu0 0
      %1139 = vmatpush2.bf16.msra.mxu0 0
      %1140 = vmatprep.subr.bf16.mxu0 0
      %1141 = vmatpush2.bf16.msra.mxu0 0
      %1142 = vmatprep.mubr.bf16.mxu0 0
      %1143 = vmatmul.mubr.bf16.gmra.mxu0 %v1102
      %v1144 = vpop.f32.mrf.mxu0
      %v1145 = vadd.f32 0.0, %v1144
      %v1146 = vpop.f32.mrf.mxu0
      %v1147 = vpop.f32.mrf.mxu0
      %v1148 = vadd.f32 0.0, %v1147
      %v1149 = vpop.f32.mrf.mxu0
      %1150 = vmatprep.mubr.bf16.mxu0 0
      %1151 = vmatmul.mubr.bf16.gmra.mxu0 %v1105
      %v1152 = vpop.f32.mrf.mxu0
      %v1153 = vadd.f32 0.0, %v1152
      %v1154 = vpop.f32.mrf.mxu0
      %v1155 = vpop.f32.mrf.mxu0
      %v1156 = vpop.f32.mrf.mxu0
      %1157 = vdwg.mxu0
      %v1158 = vpack.c.bf16 %v1148, %v1145
      %v1159 = vpack.c.bf16 %v1153, %v1153
      %v1161 = vsel %vm537, %v1158, 0
      %v1164 = vsel %vm537, %v1159, 0
      %v1167 = vsel %vm881, %v447, 0
      %1169 = vmatprep.subr.bf16.mxu0 0
      %1170 = vmatpush1.bf16.msra.mxu0 0
      %1171 = vmatprep.subr.bf16.mxu0 0
      %1172 = vmatpush1.bf16.msra.mxu0 0
      %1173 = vmatprep.subr.bf16.mxu0 0
      %1174 = vmatpush1.bf16.msra.mxu0 0
      %1175 = vmatprep.subr.bf16.mxu0 0
      %1176 = vmatpush1.bf16.msra.mxu0 0
      %1177 = vmatprep.subr.bf16.mxu0 0
      %1178 = vmatpush1.bf16.msra.mxu0 0
      %1179 = vmatprep.subr.bf16.mxu0 0
      %1180 = vmatpush1.bf16.msra.mxu0 0
      %1181 = vmatprep.subr.bf16.mxu0 0
      %1182 = vmatpush1.bf16.msra.mxu0 0
      %1183 = vmatprep.subr.bf16.mxu0 0
      %1184 = vmatpush1.bf16.msra.mxu0 %v1167
      %1185 = vmatprep.subr.bf16.mxu0 0
      %1186 = vmatpush2.bf16.msra.mxu0 0
      %1187 = vmatprep.subr.bf16.mxu0 0
      %1188 = vmatpush2.bf16.msra.mxu0 0
      %1189 = vmatprep.subr.bf16.mxu0 0
      %1190 = vmatpush2.bf16.msra.mxu0 0
      %1191 = vmatprep.subr.bf16.mxu0 0
      %1192 = vmatpush2.bf16.msra.mxu0 0
      %1193 = vmatprep.subr.bf16.mxu0 0
      %1194 = vmatpush2.bf16.msra.mxu0 0
      %1195 = vmatprep.subr.bf16.mxu0 0
      %1196 = vmatpush2.bf16.msra.mxu0 0
      %1197 = vmatprep.subr.bf16.mxu0 0
      %1198 = vmatpush2.bf16.msra.mxu0 0
      %1199 = vmatprep.subr.bf16.mxu0 0
      %1200 = vmatpush2.bf16.msra.mxu0 0
      %1201 = vmatprep.mubr.bf16.mxu0 0
      %1202 = vmatmul.mubr.bf16.gmra.mxu0 %v1161
      %v1203 = vpop.f32.mrf.mxu0
      %v1204 = vadd.f32 0.0, %v1203
      %v1205 = vpop.f32.mrf.mxu0
      %v1206 = vpop.f32.mrf.mxu0
      %v1207 = vadd.f32 0.0, %v1206
      %v1208 = vpop.f32.mrf.mxu0
      %1209 = vmatprep.mubr.bf16.mxu0 0
      %1210 = vmatmul.mubr.bf16.gmra.mxu0 %v1164
      %v1211 = vpop.f32.mrf.mxu0
      %v1212 = vadd.f32 0.0, %v1211
      %v1213 = vpop.f32.mrf.mxu0
      %v1214 = vpop.f32.mrf.mxu0
      %v1215 = vpop.f32.mrf.mxu0
      %1216 = vdwg.mxu0
      %v1217 = vadd.f32 %v977, %v1204
      %v1218 = vadd.f32 %v980, %v1207
      %v1219 = vadd.f32 %v985, %v1212
      %1220 = vrot.lane.b32.xlu0 %v529, 104
      %v1221 = vpop.permute.xlu0 %1220
      %1222 = vrot.lane.b32.xlu0 %v530, 104
      %v1223 = vpop.permute.xlu0 %1222
      %1224 = vrot.lane.b32.xlu0 %v529, 72
      %v1225 = vpop.permute.xlu0 %1224
      %1226 = vrot.lane.b32.xlu0 %v530, 72
      %v1227 = vpop.permute.xlu0 %1226
      %v1229 = vsel %vm537, %v1221, 0
      %v1232 = vsel %vm537, %v1223, 0
      %v1235 = vsel %vm537, %v1225, 0
      %v1238 = vsel %vm537, %v1227, 0
      %1240 = vmatprep.subr.bf16.mxu0 0
      %1241 = vmatpush1.bf16.xpose.msra.mxu0 0
      %1242 = vmatprep.subr.bf16.mxu0 0
      %1243 = vmatpush1.bf16.xpose.msra.mxu0 0
      %1244 = vmatprep.subr.bf16.mxu0 0
      %1245 = vmatpush1.bf16.xpose.msra.mxu0 0
      %1246 = vmatprep.subr.bf16.mxu0 0
      %1247 = vmatpush1.bf16.xpose.msra.mxu0 0
      %1248 = vmatprep.subr.bf16.mxu0 0
      %1249 = vmatpush1.bf16.xpose.msra.mxu0 0
      %1250 = vmatprep.subr.bf16.mxu0 0
      %1251 = vmatpush1.bf16.xpose.msra.mxu0 0
      %1252 = vmatprep.subr.bf16.mxu0 0
      %1253 = vmatpush1.bf16.xpose.msra.mxu0 %v1238
      %1254 = vmatprep.subr.bf16.mxu0 0
      %1255 = vmatpush1.bf16.xpose.msra.mxu0 %v1235
      %1256 = vmatprep.subr.bf16.mxu0 0
      %1257 = vmatpush2.bf16.xpose.msra.mxu0 0
      %1258 = vmatprep.subr.bf16.mxu0 0
      %1259 = vmatpush2.bf16.xpose.msra.mxu0 0
      %1260 = vmatprep.subr.bf16.mxu0 0
      %1261 = vmatpush2.bf16.xpose.msra.mxu0 0
      %1262 = vmatprep.subr.bf16.mxu0 0
      %1263 = vmatpush2.bf16.xpose.msra.mxu0 0
      %1264 = vmatprep.subr.bf16.mxu0 0
      %1265 = vmatpush2.bf16.xpose.msra.mxu0 0
      %1266 = vmatprep.subr.bf16.mxu0 0
      %1267 = vmatpush2.bf16.xpose.msra.mxu0 0
      %1268 = vmatprep.subr.bf16.mxu0 0
      %1269 = vmatpush2.bf16.xpose.msra.mxu0 0
      %1270 = vmatprep.subr.bf16.mxu0 0
      %1271 = vmatpush2.bf16.xpose.msra.mxu0 0
      %1272 = vmatprep.mubr.bf16.mxu0 0
      %1273 = vmatmul.mubr.bf16.gmra.mxu0 %v1229
      %v1274 = vpop.f32.mrf.mxu0
      %v1275 = vadd.f32 0.0, %v1274
      %v1276 = vpop.f32.mrf.mxu0
      %v1277 = vpop.f32.mrf.mxu0
      %v1278 = vadd.f32 0.0, %v1277
      %v1279 = vpop.f32.mrf.mxu0
      %1280 = vmatprep.mubr.bf16.mxu0 0
      %1281 = vmatmul.mubr.bf16.gmra.mxu0 %v1232
      %v1282 = vpop.f32.mrf.mxu0
      %v1283 = vadd.f32 0.0, %v1282
      %v1284 = vpop.f32.mrf.mxu0
      %v1285 = vpop.f32.mrf.mxu0
      %v1286 = vpop.f32.mrf.mxu0
      %1287 = vdwg.mxu0
      %v1288 = vmul.f32 %v1275, 0.35355338
      %v1289 = vmul.f32 %v1278, 0.35355338
      %v1290 = vmul.f32 %v1283, 0.35355338
      %v1291 = vsel %vm601, %v1288, -inf
      %1292 = vmax.xlane.f32.xlu0 %v1291
      %v1293 = vpop.xlane.xlu0 %1292
      %v1294 = vsel %vm601, %v1289, -inf
      %1295 = vmax.xlane.f32.xlu0 %v1294
      %v1296 = vpop.xlane.xlu0 %1295
      %v1297 = vsel %vm608, %v1290, -inf
      %1298 = vmax.xlane.f32.xlu0 %v1297
      %v1299 = vpop.xlane.xlu0 %1298
      %v1300 = vsub.f32 %v1288, %v1293
      %v1301 = vsub.f32 %v1289, %v1296
      %v1302 = vsub.f32 %v1290, %v1299
      %v1303 = vmul.f32 %v1300, 1.442695
      %v1304 = vpow.pop %v1303
      %v1305 = vmul.f32 %v1301, 1.442695
      %v1306 = vpow.pop %v1305
      %v1307 = vmul.f32 %v1302, 1.442695
      %v1308 = vpow.pop %v1307
      %v1309 = vsel %vm601, %v1304, 0.0
      %1310 = vadd.xlane.f32.xlu0 %v1309
      %v1311 = vpop.xlane.xlu0 %1310
      %v1312 = vsel %vm601, %v1306, 0.0
      %1313 = vadd.xlane.f32.xlu0 %v1312
      %v1314 = vpop.xlane.xlu0 %1313
      %v1315 = vsel %vm608, %v1308, 0.0
      %1316 = vadd.xlane.f32.xlu0 %v1315
      %v1317 = vpop.xlane.xlu0 %1316
      %v1318 = vrcp.pop %v1311
      %v1319 = vrcp.pop %v1314
      %v1320 = vrcp.pop %v1317
      %v1321 = vmul.f32 %v1304, %v1318
      %v1322 = vmul.f32 %v1306, %v1319
      %v1323 = vmul.f32 %v1308, %v1320
      %v1324 = vpack.c.bf16 %v1322, %v1321
      %v1325 = vpack.c.bf16 %v1323, %v1323
      %1326 = vrot.lane.b32.xlu0 %v529, 40
      %v1327 = vpop.permute.xlu0 %1326
      %1328 = vrot.lane.b32.xlu0 %v530, 40
      %v1329 = vpop.permute.xlu0 %1328
      %v1332 = vsel %vm601, %v1324, 0
      %v1335 = vsel %vm601, %v1325, 0
      %v1338 = vand.u32 %v1329, %v651
      %1340 = vmatprep.subr.bf16.mxu0 0
      %1341 = vmatpush1.bf16.msra.mxu0 0
      %1342 = vmatprep.subr.bf16.mxu0 0
      %1343 = vmatpush1.bf16.msra.mxu0 0
      %1344 = vmatprep.subr.bf16.mxu0 0
      %1345 = vmatpush1.bf16.msra.mxu0 0
      %1346 = vmatprep.subr.bf16.mxu0 0
      %1347 = vmatpush1.bf16.msra.mxu0 0
      %1348 = vmatprep.subr.bf16.mxu0 0
      %1349 = vmatpush1.bf16.msra.mxu0 0
      %1350 = vmatprep.subr.bf16.mxu0 0
      %1351 = vmatpush1.bf16.msra.mxu0 0
      %1352 = vmatprep.subr.bf16.mxu0 0
      %1353 = vmatpush1.bf16.msra.mxu0 %v1338
      %1354 = vmatprep.subr.bf16.mxu0 0
      %1355 = vmatpush1.bf16.msra.mxu0 %v1327
      %1356 = vmatprep.subr.bf16.mxu0 0
      %1357 = vmatpush2.bf16.msra.mxu0 0
      %1358 = vmatprep.subr.bf16.mxu0 0
      %1359 = vmatpush2.bf16.msra.mxu0 0
      %1360 = vmatprep.subr.bf16.mxu0 0
      %1361 = vmatpush2.bf16.msra.mxu0 0
      %1362 = vmatprep.subr.bf16.mxu0 0
      %1363 = vmatpush2.bf16.msra.mxu0 0
      %1364 = vmatprep.subr.bf16.mxu0 0
      %1365 = vmatpush2.bf16.msra.mxu0 0
      %1366 = vmatprep.subr.bf16.mxu0 0
      %1367 = vmatpush2.bf16.msra.mxu0 0
      %1368 = vmatprep.subr.bf16.mxu0 0
      %1369 = vmatpush2.bf16.msra.mxu0 0
      %1370 = vmatprep.subr.bf16.mxu0 0
      %1371 = vmatpush2.bf16.msra.mxu0 0
      %1372 = vmatprep.mubr.bf16.mxu0 0
      %1373 = vmatmul.mubr.bf16.gmra.mxu0 %v1332
      %v1374 = vpop.f32.mrf.mxu0
      %v1375 = vadd.f32 0.0, %v1374
      %v1376 = vpop.f32.mrf.mxu0
      %v1377 = vpop.f32.mrf.mxu0
      %v1378 = vadd.f32 0.0, %v1377
      %v1379 = vpop.f32.mrf.mxu0
      %1380 = vmatprep.mubr.bf16.mxu0 0
      %1381 = vmatmul.mubr.bf16.gmra.mxu0 %v1335
      %v1382 = vpop.f32.mrf.mxu0
      %v1383 = vadd.f32 0.0, %v1382
      %v1384 = vpop.f32.mrf.mxu0
      %v1385 = vpop.f32.mrf.mxu0
      %v1386 = vpop.f32.mrf.mxu0
      %1387 = vdwg.mxu0
      %v1388 = vpack.c.bf16 %v1378, %v1375
      %v1389 = vpack.c.bf16 %v1383, %v1383
      %v1391 = vsel %vm537, %v1388, 0
      %v1394 = vsel %vm537, %v1389, 0
      %v1397 = vsel %vm881, %v448, 0
      %1399 = vmatprep.subr.bf16.mxu0 0
      %1400 = vmatpush1.bf16.msra.mxu0 0
      %1401 = vmatprep.subr.bf16.mxu0 0
      %1402 = vmatpush1.bf16.msra.mxu0 0
      %1403 = vmatprep.subr.bf16.mxu0 0
      %1404 = vmatpush1.bf16.msra.mxu0 0
      %1405 = vmatprep.subr.bf16.mxu0 0
      %1406 = vmatpush1.bf16.msra.mxu0 0
      %1407 = vmatprep.subr.bf16.mxu0 0
      %1408 = vmatpush1.bf16.msra.mxu0 0
      %1409 = vmatprep.subr.bf16.mxu0 0
      %1410 = vmatpush1.bf16.msra.mxu0 0
      %1411 = vmatprep.subr.bf16.mxu0 0
      %1412 = vmatpush1.bf16.msra.mxu0 0
      %1413 = vmatprep.subr.bf16.mxu0 0
      %1414 = vmatpush1.bf16.msra.mxu0 %v1397
      %1415 = vmatprep.subr.bf16.mxu0 0
      %1416 = vmatpush2.bf16.msra.mxu0 0
      %1417 = vmatprep.subr.bf16.mxu0 0
      %1418 = vmatpush2.bf16.msra.mxu0 0
      %1419 = vmatprep.subr.bf16.mxu0 0
      %1420 = vmatpush2.bf16.msra.mxu0 0
      %1421 = vmatprep.subr.bf16.mxu0 0
      %1422 = vmatpush2.bf16.msra.mxu0 0
      %1423 = vmatprep.subr.bf16.mxu0 0
      %1424 = vmatpush2.bf16.msra.mxu0 0
      %1425 = vmatprep.subr.bf16.mxu0 0
      %1426 = vmatpush2.bf16.msra.mxu0 0
      %1427 = vmatprep.subr.bf16.mxu0 0
      %1428 = vmatpush2.bf16.msra.mxu0 0
      %1429 = vmatprep.subr.bf16.mxu0 0
      %1430 = vmatpush2.bf16.msra.mxu0 0
      %1431 = vmatprep.mubr.bf16.mxu0 0
      %1432 = vmatmul.mubr.bf16.gmra.mxu0 %v1391
      %v1433 = vpop.f32.mrf.mxu0
      %v1434 = vadd.f32 0.0, %v1433
      %v1435 = vpop.f32.mrf.mxu0
      %v1436 = vpop.f32.mrf.mxu0
      %v1437 = vadd.f32 0.0, %v1436
      %v1438 = vpop.f32.mrf.mxu0
      %1439 = vmatprep.mubr.bf16.mxu0 0
      %1440 = vmatmul.mubr.bf16.gmra.mxu0 %v1394
      %v1441 = vpop.f32.mrf.mxu0
      %v1442 = vadd.f32 0.0, %v1441
      %v1443 = vpop.f32.mrf.mxu0
      %v1444 = vpop.f32.mrf.mxu0
      %v1445 = vpop.f32.mrf.mxu0
      %1446 = vdwg.mxu0
      %v1447 = vadd.f32 %v1217, %v1434
      %v1448 = vadd.f32 %v1218, %v1437
      %v1449 = vadd.f32 %v1219, %v1442
      %v1450 = vld [vmem:[%s4] sm:$0x1]
      %v1452 = vlaneseq
      %v1453 = vshrl.u32 %v1452, 7
      %v1454 = vsub.s32 0, %v1453
      %v1455 = vrot.slane %v1450, %v1454
      %v1457 = vadd.f32 %v1447, %v1455
      %v1458 = vadd.f32 %v1448, %v1455
      %v1459 = vadd.f32 %v1449, %v1455
      %v1460 = vadd.f32 %v442, %v1457
      %v1461 = vadd.f32 %v443, %v1458
      %v1462 = vadd.f32 %v444, %v1459
      %v1463 = vld [vmem:[%s5] sm:$0x1]
      %v1464 = vld [vmem:[%s6] sm:$0x1]
      %v1465 = vsel %vm474, %v1460, 0.0
      %1466 = vadd.xlane.f32.xlu0 %v1465
      %v1467 = vpop.xlane.xlu0 %1466
      %v1468 = vsel %vm474, %v1461, 0.0
      %1469 = vadd.xlane.f32.xlu0 %v1468
      %v1470 = vpop.xlane.xlu0 %1469
      %vm1471 = vcmask 253952
      %v1472 = vsel %vm1471, %v1462, 0.0
      %1473 = vadd.xlane.f32.xlu0 %v1472
      %v1474 = vpop.xlane.xlu0 %1473
      %v1475 = vrcp.pop 32.0
      %v1476 = vmul.f32 %v1467, %v1475
      %v1477 = vmul.f32 %v1470, %v1475
      %v1478 = vmul.f32 %v1474, %v1475
      %v1479 = vsub.f32 %v1460, %v1476
      %v1480 = vsub.f32 %v1461, %v1477
      %v1481 = vsub.f32 %v1462, %v1478
      %v1482 = vmul.f32 %v1479, %v1479
      %v1483 = vmul.f32 %v1480, %v1480
      %v1484 = vmul.f32 %v1481, %v1481
      %v1485 = vsel %vm474, %v1482, 0.0
      %1486 = vadd.xlane.f32.xlu0 %v1485
      %v1487 = vpop.xlane.xlu0 %1486
      %v1488 = vsel %vm474, %v1483, 0.0
      %1489 = vadd.xlane.f32.xlu0 %v1488
      %v1490 = vpop.xlane.xlu0 %1489
      %v1491 = vsel %vm1471, %v1484, 0.0
      %1492 = vadd.xlane.f32.xlu0 %v1491
      %v1493 = vpop.xlane.xlu0 %1492
      %v1494 = vmul.f32 %v1487, %v1475
      %v1495 = vmul.f32 %v1490, %v1475
      %v1496 = vmul.f32 %v1493, %v1475
      %v1497 = vadd.f32 %v1494, 1e-05
      %v1498 = vadd.f32 %v1495, 1e-05
      %v1499 = vadd.f32 %v1496, 1e-05
      %v1500 = vrsqrt.pop %v1497
      %v1501 = vrsqrt.pop %v1498
      %v1502 = vrsqrt.pop %v1499
      %v1503 = vmul.f32 %v1479, %v1500
      %v1504 = vmul.f32 %v1480, %v1501
      %v1505 = vmul.f32 %v1481, %v1502
      %v1507 = vlaneseq
      %v1508 = vshrl.u32 %v1507, 7
      %v1509 = vsub.s32 0, %v1508
      %v1510 = vrot.slane %v1463, %v1509
      %v1512 = vmul.f32 %v1503, %v1510
      %v1513 = vmul.f32 %v1504, %v1510
      %v1514 = vmul.f32 %v1505, %v1510
      %v1516 = vlaneseq
      %v1517 = vshrl.u32 %v1516, 7
      %v1518 = vsub.s32 0, %v1517
      %v1519 = vrot.slane %v1464, %v1518
      %v1521 = vadd.f32 %v1512, %v1519
      %v1522 = vadd.f32 %v1513, %v1519
      %v1523 = vadd.f32 %v1514, %v1519
      %v1524 = vpack.c.bf16 %v1522, %v1521
      %v1525 = vpack.c.bf16 %v1523, %v1523
      %v1526 = vld [vmem:[%s7] sm:$0xf]
      %v1527 = vld [vmem:[%s7 + $0x4] sm:$0xf]
      %v1528 = vld [vmem:[%s7 + $0x8] sm:$0xf]
      %v1529 = vld [vmem:[%s7 + $0xc] sm:$0xf]
      %v1530 = vld [vmem:[%s8] sm:$0x1]
      %v1532 = vlaneseq
      %v1533 = vshrl.u32 %v1532, 7
      %v1534 = vsub.s32 0, %v1533
      %v1535 = vrot.slane %v1530, %v1534
      %v1541 = vunpack.c.l.b16 %v1526
      %v1542 = vunpack.c.l.b16 %v1527
      %v1543 = vunpack.c.l.b16 %v1528
      %v1544 = vunpack.c.l.b16 %v1529
      %v1545 = vpack.c.b16 %v1542, %v1541
      %v1546 = vpack.c.b16 %v1544, %v1543
      %v1550 = vsel %vm474, %v1524, 0
      %v1553 = vsel %vm474, %v1525, 0
      %1555 = vmatprep.subr.bf16.mxu0 0
      %1556 = vmatpush1.bf16.msra.mxu0 0
      %1557 = vmatprep.subr.bf16.mxu0 0
      %1558 = vmatpush1.bf16.msra.mxu0 0
      %1559 = vmatprep.subr.bf16.mxu0 0
      %1560 = vmatpush1.bf16.msra.mxu0 0
      %1561 = vmatprep.subr.bf16.mxu0 0
      %1562 = vmatpush1.bf16.msra.mxu0 0
      %1563 = vmatprep.subr.bf16.mxu0 0
      %1564 = vmatpush1.bf16.msra.mxu0 0
      %1565 = vmatprep.subr.bf16.mxu0 0
      %1566 = vmatpush1.bf16.msra.mxu0 0
      %1567 = vmatprep.subr.bf16.mxu0 0
      %1568 = vmatpush1.bf16.msra.mxu0 %v1546
      %1569 = vmatprep.subr.bf16.mxu0 0
      %1570 = vmatpush1.bf16.msra.mxu0 %v1545
      %1571 = vmatprep.subr.bf16.mxu0 0
      %1572 = vmatpush2.bf16.msra.mxu0 0
      %1573 = vmatprep.subr.bf16.mxu0 0
      %1574 = vmatpush2.bf16.msra.mxu0 0
      %1575 = vmatprep.subr.bf16.mxu0 0
      %1576 = vmatpush2.bf16.msra.mxu0 0
      %1577 = vmatprep.subr.bf16.mxu0 0
      %1578 = vmatpush2.bf16.msra.mxu0 0
      %1579 = vmatprep.subr.bf16.mxu0 0
      %1580 = vmatpush2.bf16.msra.mxu0 0
      %1581 = vmatprep.subr.bf16.mxu0 0
      %1582 = vmatpush2.bf16.msra.mxu0 0
      %1583 = vmatprep.subr.bf16.mxu0 0
      %1584 = vmatpush2.bf16.msra.mxu0 0
      %1585 = vmatprep.subr.bf16.mxu0 0
      %1586 = vmatpush2.bf16.msra.mxu0 0
      %1587 = vmatprep.mubr.bf16.mxu0 0
      %1588 = vmatmul.mubr.bf16.gmra.mxu0 %v1550
      %v1589 = vpop.f32.mrf.mxu0
      %v1590 = vadd.f32 %v1535, %v1589
      %v1591 = vpop.f32.mrf.mxu0
      %v1592 = vpop.f32.mrf.mxu0
      %v1593 = vadd.f32 %v1535, %v1592
      %v1594 = vpop.f32.mrf.mxu0
      %1595 = vmatprep.mubr.bf16.mxu0 0
      %1596 = vmatmul.mubr.bf16.gmra.mxu0 %v1553
      %v1597 = vpop.f32.mrf.mxu0
      %v1598 = vadd.f32 %v1535, %v1597
      %v1599 = vpop.f32.mrf.mxu0
      %v1600 = vpop.f32.mrf.mxu0
      %v1601 = vpop.f32.mrf.mxu0
      %1602 = vdwg.mxu0
      %v1603 = vmul.f32 %v1590, 0.5
      %v1604 = vmul.f32 %v1593, 0.5
      %v1605 = vmul.f32 %v1598, 0.5
      %v1606 = vmul.f32 %v1590, 0.70710677
      %v1607 = vmul.f32 %v1593, 0.70710677
      %v1608 = vmul.f32 %v1598, 0.70710677
      %v1609 = vand.u32 2147483647, %v1606
      %v1610 = vand.u32 2147483647, %v1607
      %v1611 = vand.u32 2147483647, %v1608
      %v1612 = vmul.f32 %v1609, 0.3275911
      %v1613 = vmul.f32 %v1610, 0.3275911
      %v1614 = vmul.f32 %v1611, 0.3275911
      %v1615 = vadd.f32 %v1612, 1.0
      %v1616 = vadd.f32 %v1613, 1.0
      %v1617 = vadd.f32 %v1614, 1.0
      %v1618 = vrcp.pop %v1615
      %v1619 = vmul.f32 1.0, %v1618
      %v1620 = vrcp.pop %v1616
      %v1621 = vmul.f32 1.0, %v1620
      %v1622 = vrcp.pop %v1617
      %v1623 = vmul.f32 1.0, %v1622
      %v1624 = vmul.f32 %v1619, 1.0614054
      %v1625 = vmul.f32 %v1621, 1.0614054
      %v1626 = vmul.f32 %v1623, 1.0614054
      %v1627 = vadd.f32 %v1624, -1.4531521
      %v1628 = vadd.f32 %v1625, -1.4531521
      %v1629 = vadd.f32 %v1626, -1.4531521
      %v1630 = vmul.f32 %v1627, %v1619
      %v1631 = vmul.f32 %v1628, %v1621
      %v1632 = vmul.f32 %v1629, %v1623
      %v1633 = vadd.f32 %v1630, 1.4214138
      %v1634 = vadd.f32 %v1631, 1.4214138
      %v1635 = vadd.f32 %v1632, 1.4214138
      %v1636 = vmul.f32 %v1633, %v1619
      %v1637 = vmul.f32 %v1634, %v1621
      %v1638 = vmul.f32 %v1635, %v1623
      %v1639 = vadd.f32 %v1636, -0.28449672
      %v1640 = vadd.f32 %v1637, -0.28449672
      %v1641 = vadd.f32 %v1638, -0.28449672
      %v1642 = vmul.f32 %v1639, %v1619
      %v1643 = vmul.f32 %v1640, %v1621
      %v1644 = vmul.f32 %v1641, %v1623
      %v1645 = vadd.f32 %v1642, 0.2548296
      %v1646 = vadd.f32 %v1643, 0.2548296
      %v1647 = vadd.f32 %v1644, 0.2548296
      %v1648 = vmul.f32 %v1645, %v1619
      %v1649 = vmul.f32 %v1646, %v1621
      %v1650 = vmul.f32 %v1647, %v1623
      %v1651 = vsub.f32 0.0, %v1609
      %v1652 = vsub.f32 0.0, %v1610
      %v1653 = vsub.f32 0.0, %v1611
      %v1654 = vmul.f32 %v1651, %v1609
      %v1655 = vmul.f32 %v1652, %v1610
      %v1656 = vmul.f32 %v1653, %v1611
      %v1657 = vmul.f32 %v1654, 1.442695
      %v1658 = vpow.pop %v1657
      %v1659 = vmul.f32 %v1655, 1.442695
      %v1660 = vpow.pop %v1659
      %v1661 = vmul.f32 %v1656, 1.442695
      %v1662 = vpow.pop %v1661
      %v1663 = vmul.f32 %v1648, %v1658
      %v1664 = vmul.f32 %v1649, %v1660
      %v1665 = vmul.f32 %v1650, %v1662
      %v1666 = vsub.f32 1.0, %v1663
      %v1667 = vsub.f32 1.0, %v1664
      %v1668 = vsub.f32 1.0, %v1665
      %vm1669 = vcmp.ge.f32.partialorder %v1606, 0.0
      %vm1670 = vcmp.ge.f32.partialorder %v1607, 0.0
      %vm1671 = vcmp.ge.f32.partialorder %v1608, 0.0
      %v1672 = vsub.f32 0.0, %v1666
      %v1673 = vsub.f32 0.0, %v1667
      %v1674 = vsub.f32 0.0, %v1668
      %v1675 = vsel %vm1669, %v1666, %v1672
      %v1676 = vsel %vm1670, %v1667, %v1673
      %v1677 = vsel %vm1671, %v1668, %v1674
      %v1678 = vadd.f32 %v1675, 1.0
      %v1679 = vadd.f32 %v1676, 1.0
      %v1680 = vadd.f32 %v1677, 1.0
      %v1681 = vmul.f32 %v1603, %v1678
      %v1682 = vmul.f32 %v1604, %v1679
      %v1683 = vmul.f32 %v1605, %v1680
      %v1684 = vpack.c.bf16 %v1682, %v1681
      %v1685 = vpack.c.bf16 %v1683, %v1683
      %v1686 = vld [vmem:[%s9] sm:$0xf]
      %v1687 = vld [vmem:[%s9 + $0x4] sm:$0xf]
      %v1688 = vld [vmem:[%s9 + $0x8] sm:$0xf]
      %v1689 = vld [vmem:[%s9 + $0xc] sm:$0xf]
      %v1690 = vld [vmem:[%s9 + $0x10] sm:$0xf]
      %v1691 = vld [vmem:[%s9 + $0x14] sm:$0xf]
      %v1692 = vld [vmem:[%s9 + $0x18] sm:$0xf]
      %v1693 = vld [vmem:[%s9 + $0x1c] sm:$0xf]
      %v1694 = vld [vmem:[%s10] sm:$0x1]
      %v1696 = vlaneseq
      %v1697 = vshrl.u32 %v1696, 7
      %v1698 = vsub.s32 0, %v1697
      %v1699 = vrot.slane %v1694, %v1698
      %v1709 = vunpack.c.l.b16 %v1686
      %v1710 = vunpack.c.l.b16 %v1687
      %v1711 = vunpack.c.l.b16 %v1688
      %v1712 = vunpack.c.l.b16 %v1689
      %v1713 = vunpack.c.l.b16 %v1690
      %v1714 = vunpack.c.l.b16 %v1691
      %v1715 = vunpack.c.l.b16 %v1692
      %v1716 = vunpack.c.l.b16 %v1693
      %v1717 = vpack.c.b16 %v1710, %v1709
      %v1718 = vpack.c.b16 %v1712, %v1711
      %v1719 = vpack.c.b16 %v1714, %v1713
      %v1720 = vpack.c.b16 %v1716, %v1715
      %vm1725 = vcmask 523264
      %v1727 = vsel %vm1725, %v1684, 0
      %v1730 = vsel %vm1725, %v1685, 0
      %1732 = vmatprep.subr.bf16.mxu0 0
      %1733 = vmatpush1.bf16.msra.mxu0 0
      %1734 = vmatprep.subr.bf16.mxu0 0
      %1735 = vmatpush1.bf16.msra.mxu0 0
      %1736 = vmatprep.subr.bf16.mxu0 0
      %1737 = vmatpush1.bf16.msra.mxu0 0
      %1738 = vmatprep.subr.bf16.mxu0 0
      %1739 = vmatpush1.bf16.msra.mxu0 0
      %1740 = vmatprep.subr.bf16.mxu0 0
      %1741 = vmatpush1.bf16.msra.mxu0 %v1720
      %1742 = vmatprep.subr.bf16.mxu0 0
      %1743 = vmatpush1.bf16.msra.mxu0 %v1719
      %1744 = vmatprep.subr.bf16.mxu0 0
      %1745 = vmatpush1.bf16.msra.mxu0 %v1718
      %1746 = vmatprep.subr.bf16.mxu0 0
      %1747 = vmatpush1.bf16.msra.mxu0 %v1717
      %1748 = vmatprep.subr.bf16.mxu0 0
      %1749 = vmatpush2.bf16.msra.mxu0 0
      %1750 = vmatprep.subr.bf16.mxu0 0
      %1751 = vmatpush2.bf16.msra.mxu0 0
      %1752 = vmatprep.subr.bf16.mxu0 0
      %1753 = vmatpush2.bf16.msra.mxu0 0
      %1754 = vmatprep.subr.bf16.mxu0 0
      %1755 = vmatpush2.bf16.msra.mxu0 0
      %1756 = vmatprep.subr.bf16.mxu0 0
      %1757 = vmatpush2.bf16.msra.mxu0 0
      %1758 = vmatprep.subr.bf16.mxu0 0
      %1759 = vmatpush2.bf16.msra.mxu0 0
      %1760 = vmatprep.subr.bf16.mxu0 0
      %1761 = vmatpush2.bf16.msra.mxu0 0
      %1762 = vmatprep.subr.bf16.mxu0 0
      %1763 = vmatpush2.bf16.msra.mxu0 0
      %1764 = vmatprep.mubr.bf16.mxu0 0
      %1765 = vmatmul.mubr.bf16.gmra.mxu0 %v1727
      %v1766 = vpop.f32.mrf.mxu0
      %v1767 = vadd.f32 %v1699, %v1766
      %v1768 = vpop.f32.mrf.mxu0
      %v1769 = vpop.f32.mrf.mxu0
      %v1770 = vadd.f32 %v1699, %v1769
      %v1771 = vpop.f32.mrf.mxu0
      %1772 = vmatprep.mubr.bf16.mxu0 0
      %1773 = vmatmul.mubr.bf16.gmra.mxu0 %v1730
      %v1774 = vpop.f32.mrf.mxu0
      %v1775 = vadd.f32 %v1699, %v1774
      %v1776 = vpop.f32.mrf.mxu0
      %v1777 = vpop.f32.mrf.mxu0
      %v1778 = vpop.f32.mrf.mxu0
      %1779 = vdwg.mxu0
      %v1780 = vadd.f32 %v1521, %v1767
      %v1781 = vadd.f32 %v1522, %v1770
      %v1782 = vadd.f32 %v1523, %v1775
      %v1783 = vld [vmem:[%s11] sm:$0x1]
      %v1784 = vld [vmem:[%s12] sm:$0x1]
      %v1785 = vsel %vm474, %v1780, 0.0
      %1786 = vadd.xlane.f32.xlu0 %v1785
      %v1787 = vpop.xlane.xlu0 %1786
      %v1788 = vsel %vm474, %v1781, 0.0
      %1789 = vadd.xlane.f32.xlu0 %v1788
      %v1790 = vpop.xlane.xlu0 %1789
      %v1791 = vsel %vm1471, %v1782, 0.0
      %1792 = vadd.xlane.f32.xlu0 %v1791
      %v1793 = vpop.xlane.xlu0 %1792
      %v1794 = vmul.f32 %v1787, %v1475
      %v1795 = vmul.f32 %v1790, %v1475
      %v1796 = vmul.f32 %v1793, %v1475
      %v1797 = vsub.f32 %v1780, %v1794
      %v1798 = vsub.f32 %v1781, %v1795
      %v1799 = vsub.f32 %v1782, %v1796
      %v1800 = vmul.f32 %v1797, %v1797
      %v1801 = vmul.f32 %v1798, %v1798
      %v1802 = vmul.f32 %v1799, %v1799
      %v1803 = vsel %vm474, %v1800, 0.0
      %1804 = vadd.xlane.f32.xlu0 %v1803
      %v1805 = vpop.xlane.xlu0 %1804
      %v1806 = vsel %vm474, %v1801, 0.0
      %1807 = vadd.xlane.f32.xlu0 %v1806
      %v1808 = vpop.xlane.xlu0 %1807
      %v1809 = vsel %vm1471, %v1802, 0.0
      %1810 = vadd.xlane.f32.xlu0 %v1809
      %v1811 = vpop.xlane.xlu0 %1810
      %v1812 = vmul.f32 %v1805, %v1475
      %v1813 = vmul.f32 %v1808, %v1475
      %v1814 = vmul.f32 %v1811, %v1475
      %v1815 = vadd.f32 %v1812, 1e-05
      %v1816 = vadd.f32 %v1813, 1e-05
      %v1817 = vadd.f32 %v1814, 1e-05
      %v1818 = vrsqrt.pop %v1815
      %v1819 = vrsqrt.pop %v1816
      %v1820 = vrsqrt.pop %v1817
      %v1821 = vmul.f32 %v1797, %v1818
      %v1822 = vmul.f32 %v1798, %v1819
      %v1823 = vmul.f32 %v1799, %v1820
      %v1825 = vlaneseq
      %v1826 = vshrl.u32 %v1825, 7
      %v1827 = vsub.s32 0, %v1826
      %v1828 = vrot.slane %v1783, %v1827
      %v1830 = vmul.f32 %v1821, %v1828
      %v1831 = vmul.f32 %v1822, %v1828
      %v1832 = vmul.f32 %v1823, %v1828
      %v1834 = vlaneseq
      %v1835 = vshrl.u32 %v1834, 7
      %v1836 = vsub.s32 0, %v1835
      %v1837 = vrot.slane %v1784, %v1836
      %v1839 = vadd.f32 %v1830, %v1837
      %v1840 = vadd.f32 %v1831, %v1837
      %v1841 = vadd.f32 %v1832, %v1837
      %1842 = vst.msk [vmem:[%s440] sm:$0xff] %vm474, %v1839
      %1843 = vst.msk [vmem:[%s440 + $0x8] sm:$0xff] %vm474, %v1840
      %1844 = vst.msk [vmem:[%s440 + $0x10] sm:$0x1] %vm1471, %v1841
      %p1845 = scmp.lt.s32.totalorder %s24, 1
      %s1846 = scalar_select %p1845, %s24, 1
      %s1847 = smul.addr %s1846, 3
      %s1848 = smul.addr %s1847, 8
      %s1849 = scalar_lea.vmem %s13, %s1848
      // Predicated region
      $region73: #{vit_forward.5} parent=71 // pred_check
        %p1850 = pneg %p320
      $region74: #{vit_forward.5} parent=71 // pred_check_branch
        %1852 = sbr.rel (%p1850) target = $region76
      $region75: #{vit_forward.5} parent=71 // pred_region
        _
      $region76: #{vit_forward.5} parent=71 // pred_fallthru
        _
    $region72: #{vit_forward.5} parent=5 // pred_fallthru
      _
    %p1853 = scmp.le.s32.totalorder 2, %s19
    // Predicated region
    $region77: #{vit_forward.5} parent=5 // pred_check
      %p1854 = pneg %p1853
    $region78: #{vit_forward.5} parent=5 // pred_check_branch
      %1856 = sbr.rel (%p1854) target = $region80
    $region79: #{vit_forward.5} parent=5 // pred_region
      %s1857 = ssub.s32 %s19, 2
      // Predicated region
      $region81: #{vit_forward.5} parent=79 // pred_check
        %p1858 = pneg %p326
      $region82: #{vit_forward.5} parent=79 // pred_check_branch
        %1860 = sbr.rel (%p1858) target = $region84
      $region83: #{vit_forward.5} parent=79 // pred_region
        %p1861 = scmp.lt.s32.totalorder %s25, 1
        %s1862 = scalar_select %p1861, %s25, 1
        %s1863 = smul.addr %s1862, 3
        %s1864 = smul.addr %s1863, 8
        %s1865 = scalar_lea.vmem %s13, %s1864
      $region84: #{vit_forward.5} parent=79 // pred_fallthru
        _
    $region80: #{vit_forward.5} parent=5 // pred_fallthru
      _
  $region6: #{vit_forward.5} parent=0 // loop_footer
    %s23 = sadd.s32 1, %s19
  $region7: #{vit_forward.5} parent=0 // loop_footer_branch
    %18 = sbr.rel target = $region3
  $region8: #{vit_forward.5} parent=0 // loop_exit
    _

</llo_original>
